<compile_context>
chip_gen: v7x
topology: tpu7x:2x2x1
jax: 0.10.0
libtpu: 0.0.40
codegen_flags: <defaults>
</compile_context>

<pallas_src>
import numpy as np
import jax
import jax.numpy as jnp
from jax import lax
from jax.experimental import pallas as pl
from jax.experimental.pallas import tpu as pltpu

# ---------------- static problem sizes (consistent with fc1 = Linear(2048, 1024)) ----
N = 2              # batch
C_IN = 16          # in_channels (small synthetic choice)
H = W = 14         # spatial -> avgpool(5, stride 3) -> 4x4 ; 128*4*4 = 2048
OH = OW = 4
HW = H * W         # 196
S = OH * OW        # 16
C_MID = 128
FEAT = C_MID * S   # 2048
HID = 1024
HIDH = HID // 2    # per-grid-step half of fc1 output
NUM_CLASSES = 10
NC_PAD = 128       # lane-dense padded class count


# ---------------- fused kernel -------------------------------------------------------
def fused_kernel(xt_ref, pt_ref, wct_ref, bc_ref, w1_ref, b1_ref, w2_ref,
                 o_ref, flat_ref):
    # ---- avgpool(5,3) as matmul + 1x1 conv (BN folded) + ReLU, both samples ----
    for n in range(N):                                   # static unroll (N = 2)
        pooled = jnp.dot(pt_ref[...], xt_ref[n],
                         preferred_element_type=jnp.float32)            # (S, C_IN)
        y = jnp.dot(pooled, wct_ref[...],
                    preferred_element_type=jnp.float32) + bc_ref[...]   # (S, C_MID)
        y = jnp.maximum(y, 0.0)
        # scatter rows into the flattened feature (s-major layout; w1 pre-permuted)
        for s in range(S):
            flat_ref[pl.ds(n, 1), pl.ds(s * C_MID, C_MID)] = y[s:s + 1, :]

    flat = flat_ref[...].astype(jnp.bfloat16)                           # (N, FEAT)

    # ---- fc1 (this step's half of HID) + ReLU; Dropout(0.7) = eval identity ----
    h = jnp.dot(flat, w1_ref[...],
                preferred_element_type=jnp.float32) + b1_ref[...]       # (N, HIDH)
    h = jnp.maximum(h, 0.0).astype(jnp.bfloat16)

    # ---- fc2 partial contribution of this HID half (classes padded to 128) ----
    o_ref[0] = jnp.dot(h, w2_ref[...], preferred_element_type=jnp.float32)


@jax.jit
def auxiliary_forward(x_nchw, params):
    # layout glue: NCHW -> [N, HW, C_IN] so the pooling matmul needs no in-kernel transpose
    x_t = x_nchw.reshape(N, C_IN, HW).transpose(0, 2, 1)

    partials = pl.pallas_call(
        fused_kernel,
        out_shape=jax.ShapeDtypeStruct((2, N, NC_PAD), jnp.float32),
        grid=(2,),
        in_specs=[
            pl.BlockSpec((N, HW, C_IN), lambda h: (0, 0, 0)),      # x (transposed)
            pl.BlockSpec((S, HW), lambda h: (0, 0)),               # pooling matrix^T
            pl.BlockSpec((C_IN, C_MID), lambda h: (0, 0)),         # folded conv W^T
            pl.BlockSpec((1, C_MID), lambda h: (0, 0)),            # folded conv bias
            pl.BlockSpec((FEAT, HIDH), lambda h: (0, h)),          # w1 half (bf16)
            pl.BlockSpec((1, HIDH), lambda h: (0, h)),             # b1 half
            pl.BlockSpec((HIDH, NC_PAD), lambda h: (h, 0)),        # w2 half (bf16, padded)
        ],
        out_specs=pl.BlockSpec((1, N, NC_PAD), lambda h: (h, 0, 0)),
        scratch_shapes=[pltpu.VMEM((N, FEAT), jnp.float32)],
        compiler_params=pltpu.CompilerParams(
            dimension_semantics=("parallel",),
            vmem_limit_bytes=16 << 20,
        ),
    )(x_t, params["pool_t"], params["w_conv_t"], params["b_conv"],
      params["w1_p"], params["b1"], params["w2_pad"])

    # sum the two HID-half partials, drop class padding, add fc2 bias
    return partials.sum(axis=0)[:, :NUM_CLASSES] + params["b2"]


# ---------------- pure-JAX reference (independent path, bf16-rounded weights) --------
def reference_forward(x_nchw, params):
    pooled = lax.reduce_window(x_nchw, 0.0, lax.add,
                               (1, 1, 5, 5), (1, 1, 3, 3), "VALID") / 25.0
    w_eff = params["w_conv_t"].T                  # (C_MID, C_IN)
    b_eff = params["b_conv"][0]                   # (C_MID,)
    y = jnp.einsum("oc,nchw->nohw", w_eff, pooled) + b_eff[None, :, None, None]
    y = jnp.maximum(y, 0.0)
    f = y.reshape(N, -1)
    f = f.astype(jnp.bfloat16).astype(jnp.float32)          # mirror kernel activations
    h = jnp.maximum(f @ params["w1_ref"] + params["b1"][0], 0.0)
    h = h.astype(jnp.bfloat16).astype(jnp.float32)
    return h @ params["w2_ref"] + params["b2"]


# ---------------- deterministic parameter construction -------------------------------
def make_params():
    key = jax.random.PRNGKey(0)
    ks = jax.random.split(key, 8)

    # ConvBlock: Conv2d(C_IN, 128, 1) + BatchNorm2d(128) in eval mode (BN folded).
    conv_w = jax.random.normal(ks[0], (C_MID, C_IN), jnp.float32) * 0.05
    conv_b = jax.random.normal(ks[1], (C_MID,), jnp.float32) * 0.05
    gamma = 1.0 + 0.1 * jax.random.normal(ks[2], (C_MID,), jnp.float32)
    beta = 0.1 * jax.random.normal(ks[3], (C_MID,), jnp.float32)
    run_mean = jnp.zeros((C_MID,), jnp.float32)
    run_var = jnp.ones((C_MID,), jnp.float32)
    eps = 1e-5
    scale = gamma / jnp.sqrt(run_var + eps)
    w_eff = conv_w * scale[:, None]                         # (C_MID, C_IN)
    b_eff = (conv_b - run_mean) * scale + beta              # (C_MID,)

    # fc1/fc2 (stored as x @ W); weights kept in bf16 for the kernel (HBM-bound on w1)
    w1 = jax.random.normal(ks[4], (FEAT, HID), jnp.float32) * 0.02
    b1 = jax.random.normal(ks[5], (HID,), jnp.float32) * 0.02
    w2 = jax.random.normal(ks[6], (HID, NUM_CLASSES), jnp.float32) * 0.02
    b2 = jax.random.normal(ks[7], (NUM_CLASSES,), jnp.float32) * 0.02

    w1_bf16 = w1.astype(jnp.bfloat16)
    w2_bf16 = w2.astype(jnp.bfloat16)

    # kernel flatten is s-major: flat[n, s*C_MID + c] = y[n, c, s]; permute w1 rows to match
    w1_p = w1_bf16.reshape(C_MID, S, HID).transpose(1, 0, 2).reshape(FEAT, HID)
    # pad classes 10 -> 128 for a lane-dense output / w2 tile
    w2_pad = jnp.zeros((HID, NC_PAD), jnp.bfloat16).at[:, :NUM_CLASSES].set(w2_bf16)

    # avgpool(5, stride 3), no padding -> [HW, S] matrix; kernel uses its transpose
    pm = np.zeros((HW, S), dtype=np.float32)
    for oh in range(OH):
        for ow in range(OW):
            for kh in range(5):
                for kw in range(5):
                    pm[(3 * oh + kh) * W + (3 * ow + kw), oh * OW + ow] = 1.0 / 25.0
    pool_t = jnp.asarray(pm.T)                              # (S, HW)

    return dict(
        pool_t=pool_t,
        w_conv_t=jnp.asarray(w_eff.T),                      # (C_IN, C_MID) f32
        b_conv=b_eff[None, :],                              # (1, C_MID)
        w1_p=w1_p,                                          # (FEAT, HID) bf16, permuted
        b1=b1[None, :],                                     # (1, HID)
        w2_pad=w2_pad,                                      # (HID, NC_PAD) bf16
        b2=b2,                                              # (NUM_CLASSES,)
        # reference-path copies (same bf16-rounded values, original layout, f32)
        w1_ref=w1_bf16.astype(jnp.float32),
        w2_ref=w2_bf16.astype(jnp.float32),
    )


if __name__ == "__main__":
    params = make_params()
    x = jax.random.normal(jax.random.PRNGKey(0), (N, C_IN, H, W), jnp.float32)

    out = jax.block_until_ready(auxiliary_forward(x, params))
    ref = jax.block_until_ready(reference_forward(x, params))

    assert out.shape == (N, NUM_CLASSES)
    np.testing.assert_allclose(np.asarray(out), np.asarray(ref), rtol=1e-3, atol=1e-3)

    print("KERNEL_OK")
</pallas_src>

<mosaic_0001>
module attributes {stable_mosaic.version = 11 : i64} {
  func.func @fused_kernel(%arg0: i32, %arg1: memref<2x196x16xf32, #tpu.memory_space<vmem>>, %arg2: memref<16x196xf32, #tpu.memory_space<vmem>>, %arg3: memref<16x128xf32, #tpu.memory_space<vmem>>, %arg4: memref<1x128xf32, #tpu.memory_space<vmem>>, %arg5: memref<2048x512xbf16, #tpu.memory_space<vmem>>, %arg6: memref<1x512xf32, #tpu.memory_space<vmem>>, %arg7: memref<512x128xbf16, #tpu.memory_space<vmem>>, %arg8: memref<1x2x128xf32, #tpu.memory_space<vmem>>, %arg9: memref<2x2048xf32, #tpu.memory_space<vmem>>) attributes {dimension_semantics = [#tpu.dimension_semantics<parallel>], iteration_bounds = array<i64: 2>, scalar_prefetch = 0 : i64, scratch_operands = 1 : i64, tpu.core_type = #tpu.core_type<tc>, window_params = [{pipeline_mode = #tpu.pipeline_mode<synchronous>, transform_indices = @transform_0, window_bounds = array<i64: 2, 196, 16>}, {pipeline_mode = #tpu.pipeline_mode<synchronous>, transform_indices = @transform_1, window_bounds = array<i64: 16, 196>}, {pipeline_mode = #tpu.pipeline_mode<synchronous>, transform_indices = @transform_2, window_bounds = array<i64: 16, 128>}, {pipeline_mode = #tpu.pipeline_mode<synchronous>, transform_indices = @transform_3, window_bounds = array<i64: 1, 128>}, {transform_indices = @transform_4, window_bounds = array<i64: 2048, 512>}, {transform_indices = @transform_5, window_bounds = array<i64: 1, 512>}, {transform_indices = @transform_6, window_bounds = array<i64: 512, 128>}, {transform_indices = @transform_7, window_bounds = array<i64: 1, 2, 128>}]} {
    %c0 = arith.constant 0 : index
    %c0_0 = arith.constant 0 : index
    %0 = vector.load %arg2[%c0, %c0_0] : memref<16x196xf32, #tpu.memory_space<vmem>>, vector<16x196xf32>
    %c0_1 = arith.constant 0 : index
    %c0_2 = arith.constant 0 : index
    %c0_3 = arith.constant 0 : index
    %1 = vector.load %arg1[%c0_1, %c0_2, %c0_3] : memref<2x196x16xf32, #tpu.memory_space<vmem>>, vector<1x196x16xf32>
    %2 = vector.shape_cast %1 : vector<1x196x16xf32> to vector<196x16xf32>
    %cst = arith.constant dense<0.000000e+00> : vector<16x16xf32>
    %3 = tpu.matmul %0, %2, %cst {dimension_numbers = #tpu.dot_dimension_numbers<[1], [0], [0], [1], [0, 0, 1, 1], [], []>} : vector<16x196xf32>, vector<196x16xf32>, vector<16x16xf32> -> vector<16x16xf32>
    %c0_4 = arith.constant 0 : index
    %c0_5 = arith.constant 0 : index
    %4 = vector.load %arg3[%c0_4, %c0_5] : memref<16x128xf32, #tpu.memory_space<vmem>>, vector<16x128xf32>
    %cst_6 = arith.constant dense<0.000000e+00> : vector<16x128xf32>
    %5 = tpu.matmul %3, %4, %cst_6 {dimension_numbers = #tpu.dot_dimension_numbers<[1], [0], [0], [1], [0, 0, 1, 1], [], []>} : vector<16x16xf32>, vector<16x128xf32>, vector<16x128xf32> -> vector<16x128xf32>
    %c0_7 = arith.constant 0 : index
    %c0_8 = arith.constant 0 : index
    %6 = vector.load %arg4[%c0_7, %c0_8] : memref<1x128xf32, #tpu.memory_space<vmem>>, vector<1x128xf32>
    %7 = vector.broadcast %6 : vector<1x128xf32> to vector<16x128xf32>
    %8 = arith.addf %5, %7 : vector<16x128xf32>
    %cst_9 = arith.constant 0.000000e+00 : f32
    %9 = vector.broadcast %cst_9 : f32 to vector<16x128xf32>
    %10 = arith.maximumf %8, %9 : vector<16x128xf32>
    %11 = vector.extract_strided_slice %10 {offsets = [0, 0], sizes = [1, 128], strides = [1, 1]} : vector<16x128xf32> to vector<1x128xf32>
    %c0_10 = arith.constant 0 : index
    %c0_11 = arith.constant 0 : index
    %12 = vector.load %arg9[%c0_10, %c0_11] : memref<2x2048xf32, #tpu.memory_space<vmem>>, vector<1x128xf32>
    tpu.vector_store %arg9[%c0_10, %c0_11], %11 {strides = array<i32>} : memref<2x2048xf32, #tpu.memory_space<vmem>>, vector<1x128xf32>,
    %13 = vector.extract_strided_slice %10 {offsets = [1, 0], sizes = [1, 128], strides = [1, 1]} : vector<16x128xf32> to vector<1x128xf32>
    %c0_12 = arith.constant 0 : index
    %c128 = arith.constant 128 : index
    %14 = vector.load %arg9[%c0_12, %c128] : memref<2x2048xf32, #tpu.memory_space<vmem>>, vector<1x128xf32>
    tpu.vector_store %arg9[%c0_12, %c128], %13 {strides = array<i32>} : memref<2x2048xf32, #tpu.memory_space<vmem>>, vector<1x128xf32>,
    %15 = vector.extract_strided_slice %10 {offsets = [2, 0], sizes = [1, 128], strides = [1, 1]} : vector<16x128xf32> to vector<1x128xf32>
    %c0_13 = arith.constant 0 : index
    %c256 = arith.constant 256 : index
    %16 = vector.load %arg9[%c0_13, %c256] : memref<2x2048xf32, #tpu.memory_space<vmem>>, vector<1x128xf32>
    tpu.vector_store %arg9[%c0_13, %c256], %15 {strides = array<i32>} : memref<2x2048xf32, #tpu.memory_space<vmem>>, vector<1x128xf32>,
    %17 = vector.extract_strided_slice %10 {offsets = [3, 0], sizes = [1, 128], strides = [1, 1]} : vector<16x128xf32> to vector<1x128xf32>
    %c0_14 = arith.constant 0 : index
    %c384 = arith.constant 384 : index
    %18 = vector.load %arg9[%c0_14, %c384] : memref<2x2048xf32, #tpu.memory_space<vmem>>, vector<1x128xf32>
    tpu.vector_store %arg9[%c0_14, %c384], %17 {strides = array<i32>} : memref<2x2048xf32, #tpu.memory_space<vmem>>, vector<1x128xf32>,
    %19 = vector.extract_strided_slice %10 {offsets = [4, 0], sizes = [1, 128], strides = [1, 1]} : vector<16x128xf32> to vector<1x128xf32>
    %c0_15 = arith.constant 0 : index
    %c512 = arith.constant 512 : index
    %20 = vector.load %arg9[%c0_15, %c512] : memref<2x2048xf32, #tpu.memory_space<vmem>>, vector<1x128xf32>
    tpu.vector_store %arg9[%c0_15, %c512], %19 {strides = array<i32>} : memref<2x2048xf32, #tpu.memory_space<vmem>>, vector<1x128xf32>,
    %21 = vector.extract_strided_slice %10 {offsets = [5, 0], sizes = [1, 128], strides = [1, 1]} : vector<16x128xf32> to vector<1x128xf32>
    %c0_16 = arith.constant 0 : index
    %c640 = arith.constant 640 : index
    %22 = vector.load %arg9[%c0_16, %c640] : memref<2x2048xf32, #tpu.memory_space<vmem>>, vector<1x128xf32>
    tpu.vector_store %arg9[%c0_16, %c640], %21 {strides = array<i32>} : memref<2x2048xf32, #tpu.memory_space<vmem>>, vector<1x128xf32>,
    %23 = vector.extract_strided_slice %10 {offsets = [6, 0], sizes = [1, 128], strides = [1, 1]} : vector<16x128xf32> to vector<1x128xf32>
    %c0_17 = arith.constant 0 : index
    %c768 = arith.constant 768 : index
    %24 = vector.load %arg9[%c0_17, %c768] : memref<2x2048xf32, #tpu.memory_space<vmem>>, vector<1x128xf32>
    tpu.vector_store %arg9[%c0_17, %c768], %23 {strides = array<i32>} : memref<2x2048xf32, #tpu.memory_space<vmem>>, vector<1x128xf32>,
    %25 = vector.extract_strided_slice %10 {offsets = [7, 0], sizes = [1, 128], strides = [1, 1]} : vector<16x128xf32> to vector<1x128xf32>
    %c0_18 = arith.constant 0 : index
    %c896 = arith.constant 896 : index
    %26 = vector.load %arg9[%c0_18, %c896] : memref<2x2048xf32, #tpu.memory_space<vmem>>, vector<1x128xf32>
    tpu.vector_store %arg9[%c0_18, %c896], %25 {strides = array<i32>} : memref<2x2048xf32, #tpu.memory_space<vmem>>, vector<1x128xf32>,
    %27 = vector.extract_strided_slice %10 {offsets = [8, 0], sizes = [1, 128], strides = [1, 1]} : vector<16x128xf32> to vector<1x128xf32>
    %c0_19 = arith.constant 0 : index
    %c1024 = arith.constant 1024 : index
    %28 = vector.load %arg9[%c0_19, %c1024] : memref<2x2048xf32, #tpu.memory_space<vmem>>, vector<1x128xf32>
    tpu.vector_store %arg9[%c0_19, %c1024], %27 {strides = array<i32>} : memref<2x2048xf32, #tpu.memory_space<vmem>>, vector<1x128xf32>,
    %29 = vector.extract_strided_slice %10 {offsets = [9, 0], sizes = [1, 128], strides = [1, 1]} : vector<16x128xf32> to vector<1x128xf32>
    %c0_20 = arith.constant 0 : index
    %c1152 = arith.constant 1152 : index
    %30 = vector.load %arg9[%c0_20, %c1152] : memref<2x2048xf32, #tpu.memory_space<vmem>>, vector<1x128xf32>
    tpu.vector_store %arg9[%c0_20, %c1152], %29 {strides = array<i32>} : memref<2x2048xf32, #tpu.memory_space<vmem>>, vector<1x128xf32>,
    %31 = vector.extract_strided_slice %10 {offsets = [10, 0], sizes = [1, 128], strides = [1, 1]} : vector<16x128xf32> to vector<1x128xf32>
    %c0_21 = arith.constant 0 : index
    %c1280 = arith.constant 1280 : index
    %32 = vector.load %arg9[%c0_21, %c1280] : memref<2x2048xf32, #tpu.memory_space<vmem>>, vector<1x128xf32>
    tpu.vector_store %arg9[%c0_21, %c1280], %31 {strides = array<i32>} : memref<2x2048xf32, #tpu.memory_space<vmem>>, vector<1x128xf32>,
    %33 = vector.extract_strided_slice %10 {offsets = [11, 0], sizes = [1, 128], strides = [1, 1]} : vector<16x128xf32> to vector<1x128xf32>
    %c0_22 = arith.constant 0 : index
    %c1408 = arith.constant 1408 : index
    %34 = vector.load %arg9[%c0_22, %c1408] : memref<2x2048xf32, #tpu.memory_space<vmem>>, vector<1x128xf32>
    tpu.vector_store %arg9[%c0_22, %c1408], %33 {strides = array<i32>} : memref<2x2048xf32, #tpu.memory_space<vmem>>, vector<1x128xf32>,
    %35 = vector.extract_strided_slice %10 {offsets = [12, 0], sizes = [1, 128], strides = [1, 1]} : vector<16x128xf32> to vector<1x128xf32>
    %c0_23 = arith.constant 0 : index
    %c1536 = arith.constant 1536 : index
    %36 = vector.load %arg9[%c0_23, %c1536] : memref<2x2048xf32, #tpu.memory_space<vmem>>, vector<1x128xf32>
    tpu.vector_store %arg9[%c0_23, %c1536], %35 {strides = array<i32>} : memref<2x2048xf32, #tpu.memory_space<vmem>>, vector<1x128xf32>,
    %37 = vector.extract_strided_slice %10 {offsets = [13, 0], sizes = [1, 128], strides = [1, 1]} : vector<16x128xf32> to vector<1x128xf32>
    %c0_24 = arith.constant 0 : index
    %c1664 = arith.constant 1664 : index
    %38 = vector.load %arg9[%c0_24, %c1664] : memref<2x2048xf32, #tpu.memory_space<vmem>>, vector<1x128xf32>
    tpu.vector_store %arg9[%c0_24, %c1664], %37 {strides = array<i32>} : memref<2x2048xf32, #tpu.memory_space<vmem>>, vector<1x128xf32>,
    %39 = vector.extract_strided_slice %10 {offsets = [14, 0], sizes = [1, 128], strides = [1, 1]} : vector<16x128xf32> to vector<1x128xf32>
    %c0_25 = arith.constant 0 : index
    %c1792 = arith.constant 1792 : index
    %40 = vector.load %arg9[%c0_25, %c1792] : memref<2x2048xf32, #tpu.memory_space<vmem>>, vector<1x128xf32>
    tpu.vector_store %arg9[%c0_25, %c1792], %39 {strides = array<i32>} : memref<2x2048xf32, #tpu.memory_space<vmem>>, vector<1x128xf32>,
    %41 = vector.extract_strided_slice %10 {offsets = [15, 0], sizes = [1, 128], strides = [1, 1]} : vector<16x128xf32> to vector<1x128xf32>
    %c0_26 = arith.constant 0 : index
    %c1920 = arith.constant 1920 : index
    %42 = vector.load %arg9[%c0_26, %c1920] : memref<2x2048xf32, #tpu.memory_space<vmem>>, vector<1x128xf32>
    tpu.vector_store %arg9[%c0_26, %c1920], %41 {strides = array<i32>} : memref<2x2048xf32, #tpu.memory_space<vmem>>, vector<1x128xf32>,
    %c0_27 = arith.constant 0 : index
    %c0_28 = arith.constant 0 : index
    %43 = vector.load %arg2[%c0_27, %c0_28] : memref<16x196xf32, #tpu.memory_space<vmem>>, vector<16x196xf32>
    %c1 = arith.constant 1 : index
    %c0_29 = arith.constant 0 : index
    %c0_30 = arith.constant 0 : index
    %44 = vector.load %arg1[%c1, %c0_29, %c0_30] : memref<2x196x16xf32, #tpu.memory_space<vmem>>, vector<1x196x16xf32>
    %45 = vector.shape_cast %44 : vector<1x196x16xf32> to vector<196x16xf32>
    %cst_31 = arith.constant dense<0.000000e+00> : vector<16x16xf32>
    %46 = tpu.matmul %43, %45, %cst_31 {dimension_numbers = #tpu.dot_dimension_numbers<[1], [0], [0], [1], [0, 0, 1, 1], [], []>} : vector<16x196xf32>, vector<196x16xf32>, vector<16x16xf32> -> vector<16x16xf32>
    %c0_32 = arith.constant 0 : index
    %c0_33 = arith.constant 0 : index
    %47 = vector.load %arg3[%c0_32, %c0_33] : memref<16x128xf32, #tpu.memory_space<vmem>>, vector<16x128xf32>
    %cst_34 = arith.constant dense<0.000000e+00> : vector<16x128xf32>
    %48 = tpu.matmul %46, %47, %cst_34 {dimension_numbers = #tpu.dot_dimension_numbers<[1], [0], [0], [1], [0, 0, 1, 1], [], []>} : vector<16x16xf32>, vector<16x128xf32>, vector<16x128xf32> -> vector<16x128xf32>
    %c0_35 = arith.constant 0 : index
    %c0_36 = arith.constant 0 : index
    %49 = vector.load %arg4[%c0_35, %c0_36] : memref<1x128xf32, #tpu.memory_space<vmem>>, vector<1x128xf32>
    %50 = vector.broadcast %49 : vector<1x128xf32> to vector<16x128xf32>
    %51 = arith.addf %48, %50 : vector<16x128xf32>
    %cst_37 = arith.constant 0.000000e+00 : f32
    %52 = vector.broadcast %cst_37 : f32 to vector<16x128xf32>
    %53 = arith.maximumf %51, %52 : vector<16x128xf32>
    %54 = vector.extract_strided_slice %53 {offsets = [0, 0], sizes = [1, 128], strides = [1, 1]} : vector<16x128xf32> to vector<1x128xf32>
    %c1_38 = arith.constant 1 : index
    %c0_39 = arith.constant 0 : index
    %55 = vector.load %arg9[%c1_38, %c0_39] : memref<2x2048xf32, #tpu.memory_space<vmem>>, vector<1x128xf32>
    tpu.vector_store %arg9[%c1_38, %c0_39], %54 {strides = array<i32>} : memref<2x2048xf32, #tpu.memory_space<vmem>>, vector<1x128xf32>,
    %56 = vector.extract_strided_slice %53 {offsets = [1, 0], sizes = [1, 128], strides = [1, 1]} : vector<16x128xf32> to vector<1x128xf32>
    %c1_40 = arith.constant 1 : index
    %c128_41 = arith.constant 128 : index
    %57 = vector.load %arg9[%c1_40, %c128_41] : memref<2x2048xf32, #tpu.memory_space<vmem>>, vector<1x128xf32>
    tpu.vector_store %arg9[%c1_40, %c128_41], %56 {strides = array<i32>} : memref<2x2048xf32, #tpu.memory_space<vmem>>, vector<1x128xf32>,
    %58 = vector.extract_strided_slice %53 {offsets = [2, 0], sizes = [1, 128], strides = [1, 1]} : vector<16x128xf32> to vector<1x128xf32>
    %c1_42 = arith.constant 1 : index
    %c256_43 = arith.constant 256 : index
    %59 = vector.load %arg9[%c1_42, %c256_43] : memref<2x2048xf32, #tpu.memory_space<vmem>>, vector<1x128xf32>
    tpu.vector_store %arg9[%c1_42, %c256_43], %58 {strides = array<i32>} : memref<2x2048xf32, #tpu.memory_space<vmem>>, vector<1x128xf32>,
    %60 = vector.extract_strided_slice %53 {offsets = [3, 0], sizes = [1, 128], strides = [1, 1]} : vector<16x128xf32> to vector<1x128xf32>
    %c1_44 = arith.constant 1 : index
    %c384_45 = arith.constant 384 : index
    %61 = vector.load %arg9[%c1_44, %c384_45] : memref<2x2048xf32, #tpu.memory_space<vmem>>, vector<1x128xf32>
    tpu.vector_store %arg9[%c1_44, %c384_45], %60 {strides = array<i32>} : memref<2x2048xf32, #tpu.memory_space<vmem>>, vector<1x128xf32>,
    %62 = vector.extract_strided_slice %53 {offsets = [4, 0], sizes = [1, 128], strides = [1, 1]} : vector<16x128xf32> to vector<1x128xf32>
    %c1_46 = arith.constant 1 : index
    %c512_47 = arith.constant 512 : index
    %63 = vector.load %arg9[%c1_46, %c512_47] : memref<2x2048xf32, #tpu.memory_space<vmem>>, vector<1x128xf32>
    tpu.vector_store %arg9[%c1_46, %c512_47], %62 {strides = array<i32>} : memref<2x2048xf32, #tpu.memory_space<vmem>>, vector<1x128xf32>,
    %64 = vector.extract_strided_slice %53 {offsets = [5, 0], sizes = [1, 128], strides = [1, 1]} : vector<16x128xf32> to vector<1x128xf32>
    %c1_48 = arith.constant 1 : index
    %c640_49 = arith.constant 640 : index
    %65 = vector.load %arg9[%c1_48, %c640_49] : memref<2x2048xf32, #tpu.memory_space<vmem>>, vector<1x128xf32>
    tpu.vector_store %arg9[%c1_48, %c640_49], %64 {strides = array<i32>} : memref<2x2048xf32, #tpu.memory_space<vmem>>, vector<1x128xf32>,
    %66 = vector.extract_strided_slice %53 {offsets = [6, 0], sizes = [1, 128], strides = [1, 1]} : vector<16x128xf32> to vector<1x128xf32>
    %c1_50 = arith.constant 1 : index
    %c768_51 = arith.constant 768 : index
    %67 = vector.load %arg9[%c1_50, %c768_51] : memref<2x2048xf32, #tpu.memory_space<vmem>>, vector<1x128xf32>
    tpu.vector_store %arg9[%c1_50, %c768_51], %66 {strides = array<i32>} : memref<2x2048xf32, #tpu.memory_space<vmem>>, vector<1x128xf32>,
    %68 = vector.extract_strided_slice %53 {offsets = [7, 0], sizes = [1, 128], strides = [1, 1]} : vector<16x128xf32> to vector<1x128xf32>
    %c1_52 = arith.constant 1 : index
    %c896_53 = arith.constant 896 : index
    %69 = vector.load %arg9[%c1_52, %c896_53] : memref<2x2048xf32, #tpu.memory_space<vmem>>, vector<1x128xf32>
    tpu.vector_store %arg9[%c1_52, %c896_53], %68 {strides = array<i32>} : memref<2x2048xf32, #tpu.memory_space<vmem>>, vector<1x128xf32>,
    %70 = vector.extract_strided_slice %53 {offsets = [8, 0], sizes = [1, 128], strides = [1, 1]} : vector<16x128xf32> to vector<1x128xf32>
    %c1_54 = arith.constant 1 : index
    %c1024_55 = arith.constant 1024 : index
    %71 = vector.load %arg9[%c1_54, %c1024_55] : memref<2x2048xf32, #tpu.memory_space<vmem>>, vector<1x128xf32>
    tpu.vector_store %arg9[%c1_54, %c1024_55], %70 {strides = array<i32>} : memref<2x2048xf32, #tpu.memory_space<vmem>>, vector<1x128xf32>,
    %72 = vector.extract_strided_slice %53 {offsets = [9, 0], sizes = [1, 128], strides = [1, 1]} : vector<16x128xf32> to vector<1x128xf32>
    %c1_56 = arith.constant 1 : index
    %c1152_57 = arith.constant 1152 : index
    %73 = vector.load %arg9[%c1_56, %c1152_57] : memref<2x2048xf32, #tpu.memory_space<vmem>>, vector<1x128xf32>
    tpu.vector_store %arg9[%c1_56, %c1152_57], %72 {strides = array<i32>} : memref<2x2048xf32, #tpu.memory_space<vmem>>, vector<1x128xf32>,
    %74 = vector.extract_strided_slice %53 {offsets = [10, 0], sizes = [1, 128], strides = [1, 1]} : vector<16x128xf32> to vector<1x128xf32>
    %c1_58 = arith.constant 1 : index
    %c1280_59 = arith.constant 1280 : index
    %75 = vector.load %arg9[%c1_58, %c1280_59] : memref<2x2048xf32, #tpu.memory_space<vmem>>, vector<1x128xf32>
    tpu.vector_store %arg9[%c1_58, %c1280_59], %74 {strides = array<i32>} : memref<2x2048xf32, #tpu.memory_space<vmem>>, vector<1x128xf32>,
    %76 = vector.extract_strided_slice %53 {offsets = [11, 0], sizes = [1, 128], strides = [1, 1]} : vector<16x128xf32> to vector<1x128xf32>
    %c1_60 = arith.constant 1 : index
    %c1408_61 = arith.constant 1408 : index
    %77 = vector.load %arg9[%c1_60, %c1408_61] : memref<2x2048xf32, #tpu.memory_space<vmem>>, vector<1x128xf32>
    tpu.vector_store %arg9[%c1_60, %c1408_61], %76 {strides = array<i32>} : memref<2x2048xf32, #tpu.memory_space<vmem>>, vector<1x128xf32>,
    %78 = vector.extract_strided_slice %53 {offsets = [12, 0], sizes = [1, 128], strides = [1, 1]} : vector<16x128xf32> to vector<1x128xf32>
    %c1_62 = arith.constant 1 : index
    %c1536_63 = arith.constant 1536 : index
    %79 = vector.load %arg9[%c1_62, %c1536_63] : memref<2x2048xf32, #tpu.memory_space<vmem>>, vector<1x128xf32>
    tpu.vector_store %arg9[%c1_62, %c1536_63], %78 {strides = array<i32>} : memref<2x2048xf32, #tpu.memory_space<vmem>>, vector<1x128xf32>,
    %80 = vector.extract_strided_slice %53 {offsets = [13, 0], sizes = [1, 128], strides = [1, 1]} : vector<16x128xf32> to vector<1x128xf32>
    %c1_64 = arith.constant 1 : index
    %c1664_65 = arith.constant 1664 : index
    %81 = vector.load %arg9[%c1_64, %c1664_65] : memref<2x2048xf32, #tpu.memory_space<vmem>>, vector<1x128xf32>
    tpu.vector_store %arg9[%c1_64, %c1664_65], %80 {strides = array<i32>} : memref<2x2048xf32, #tpu.memory_space<vmem>>, vector<1x128xf32>,
    %82 = vector.extract_strided_slice %53 {offsets = [14, 0], sizes = [1, 128], strides = [1, 1]} : vector<16x128xf32> to vector<1x128xf32>
    %c1_66 = arith.constant 1 : index
    %c1792_67 = arith.constant 1792 : index
    %83 = vector.load %arg9[%c1_66, %c1792_67] : memref<2x2048xf32, #tpu.memory_space<vmem>>, vector<1x128xf32>
    tpu.vector_store %arg9[%c1_66, %c1792_67], %82 {strides = array<i32>} : memref<2x2048xf32, #tpu.memory_space<vmem>>, vector<1x128xf32>,
    %84 = vector.extract_strided_slice %53 {offsets = [15, 0], sizes = [1, 128], strides = [1, 1]} : vector<16x128xf32> to vector<1x128xf32>
    %c1_68 = arith.constant 1 : index
    %c1920_69 = arith.constant 1920 : index
    %85 = vector.load %arg9[%c1_68, %c1920_69] : memref<2x2048xf32, #tpu.memory_space<vmem>>, vector<1x128xf32>
    tpu.vector_store %arg9[%c1_68, %c1920_69], %84 {strides = array<i32>} : memref<2x2048xf32, #tpu.memory_space<vmem>>, vector<1x128xf32>,
    %c0_70 = arith.constant 0 : index
    %c0_71 = arith.constant 0 : index
    %86 = vector.load %arg9[%c0_70, %c0_71] : memref<2x2048xf32, #tpu.memory_space<vmem>>, vector<2x2048xf32>
    %87 = arith.truncf %86 : vector<2x2048xf32> to vector<2x2048xbf16>
    %c0_72 = arith.constant 0 : index
    %c0_73 = arith.constant 0 : index
    %88 = vector.load %arg5[%c0_72, %c0_73] : memref<2048x512xbf16, #tpu.memory_space<vmem>>, vector<2048x512xbf16>
    %cst_74 = arith.constant dense<0.000000e+00> : vector<2x512xf32>
    %89 = tpu.matmul %87, %88, %cst_74 {dimension_numbers = #tpu.dot_dimension_numbers<[1], [0], [0], [1], [0, 0, 1, 1], [], []>} : vector<2x2048xbf16>, vector<2048x512xbf16>, vector<2x512xf32> -> vector<2x512xf32>
    %c0_75 = arith.constant 0 : index
    %c0_76 = arith.constant 0 : index
    %90 = vector.load %arg6[%c0_75, %c0_76] : memref<1x512xf32, #tpu.memory_space<vmem>>, vector<1x512xf32>
    %91 = vector.broadcast %90 : vector<1x512xf32> to vector<2x512xf32>
    %92 = arith.addf %89, %91 : vector<2x512xf32>
    %cst_77 = arith.constant 0.000000e+00 : f32
    %93 = vector.broadcast %cst_77 : f32 to vector<2x512xf32>
    %94 = arith.maximumf %92, %93 : vector<2x512xf32>
    %95 = arith.truncf %94 : vector<2x512xf32> to vector<2x512xbf16>
    %c0_78 = arith.constant 0 : index
    %c0_79 = arith.constant 0 : index
    %96 = vector.load %arg7[%c0_78, %c0_79] : memref<512x128xbf16, #tpu.memory_space<vmem>>, vector<512x128xbf16>
    %cst_80 = arith.constant dense<0.000000e+00> : vector<2x128xf32>
    %97 = tpu.matmul %95, %96, %cst_80 {dimension_numbers = #tpu.dot_dimension_numbers<[1], [0], [0], [1], [0, 0, 1, 1], [], []>} : vector<2x512xbf16>, vector<512x128xbf16>, vector<2x128xf32> -> vector<2x128xf32>
    %c0_81 = arith.constant 0 : index
    %c0_82 = arith.constant 0 : index
    %c0_83 = arith.constant 0 : index
    %98 = vector.load %arg8[%c0_81, %c0_82, %c0_83] : memref<1x2x128xf32, #tpu.memory_space<vmem>>, vector<1x2x128xf32>
    %99 = vector.shape_cast %98 : vector<1x2x128xf32> to vector<2x128xf32>
    %100 = vector.shape_cast %97 : vector<2x128xf32> to vector<1x2x128xf32>
    tpu.vector_store %arg8[%c0_81, %c0_82, %c0_83], %100 {strides = array<i32>} : memref<1x2x128xf32, #tpu.memory_space<vmem>>, vector<1x2x128xf32>,
    return
  }
  func.func @transform_0(%arg0: i32) -> (i32, i32, i32) {
    %c0_i32 = arith.constant 0 : i32
    %c0_i32_0 = arith.constant 0 : i32
    %c0_i32_1 = arith.constant 0 : i32
    %c0_i32_2 = arith.constant 0 : i32
    return %c0_i32, %c0_i32_0, %c0_i32_1 : i32, i32, i32
  }
  func.func @transform_1(%arg0: i32) -> (i32, i32) {
    %c0_i32 = arith.constant 0 : i32
    %c0_i32_0 = arith.constant 0 : i32
    %c0_i32_1 = arith.constant 0 : i32
    return %c0_i32, %c0_i32_0 : i32, i32
  }
  func.func @transform_2(%arg0: i32) -> (i32, i32) {
    %c0_i32 = arith.constant 0 : i32
    %c0_i32_0 = arith.constant 0 : i32
    %c0_i32_1 = arith.constant 0 : i32
    return %c0_i32, %c0_i32_0 : i32, i32
  }
  func.func @transform_3(%arg0: i32) -> (i32, i32) {
    %c0_i32 = arith.constant 0 : i32
    %c0_i32_0 = arith.constant 0 : i32
    %c0_i32_1 = arith.constant 0 : i32
    return %c0_i32, %c0_i32_0 : i32, i32
  }
  func.func @transform_4(%arg0: i32) -> (i32, i32) {
    %c0_i32 = arith.constant 0 : i32
    %c0_i32_0 = arith.constant 0 : i32
    return %c0_i32, %arg0 : i32, i32
  }
  func.func @transform_5(%arg0: i32) -> (i32, i32) {
    %c0_i32 = arith.constant 0 : i32
    %c0_i32_0 = arith.constant 0 : i32
    return %c0_i32, %arg0 : i32, i32
  }
  func.func @transform_6(%arg0: i32) -> (i32, i32) {
    %c0_i32 = arith.constant 0 : i32
    %c0_i32_0 = arith.constant 0 : i32
    return %arg0, %c0_i32 : i32, i32
  }
  func.func @transform_7(%arg0: i32) -> (i32, i32, i32) {
    %c0_i32 = arith.constant 0 : i32
    %c0_i32_0 = arith.constant 0 : i32
    %c0_i32_1 = arith.constant 0 : i32
    return %arg0, %c0_i32, %c0_i32_0 : i32, i32, i32
  }
}

</mosaic_0001>

<llo_original>
// kernel: auxiliary_forward.1
$region0: #{auxiliary_forward.1}
  #allocation0 [shape = 'u32[]', space=smem, size = 0x4, offset = 0x4, fixed_abs, tag = 'smem constant byte address 0x4 - core index']
  #allocation1 [shape = 'u32[144,128]{1,0:T(1,128)}', space=vmem, size = 0x12000, scoped, tag = 'internal scratch']
  #allocation2 [shape = 'f32[2,2048]{1,0:T(2,128)}', space=vmem, size = 0x4000, scoped, tag = 'scratch operand']
  %s0 = inlined_call_operand.vmem [shape: f32[2,196,16], index: 0, kind: input, shape index: {}]
  %s1 = inlined_call_operand.hbm [shape: f32[16,196], index: 1, kind: input, shape index: {}]
  %s2 = inlined_call_operand.hbm [shape: f32[16,128], index: 2, kind: input, shape index: {}]
  %s3 = inlined_call_operand.hbm [shape: f32[1,128], index: 3, kind: input, shape index: {}]
  %s4 = inlined_call_operand.hbm [shape: bf16[2048,1024], index: 4, kind: input, shape index: {}]
  %s5 = inlined_call_operand.hbm [shape: f32[1,1024], index: 5, kind: input, shape index: {}]
  %s6 = inlined_call_operand.hbm [shape: bf16[1024,128], index: 6, kind: input, shape index: {}]
  %s7 = inlined_call_operand.vmem [shape: f32[2,2,128], index: 7, kind: output, shape index: {}]
  %s8 = sld [smem:[#allocation0]]
  $region85: #{auxiliary_forward.1} parent=0
    _
  %s10 = ssub.s32 1, %s8
  %s11 = scalar_select 0, %s10, %s8
  $region1: #{auxiliary_forward.1} parent=0
    #allocation3 [shape = 'u8[16384]{0}', space=vmem, size = 0x4000, scoped, tag = 'input window, operand 1, single buffered']
    #allocation4 [shape = 's32[2]{0}', space=sflag, size = 0x8, scoped, tag = 'scoped memory for auxiliary_forward.1']
    #allocation5 [shape = 'u8[8192]{0}', space=vmem, size = 0x2000, scoped, tag = 'input window, operand 2, single buffered']
    #allocation6 [shape = 's32[1]{0}', space=sflag, size = 0x4, scoped, tag = 'scoped memory for auxiliary_forward.1']
    #allocation7 [shape = 'u8[512]{0}', space=vmem, size = 0x400, scoped, tag = 'input window, operand 3, single buffered']
    #allocation8 [shape = 'u8[4194304]{0}', space=vmem, size = 0x400000, scoped, tag = 'input window, operand 4']
    #allocation9 [shape = 's32[2]{0}', space=sflag, size = 0x8, scoped, tag = 'scoped memory for auxiliary_forward.1']
    #allocation10 [shape = 'u8[4096]{0}', space=vmem, size = 0x1000, scoped, tag = 'input window, operand 5']
    #allocation11 [shape = 'u8[262144]{0}', space=vmem, size = 0x40000, scoped, tag = 'input window, operand 6']
    #allocation12 [shape = 's32[2]{0}', space=sflag, size = 0x8, scoped, tag = 'scoped memory for auxiliary_forward.1']
    %12 = vsyncpa [#allocation4], 0
    %13 = vsyncpa [#allocation6], 0
    %14 = vsyncpa [#allocation9], 0
    %s15 = scalar_lea.sflag [#allocation9], 1
    %16 = vsyncpa %s15, 0
    %17 = vsyncpa [#allocation12], 0
    %s18 = scalar_lea.sflag [#allocation12], 1
    %19 = vsyncpa %s18, 0
    loop: start=0, step=1, limit=4
    $region2: #{auxiliary_forward.1} parent=1 // loop_pre_header
      _
    $region3: #{auxiliary_forward.1} parent=1 // loop_header
      %s21 = sphi 0, %s25
      %p22 = scmp.ge.s32.totalorder %s21, 4
      %s29 = sphi 0, %s29
      %s31 = sphi 0, %s29
      %s32 = sphi 0, %s31
      %s46 = sphi 0, %s32
      %s50 = sphi 0, %s50
      %s52 = sphi 0, %s50
      %s53 = sphi 0, %s52
      %s67 = sphi 0, %s53
      %s71 = sphi 0, %s71
      %s73 = sphi 0, %s71
      %s74 = sphi 0, %s73
      %s88 = sphi 0, %s74
      %s92 = sphi 0, %s92
      %s94 = sphi 0, %s92
      %s95 = sphi 0, %s94
      %s109 = sphi 0, %s95
      %s115 = sphi 0, %s117
      %s118 = sphi 0, %s115
      %s119 = sphi 0, %s118
      %s135 = sphi 0, %s119
      %s141 = sphi 0, %s143
      %s144 = sphi 0, %s141
      %s145 = sphi 0, %s144
      %s161 = sphi 0, %s145
      %s167 = sphi 0, %s169
      %s170 = sphi 0, %s167
      %s171 = sphi 0, %s170
      %s187 = sphi 0, %s171
      %s193 = sphi 0, %s195
      %s196 = sphi 0, %s193
      %s197 = sphi 0, %s196
      %s213 = sphi 0, %s197
    $region4: #{auxiliary_forward.1} parent=1 // loop_header_branch
      %24 = sbr.rel (%p22) target = $region8
    $region5: #{auxiliary_forward.1} parent=1 // loop_body
      %s26 = ssub.s32 %s21, 1
      %s27 = ssub.s32 %s21, 2
      %s28 = sadd.s32 %s21, 1
      %s30 = sadd.s32 %s29, 1
      %p33 = scmp.eq.s32.totalorder %s21, 1
      %p34 = scmp.ne.s32.totalorder %s29, %s31
      %p35 = scmp.eq.s32.totalorder %s21, 0
      %p36 = por %p34, %p35
      %p37 = scmp.ne.s32.totalorder %s29, %s31
      %p38 = scmp.eq.s32.totalorder %s26, 1
      %p39 = por %p37, %p38
      %p40 = scmp.ne.s32.totalorder %s31, %s32
      %p41 = scmp.eq.s32.totalorder %s26, 0
      %p42 = por %p40, %p41
      %p43 = scmp.ne.s32.totalorder %s31, %s32
      %p44 = scmp.eq.s32.totalorder %s27, 1
      %p45 = por %p43, %p44
      %p47 = scmp.ne.s32.totalorder %s32, %s46
      %p48 = scmp.eq.s32.totalorder %s27, 0
      %p49 = por %p47, %p48
      %s51 = sadd.s32 %s50, 1
      %p54 = scmp.eq.s32.totalorder %s21, 1
      %p55 = scmp.ne.s32.totalorder %s50, %s52
      %p56 = scmp.eq.s32.totalorder %s21, 0
      %p57 = por %p55, %p56
      %p58 = scmp.ne.s32.totalorder %s50, %s52
      %p59 = scmp.eq.s32.totalorder %s26, 1
      %p60 = por %p58, %p59
      %p61 = scmp.ne.s32.totalorder %s52, %s53
      %p62 = scmp.eq.s32.totalorder %s26, 0
      %p63 = por %p61, %p62
      %p64 = scmp.ne.s32.totalorder %s52, %s53
      %p65 = scmp.eq.s32.totalorder %s27, 1
      %p66 = por %p64, %p65
      %p68 = scmp.ne.s32.totalorder %s53, %s67
      %p69 = scmp.eq.s32.totalorder %s27, 0
      %p70 = por %p68, %p69
      %s72 = sadd.s32 %s71, 1
      %p75 = scmp.eq.s32.totalorder %s21, 1
      %p76 = scmp.ne.s32.totalorder %s71, %s73
      %p77 = scmp.eq.s32.totalorder %s21, 0
      %p78 = por %p76, %p77
      %p79 = scmp.ne.s32.totalorder %s71, %s73
      %p80 = scmp.eq.s32.totalorder %s26, 1
      %p81 = por %p79, %p80
      %p82 = scmp.ne.s32.totalorder %s73, %s74
      %p83 = scmp.eq.s32.totalorder %s26, 0
      %p84 = por %p82, %p83
      %p85 = scmp.ne.s32.totalorder %s73, %s74
      %p86 = scmp.eq.s32.totalorder %s27, 1
      %p87 = por %p85, %p86
      %p89 = scmp.ne.s32.totalorder %s74, %s88
      %p90 = scmp.eq.s32.totalorder %s27, 0
      %p91 = por %p89, %p90
      %s93 = sadd.s32 %s92, 1
      %p96 = scmp.eq.s32.totalorder %s21, 1
      %p97 = scmp.ne.s32.totalorder %s92, %s94
      %p98 = scmp.eq.s32.totalorder %s21, 0
      %p99 = por %p97, %p98
      %p100 = scmp.ne.s32.totalorder %s92, %s94
      %p101 = scmp.eq.s32.totalorder %s26, 1
      %p102 = por %p100, %p101
      %p103 = scmp.ne.s32.totalorder %s94, %s95
      %p104 = scmp.eq.s32.totalorder %s26, 0
      %p105 = por %p103, %p104
      %p106 = scmp.ne.s32.totalorder %s94, %s95
      %p107 = scmp.eq.s32.totalorder %s27, 1
      %p108 = por %p106, %p107
      %p110 = scmp.ne.s32.totalorder %s95, %s109
      %p111 = scmp.eq.s32.totalorder %s27, 0
      %p112 = por %p110, %p111
      %s113 = ssub.s32 %s21, %s28
      %p114 = scmp.eq.s32.totalorder %s113, 0
      %s116 = sadd.s32 %s115, 1
      %s117 = scalar_select %p114, %s115, %s116
      %p120 = pneg %p114
      %p121 = scmp.eq.s32.totalorder %s21, 1
      %p122 = por %p120, %p121
      %p123 = scmp.ne.s32.totalorder %s115, %s118
      %p124 = scmp.eq.s32.totalorder %s21, 0
      %p125 = por %p123, %p124
      %p126 = scmp.ne.s32.totalorder %s115, %s118
      %p127 = scmp.eq.s32.totalorder %s26, 1
      %p128 = por %p126, %p127
      %p129 = scmp.ne.s32.totalorder %s118, %s119
      %p130 = scmp.eq.s32.totalorder %s26, 0
      %p131 = por %p129, %p130
      %p132 = scmp.ne.s32.totalorder %s118, %s119
      %p133 = scmp.eq.s32.totalorder %s27, 1
      %p134 = por %p132, %p133
      %p136 = scmp.ne.s32.totalorder %s119, %s135
      %p137 = scmp.eq.s32.totalorder %s27, 0
      %p138 = por %p136, %p137
      %s139 = ssub.s32 %s21, %s28
      %p140 = scmp.eq.s32.totalorder %s139, 0
      %s142 = sadd.s32 %s141, 1
      %s143 = scalar_select %p140, %s141, %s142
      %p146 = pneg %p140
      %p147 = scmp.eq.s32.totalorder %s21, 1
      %p148 = por %p146, %p147
      %p149 = scmp.ne.s32.totalorder %s141, %s144
      %p150 = scmp.eq.s32.totalorder %s21, 0
      %p151 = por %p149, %p150
      %p152 = scmp.ne.s32.totalorder %s141, %s144
      %p153 = scmp.eq.s32.totalorder %s26, 1
      %p154 = por %p152, %p153
      %p155 = scmp.ne.s32.totalorder %s144, %s145
      %p156 = scmp.eq.s32.totalorder %s26, 0
      %p157 = por %p155, %p156
      %p158 = scmp.ne.s32.totalorder %s144, %s145
      %p159 = scmp.eq.s32.totalorder %s27, 1
      %p160 = por %p158, %p159
      %p162 = scmp.ne.s32.totalorder %s145, %s161
      %p163 = scmp.eq.s32.totalorder %s27, 0
      %p164 = por %p162, %p163
      %s165 = ssub.s32 %s21, %s28
      %p166 = scmp.eq.s32.totalorder %s165, 0
      %s168 = sadd.s32 %s167, 1
      %s169 = scalar_select %p166, %s167, %s168
      %p172 = pneg %p166
      %p173 = scmp.eq.s32.totalorder %s21, 1
      %p174 = por %p172, %p173
      %p175 = scmp.ne.s32.totalorder %s167, %s170
      %p176 = scmp.eq.s32.totalorder %s21, 0
      %p177 = por %p175, %p176
      %p178 = scmp.ne.s32.totalorder %s167, %s170
      %p179 = scmp.eq.s32.totalorder %s26, 1
      %p180 = por %p178, %p179
      %p181 = scmp.ne.s32.totalorder %s170, %s171
      %p182 = scmp.eq.s32.totalorder %s26, 0
      %p183 = por %p181, %p182
      %p184 = scmp.ne.s32.totalorder %s170, %s171
      %p185 = scmp.eq.s32.totalorder %s27, 1
      %p186 = por %p184, %p185
      %p188 = scmp.ne.s32.totalorder %s171, %s187
      %p189 = scmp.eq.s32.totalorder %s27, 0
      %p190 = por %p188, %p189
      %s191 = ssub.s32 %s21, %s28
      %p192 = scmp.eq.s32.totalorder %s191, 0
      %s194 = sadd.s32 %s193, 1
      %s195 = scalar_select %p192, %s193, %s194
      %p198 = pneg %p192
      %p199 = scmp.eq.s32.totalorder %s21, 1
      %p200 = por %p198, %p199
      %p201 = scmp.ne.s32.totalorder %s193, %s196
      %p202 = scmp.eq.s32.totalorder %s21, 0
      %p203 = por %p201, %p202
      %p204 = scmp.ne.s32.totalorder %s193, %s196
      %p205 = scmp.eq.s32.totalorder %s26, 1
      %p206 = por %p204, %p205
      %p207 = scmp.ne.s32.totalorder %s196, %s197
      %p208 = scmp.eq.s32.totalorder %s26, 0
      %p209 = por %p207, %p208
      %p210 = scmp.ne.s32.totalorder %s196, %s197
      %p211 = scmp.eq.s32.totalorder %s27, 1
      %p212 = por %p210, %p211
      %p214 = scmp.ne.s32.totalorder %s197, %s213
      %p215 = scmp.eq.s32.totalorder %s27, 0
      %p216 = por %p214, %p215
      %p217 = scmp.le.s32.totalorder 1, %s21
      %p218 = scmp.lt.s32.totalorder %s21, 3
      %p219 = pnand %p217, %p218
      %p220 = pneg %p219
      // Predicated region
      $region9: #{auxiliary_forward.1} parent=5 // pred_check
        _
      $region10: #{auxiliary_forward.1} parent=5 // pred_check_branch
        %222 = sbr.rel (%p219) target = $region12
      $region11: #{auxiliary_forward.1} parent=5 // pred_region
        %s223 = ssub.s32 %s21, 1
        // Predicated region
        $region13: #{auxiliary_forward.1} parent=11 // pred_check
          %p224 = pneg %p42
        $region14: #{auxiliary_forward.1} parent=11 // pred_check_branch
          %226 = sbr.rel (%p224) target = $region16
        $region15: #{auxiliary_forward.1} parent=11 // pred_region
          _
        $region16: #{auxiliary_forward.1} parent=11 // pred_fallthru
          _
        // Predicated region
        $region17: #{auxiliary_forward.1} parent=11 // pred_check
          %p227 = pneg %p63
        $region18: #{auxiliary_forward.1} parent=11 // pred_check_branch
          %229 = sbr.rel (%p227) target = $region20
        $region19: #{auxiliary_forward.1} parent=11 // pred_region
          %s231 = ssub.s32 512, 512
          %232 = vsyncadd [#allocation4], %s231
          %s233 = sshll.u32 [#allocation3], 4
          %s234 = int_to_ptr.vmem [resolvable:$true] %s233
          %239 = dma.hbm_to_vmem [thread:$0]  %s1, 512, %s234, [#allocation4], 256, 256, 16
        $region20: #{auxiliary_forward.1} parent=11 // pred_fallthru
          _
        // Predicated region
        $region21: #{auxiliary_forward.1} parent=11 // pred_check
          %p240 = pneg %p84
        $region22: #{auxiliary_forward.1} parent=11 // pred_check_branch
          %242 = sbr.rel (%p240) target = $region24
        $region23: #{auxiliary_forward.1} parent=11 // pred_region
          %s244 = ssub.s32 256, 256
          %245 = vsyncadd [#allocation6], %s244
          %s246 = sshll.u32 [#allocation5], 4
          %s247 = int_to_ptr.vmem [resolvable:$true] %s246
          %252 = dma.hbm_to_vmem [thread:$0]  %s2, 256, %s247, [#allocation6], 128, 128, 8
        $region24: #{auxiliary_forward.1} parent=11 // pred_fallthru
          _
        // Predicated region
        $region25: #{auxiliary_forward.1} parent=11 // pred_check
          %p253 = pneg %p105
        $region26: #{auxiliary_forward.1} parent=11 // pred_check_branch
          %255 = sbr.rel (%p253) target = $region28
        $region27: #{auxiliary_forward.1} parent=11 // pred_region
          %s257 = ssub.s32 16, 16
          %258 = vsyncadd [#allocation6], %s257
          %s260 = sshll.u32 [#allocation7], 4
          %s261 = int_to_ptr.vmem [resolvable:$true] %s260
          %263 = dma.hbm_to_vmem [thread:$0]  %s3, 16, %s261, [#allocation6]
        $region28: #{auxiliary_forward.1} parent=11 // pred_fallthru
          _
      $region12: #{auxiliary_forward.1} parent=5 // pred_fallthru
        _
      %p264 = scmp.lt.s32.totalorder %s21, 2
      // Predicated region
      $region29: #{auxiliary_forward.1} parent=5 // pred_check
        %p265 = pneg %p264
      $region30: #{auxiliary_forward.1} parent=5 // pred_check_branch
        %267 = sbr.rel (%p265) target = $region32
      $region31: #{auxiliary_forward.1} parent=5 // pred_region
        // Predicated region
        $region33: #{auxiliary_forward.1} parent=31 // pred_check
          %p268 = pneg %p125
        $region34: #{auxiliary_forward.1} parent=31 // pred_check_branch
          %270 = sbr.rel (%p268) target = $region36
        $region35: #{auxiliary_forward.1} parent=31 // pred_region
          %s271 = sand.u32 %s21, 1
          %s272 = scalar_lea.sflag [#allocation9], %s271
          %s273 = sand.u32 %s115, 1
          %s274 = smul.addr %s273, 4096
          %s275 = scalar_lea.vmem [#allocation8], %s274
          %s276 = smul.u32 4, %s21
          %s278 = ssub.s32 65536, 65536
          %279 = vsyncadd %s272, %s278
          %s280 = smul.addr %s276, 64
          %s281 = scalar_lea.hbm %s4, %s280
          %s282 = sshll.u32 %s275, 4
          %s283 = int_to_ptr.vmem [resolvable:$true] %s282
          %288 = dma.hbm_to_vmem [thread:$0]  %s281, 65536, %s283, %s272, 512, 256, 16
        $region36: #{auxiliary_forward.1} parent=31 // pred_fallthru
          _
        // Predicated region
        $region37: #{auxiliary_forward.1} parent=31 // pred_check
          %p289 = pneg %p151
        $region38: #{auxiliary_forward.1} parent=31 // pred_check_branch
          %291 = sbr.rel (%p289) target = $region40
        $region39: #{auxiliary_forward.1} parent=31 // pred_region
          %s292 = sand.u32 %s21, 1
          %s293 = scalar_lea.sflag [#allocation9], %s292
          %s294 = sand.u32 %s141, 1
          %s295 = smul.addr %s294, 4
          %s296 = scalar_lea.vmem [#allocation10], %s295
          %s297 = smul.u32 4, %s21
          %s299 = ssub.s32 64, 64
          %300 = vsyncadd %s293, %s299
          %s301 = smul.addr %s297, 16
          %s302 = scalar_lea.hbm %s5, %s301
          %s304 = sshll.u32 %s296, 4
          %s305 = int_to_ptr.vmem [resolvable:$true] %s304
          %307 = dma.hbm_to_vmem [thread:$0]  %s302, 64, %s305, %s293
        $region40: #{auxiliary_forward.1} parent=31 // pred_fallthru
          _
        // Predicated region
        $region41: #{auxiliary_forward.1} parent=31 // pred_check
          %p308 = pneg %p177
        $region42: #{auxiliary_forward.1} parent=31 // pred_check_branch
          %310 = sbr.rel (%p308) target = $region44
        $region43: #{auxiliary_forward.1} parent=31 // pred_region
          %s311 = sand.u32 %s167, 1
          %s312 = scalar_lea.sflag [#allocation12], %s311
          %s313 = sand.u32 %s167, 1
          %s314 = smul.addr %s313, 256
          %s315 = scalar_lea.vmem [#allocation11], %s314
          %s316 = smul.u32 64, %s21
          %s318 = ssub.s32 4096, 4096
          %319 = vsyncadd %s312, %s318
          %s320 = smul.addr %s316, 64
          %s321 = scalar_lea.hbm %s6, %s320
          %s322 = sshll.u32 %s315, 4
          %s323 = int_to_ptr.vmem [resolvable:$true] %s322
          %328 = dma.hbm_to_vmem [thread:$0]  %s321, 4096, %s323, %s312, 64, 64, 4
        $region44: #{auxiliary_forward.1} parent=31 // pred_fallthru
          _
      $region32: #{auxiliary_forward.1} parent=5 // pred_fallthru
        _
      %p329 = scmp.le.s32.totalorder 1, %s21
      %p330 = scmp.lt.s32.totalorder %s21, 3
      %p331 = pnand %p329, %p330
      %p332 = pneg %p331
      // Predicated region
      $region45: #{auxiliary_forward.1} parent=5 // pred_check
        _
      $region46: #{auxiliary_forward.1} parent=5 // pred_check_branch
        %334 = sbr.rel (%p331) target = $region48
      $region47: #{auxiliary_forward.1} parent=5 // pred_region
        %s335 = ssub.s32 %s21, 1
        // Predicated region
        $region49: #{auxiliary_forward.1} parent=47 // pred_check
          %p336 = pneg %p63
        $region50: #{auxiliary_forward.1} parent=47 // pred_check_branch
          %338 = sbr.rel (%p336) target = $region52
        $region51: #{auxiliary_forward.1} parent=47 // pred_region
          %339 = dma.done [#allocation4], 512
        $region52: #{auxiliary_forward.1} parent=47 // pred_fallthru
          _
        // Predicated region
        $region53: #{auxiliary_forward.1} parent=47 // pred_check
          %p340 = pneg %p84
        $region54: #{auxiliary_forward.1} parent=47 // pred_check_branch
          %342 = sbr.rel (%p340) target = $region56
        $region55: #{auxiliary_forward.1} parent=47 // pred_region
          %343 = dma.done [#allocation6], 256
        $region56: #{auxiliary_forward.1} parent=47 // pred_fallthru
          _
        // Predicated region
        $region57: #{auxiliary_forward.1} parent=47 // pred_check
          %p344 = pneg %p105
        $region58: #{auxiliary_forward.1} parent=47 // pred_check_branch
          %346 = sbr.rel (%p344) target = $region60
        $region59: #{auxiliary_forward.1} parent=47 // pred_region
          %347 = dma.done [#allocation6], 16
        $region60: #{auxiliary_forward.1} parent=47 // pred_fallthru
          _
        %s348 = sand.u32 %s26, 1
        %s349 = scalar_lea.sflag [#allocation9], %s348
        %s350 = sand.u32 %s118, 1
        %s351 = smul.addr %s350, 4096
        %s352 = scalar_lea.vmem [#allocation8], %s351
        // Predicated region
        $region61: #{auxiliary_forward.1} parent=47 // pred_check
          %p353 = pneg %p131
        $region62: #{auxiliary_forward.1} parent=47 // pred_check_branch
          %355 = sbr.rel (%p353) target = $region64
        $region63: #{auxiliary_forward.1} parent=47 // pred_region
          %356 = dma.done %s349, 65536
        $region64: #{auxiliary_forward.1} parent=47 // pred_fallthru
          _
        %s357 = sand.u32 %s26, 1
        %s358 = scalar_lea.sflag [#allocation9], %s357
        %s359 = sand.u32 %s144, 1
        %s360 = smul.addr %s359, 4
        %s361 = scalar_lea.vmem [#allocation10], %s360
        // Predicated region
        $region65: #{auxiliary_forward.1} parent=47 // pred_check
          %p362 = pneg %p157
        $region66: #{auxiliary_forward.1} parent=47 // pred_check_branch
          %364 = sbr.rel (%p362) target = $region68
        $region67: #{auxiliary_forward.1} parent=47 // pred_region
          %365 = dma.done %s358, 64
        $region68: #{auxiliary_forward.1} parent=47 // pred_fallthru
          _
        %s366 = sand.u32 %s170, 1
        %s367 = scalar_lea.sflag [#allocation12], %s366
        %s368 = sand.u32 %s170, 1
        %s369 = smul.addr %s368, 256
        %s370 = scalar_lea.vmem [#allocation11], %s369
        // Predicated region
        $region69: #{auxiliary_forward.1} parent=47 // pred_check
          %p371 = pneg %p183
        $region70: #{auxiliary_forward.1} parent=47 // pred_check_branch
          %373 = sbr.rel (%p371) target = $region72
        $region71: #{auxiliary_forward.1} parent=47 // pred_region
          %374 = dma.done %s367, 4096
        $region72: #{auxiliary_forward.1} parent=47 // pred_fallthru
          _
        %p375 = pneg %p42
        %p376 = pneg %p39
        %p377 = pneg %p63
        %p378 = pneg %p60
        %p379 = pneg %p84
        %p380 = pneg %p81
        %p381 = pneg %p105
        %p382 = pneg %p102
        %s383 = sand.u32 %s26, 1
        %s384 = scalar_lea.sflag [#allocation9], %s383
        %s385 = sand.u32 %s118, 1
        %s386 = smul.addr %s385, 4096
        %s387 = scalar_lea.vmem [#allocation8], %s386
        %p388 = pneg %p131
        %p389 = pneg %p128
        %s390 = sand.u32 %s26, 1
        %s391 = scalar_lea.sflag [#allocation9], %s390
        %s392 = sand.u32 %s144, 1
        %s393 = smul.addr %s392, 4
        %s394 = scalar_lea.vmem [#allocation10], %s393
        %p395 = pneg %p157
        %p396 = pneg %p154
        %s397 = sand.u32 %s170, 1
        %s398 = scalar_lea.sflag [#allocation12], %s397
        %s399 = sand.u32 %s170, 1
        %s400 = smul.addr %s399, 256
        %s401 = scalar_lea.vmem [#allocation11], %s400
        %p402 = pneg %p183
        %p403 = pneg %p180
        %p404 = pneg %p209
        %p405 = pneg %p206
        %p406 = scmp.lt.s32.totalorder %s26, 1
        %s407 = scalar_select %p406, %s26, 1
        %s408 = smul.addr %s407, 2
        %s409 = scalar_lea.vmem %s7, %s408
        %s410 = smul.u32 4, %s26
        %s411 = smul.u32 4, %s26
        %s412 = smul.u32 64, %s26
        %p413 = scmp.lt.s32.totalorder %s26, 1
        %s414 = scalar_select %p413, %s26, 1
        %s415 = smul.addr %s414, 2
        %s416 = scalar_lea.vmem %s7, %s415
        %v418 = vld [vmem:[#allocation3] sm:$0xff]
        %v419 = vld [vmem:[#allocation3 + $0x8] sm:$0xff]
        %v420 = vld [vmem:[#allocation3 + $0x10] sm:$0xff]
        %v421 = vld [vmem:[#allocation3 + $0x18] sm:$0xff]
        %v422 = vld [vmem:[%s0] sm:$0xff]
        %v423 = vld [vmem:[%s0 + $0x8] sm:$0xff]
        %v424 = vld [vmem:[%s0 + $0x10] sm:$0xff]
        %v425 = vld [vmem:[%s0 + $0x18] sm:$0xff]
        %v426 = vld [vmem:[%s0 + $0x20] sm:$0xff]
        %v427 = vld [vmem:[%s0 + $0x28] sm:$0xff]
        %v428 = vld [vmem:[%s0 + $0x30] sm:$0xff]
        %v429 = vld [vmem:[%s0 + $0x38] sm:$0xff]
        %v430 = vld [vmem:[%s0 + $0x40] sm:$0xff]
        %v431 = vld [vmem:[%s0 + $0x48] sm:$0xff]
        %v432 = vld [vmem:[%s0 + $0x50] sm:$0xff]
        %v433 = vld [vmem:[%s0 + $0x58] sm:$0xff]
        %v434 = vld [vmem:[%s0 + $0x60] sm:$0xff]
        %v435 = vld [vmem:[%s0 + $0x68] sm:$0xff]
        %v436 = vld [vmem:[%s0 + $0x70] sm:$0xff]
        %v437 = vld [vmem:[%s0 + $0x78] sm:$0xff]
        %v438 = vld [vmem:[%s0 + $0x80] sm:$0xff]
        %v439 = vld [vmem:[%s0 + $0x88] sm:$0xff]
        %v440 = vld [vmem:[%s0 + $0x90] sm:$0xff]
        %v441 = vld [vmem:[%s0 + $0x98] sm:$0xff]
        %v442 = vld [vmem:[%s0 + $0xa0] sm:$0xff]
        %v443 = vld [vmem:[%s0 + $0xa8] sm:$0xff]
        %v444 = vld [vmem:[%s0 + $0xb0] sm:$0xff]
        %v445 = vld [vmem:[%s0 + $0xb8] sm:$0xff]
        %v446 = vld [vmem:[%s0 + $0xc0] sm:$0xf]
        %vm447 = vcmask 556032
        %v449 = vsel %vm447, %v419, 0
        %v452 = vsel %vm447, %v421, 0
        %vm454 = vcmask 1043456
        %v456 = vsel %vm454, %v446, 0
        %458 = vmatprep.subr.mxu0 0.0
        %459 = vmatpush1.msra.mxu0 %v422
        %460 = vmatprep.subr.mxu0 0.0
        %461 = vmatpush1.msra.mxu0 %v423
        %462 = vmatprep.subr.mxu0 0.0
        %463 = vmatpush1.msra.mxu0 %v424
        %464 = vmatprep.subr.mxu0 0.0
        %465 = vmatpush1.msra.mxu0 %v425
        %466 = vmatprep.subr.mxu0 0.0
        %467 = vmatpush1.msra.mxu0 %v426
        %468 = vmatprep.subr.mxu0 0.0
        %469 = vmatpush1.msra.mxu0 %v427
        %470 = vmatprep.subr.mxu0 0.0
        %471 = vmatpush1.msra.mxu0 %v428
        %472 = vmatprep.subr.mxu0 0.0
        %473 = vmatpush1.msra.mxu0 %v429
        %474 = vmatprep.subr.mxu0 0.0
        %475 = vmatpush1.msra.mxu0 %v430
        %476 = vmatprep.subr.mxu0 0.0
        %477 = vmatpush1.msra.mxu0 %v431
        %478 = vmatprep.subr.mxu0 0.0
        %479 = vmatpush1.msra.mxu0 %v432
        %480 = vmatprep.subr.mxu0 0.0
        %481 = vmatpush1.msra.mxu0 %v433
        %482 = vmatprep.subr.mxu0 0.0
        %483 = vmatpush1.msra.mxu0 %v434
        %484 = vmatprep.subr.mxu0 0.0
        %485 = vmatpush1.msra.mxu0 %v435
        %486 = vmatprep.subr.mxu0 0.0
        %487 = vmatpush1.msra.mxu0 %v436
        %488 = vmatprep.subr.mxu0 0.0
        %489 = vmatpush1.msra.mxu0 %v437
        %490 = vmatprep.subr.mxu0 0.0
        %491 = vmatpush1.msra.mxu0 %v438
        %492 = vmatprep.subr.mxu0 0.0
        %493 = vmatpush1.msra.mxu0 %v439
        %494 = vmatprep.subr.mxu0 0.0
        %495 = vmatpush1.msra.mxu0 %v440
        %496 = vmatprep.subr.mxu0 0.0
        %497 = vmatpush1.msra.mxu0 %v441
        %498 = vmatprep.subr.mxu0 0.0
        %499 = vmatpush1.msra.mxu0 %v442
        %500 = vmatprep.subr.mxu0 0.0
        %501 = vmatpush1.msra.mxu0 %v443
        %502 = vmatprep.subr.mxu0 0.0
        %503 = vmatpush1.msra.mxu0 %v444
        %504 = vmatprep.subr.mxu0 0.0
        %505 = vmatpush1.msra.mxu0 %v445
        %506 = vmatprep.subr.mxu0 0.0
        %507 = vmatpush1.msra.mxu0 %v456
        %508 = vmatprep.subr.mxu0 0.0
        %509 = vmatpush1.msra.mxu0 0.0
        %510 = vmatprep.subr.mxu0 0.0
        %511 = vmatpush1.msra.mxu0 0.0
        %512 = vmatprep.subr.mxu0 0.0
        %513 = vmatpush1.msra.mxu0 0.0
        %514 = vmatprep.subr.mxu0 0.0
        %515 = vmatpush1.msra.mxu0 0.0
        %516 = vmatprep.subr.mxu0 0.0
        %517 = vmatpush1.msra.mxu0 0.0
        %518 = vmatprep.subr.mxu0 0.0
        %519 = vmatpush1.msra.mxu0 0.0
        %520 = vmatprep.subr.mxu0 0.0
        %521 = vmatpush1.msra.mxu0 0.0
        %522 = vmatprep.mubr.f32.mxu0 %v449
        %523 = vmatmul.mubr.f32.gmra.mrb[0].mxu0 %v418
        %v524 = vpop.f32.mrb[0].mxu0
        %v525 = vadd.f32 0.0, %v524
        %v526 = vpop.f32.mrb[0].mxu0
        %527 = vmatprep.mubr.f32.mxu0 %v452
        %528 = vmatmul.mubr.f32.gmra.mrb[0].mxu0 %v420
        %v529 = vpop.f32.mrb[0].mxu0
        %v530 = vadd.f32 0.0, %v529
        %v531 = vpop.f32.mrb[0].mxu0
        %532 = vdwg.mxu0
        %v533 = vld [vmem:[#allocation5] sm:$0xff]
        %v534 = vld [vmem:[#allocation5 + $0x8] sm:$0xff]
        %v535 = vld [vmem:[#allocation7] sm:$0x1]
        %v537 = vlaneseq
        %v538 = vshrl.u32 %v537, 7
        %v539 = vsub.s32 0, %v538
        %v540 = vrot.slane %v535, %v539
        %vm542 = vcmask 130048
        %v544 = vsel %vm542, %v525, 0
        %v547 = vsel %vm542, %v530, 0
        %549 = vmatprep.subr.mxu0 0.0
        %550 = vmatpush1.msra.mxu0 %v533
        %551 = vmatprep.subr.mxu0 0.0
        %552 = vmatpush1.msra.mxu0 %v534
        %553 = vmatprep.subr.mxu0 0.0
        %554 = vmatpush1.msra.mxu0 0.0
        %555 = vmatprep.subr.mxu0 0.0
        %556 = vmatpush1.msra.mxu0 0.0
        %557 = vmatprep.subr.mxu0 0.0
        %558 = vmatpush1.msra.mxu0 0.0
        %559 = vmatprep.subr.mxu0 0.0
        %560 = vmatpush1.msra.mxu0 0.0
        %561 = vmatprep.subr.mxu0 0.0
        %562 = vmatpush1.msra.mxu0 0.0
        %563 = vmatprep.subr.mxu0 0.0
        %564 = vmatpush1.msra.mxu0 0.0
        %565 = vmatprep.subr.mxu0 0.0
        %566 = vmatpush1.msra.mxu0 0.0
        %567 = vmatprep.subr.mxu0 0.0
        %568 = vmatpush1.msra.mxu0 0.0
        %569 = vmatprep.subr.mxu0 0.0
        %570 = vmatpush1.msra.mxu0 0.0
        %571 = vmatprep.subr.mxu0 0.0
        %572 = vmatpush1.msra.mxu0 0.0
        %573 = vmatprep.subr.mxu0 0.0
        %574 = vmatpush1.msra.mxu0 0.0
        %575 = vmatprep.subr.mxu0 0.0
        %576 = vmatpush1.msra.mxu0 0.0
        %577 = vmatprep.subr.mxu0 0.0
        %578 = vmatpush1.msra.mxu0 0.0
        %579 = vmatprep.subr.mxu0 0.0
        %580 = vmatpush1.msra.mxu0 0.0
        %581 = vmatprep.subr.mxu0 0.0
        %582 = vmatpush1.msra.mxu0 0.0
        %583 = vmatprep.subr.mxu0 0.0
        %584 = vmatpush1.msra.mxu0 0.0
        %585 = vmatprep.subr.mxu0 0.0
        %586 = vmatpush1.msra.mxu0 0.0
        %587 = vmatprep.subr.mxu0 0.0
        %588 = vmatpush1.msra.mxu0 0.0
        %589 = vmatprep.subr.mxu0 0.0
        %590 = vmatpush1.msra.mxu0 0.0
        %591 = vmatprep.subr.mxu0 0.0
        %592 = vmatpush1.msra.mxu0 0.0
        %593 = vmatprep.subr.mxu0 0.0
        %594 = vmatpush1.msra.mxu0 0.0
        %595 = vmatprep.subr.mxu0 0.0
        %596 = vmatpush1.msra.mxu0 0.0
        %597 = vmatprep.subr.mxu0 0.0
        %598 = vmatpush1.msra.mxu0 0.0
        %599 = vmatprep.subr.mxu0 0.0
        %600 = vmatpush1.msra.mxu0 0.0
        %601 = vmatprep.subr.mxu0 0.0
        %602 = vmatpush1.msra.mxu0 0.0
        %603 = vmatprep.subr.mxu0 0.0
        %604 = vmatpush1.msra.mxu0 0.0
        %605 = vmatprep.subr.mxu0 0.0
        %606 = vmatpush1.msra.mxu0 0.0
        %607 = vmatprep.subr.mxu0 0.0
        %608 = vmatpush1.msra.mxu0 0.0
        %609 = vmatprep.subr.mxu0 0.0
        %610 = vmatpush1.msra.mxu0 0.0
        %611 = vmatprep.subr.mxu0 0.0
        %612 = vmatpush1.msra.mxu0 0.0
        %613 = vmatprep.mubr.f32.mxu0 0.0
        %614 = vmatmul.mubr.f32.gmra.mrb[0].mxu0 %v544
        %v615 = vpop.f32.mrb[0].mxu0
        %v616 = vadd.f32 %v540, %v615
        %v617 = vpop.f32.mrb[0].mxu0
        %618 = vmatprep.mubr.f32.mxu0 0.0
        %619 = vmatmul.mubr.f32.gmra.mrb[0].mxu0 %v547
        %v620 = vpop.f32.mrb[0].mxu0
        %v621 = vadd.f32 %v540, %v620
        %v622 = vpop.f32.mrb[0].mxu0
        %623 = vdwg.mxu0
        %v624 = vmax.f32 %v616, 0.0
        %v625 = vmax.f32 %v621, 0.0
        %626 = vst [vmem:[#allocation2] sm:$0x1] %v624
        %v629 = vunpack.c.l.s4 1983009808
        %v630 = vunpack.c.0.s8 %v629
        %v631 = vlaneseq
        %v632 = vshrl.u32 %v631, 7
        %v633 = vsub.s32 %v630, %v632
        %v634 = vrot.slane %v624, %v633
        %v635 = vrot.slane %v634, 7
        %v636 = vrot.slane %v635, 2
        %638 = vst [vmem:[#allocation2 + $0x2] sm:$0x1] %v636
        %v639 = vcombine.high %v634, %v634
        %641 = vst [vmem:[#allocation2 + $0x4] sm:$0x1] %v639
        %v642 = vrot.slane %v639, 7
        %v643 = vrot.slane %v642, 2
        %645 = vst [vmem:[#allocation2 + $0x6] sm:$0x1] %v643
        %v646 = vcombine.high %v624, %v624
        %v648 = vunpack.c.l.s4 1983009808
        %v649 = vunpack.c.0.s8 %v648
        %v650 = vlaneseq
        %v651 = vshrl.u32 %v650, 7
        %v652 = vsub.s32 %v649, %v651
        %v653 = vrot.slane %v646, %v652
        %655 = vst [vmem:[#allocation2 + $0x8] sm:$0x1] %v653
        %v656 = vrot.slane %v653, 7
        %v657 = vrot.slane %v656, 2
        %659 = vst [vmem:[#allocation2 + $0xa] sm:$0x1] %v657
        %v660 = vcombine.high %v653, %v653
        %662 = vst [vmem:[#allocation2 + $0xc] sm:$0x1] %v660
        %v663 = vrot.slane %v660, 7
        %v664 = vrot.slane %v663, 2
        %666 = vst [vmem:[#allocation2 + $0xe] sm:$0x1] %v664
        %667 = vst [vmem:[#allocation2 + $0x10] sm:$0x1] %v625
        %v670 = vunpack.c.l.s4 1983009808
        %v671 = vunpack.c.0.s8 %v670
        %v672 = vlaneseq
        %v673 = vshrl.u32 %v672, 7
        %v674 = vsub.s32 %v671, %v673
        %v675 = vrot.slane %v625, %v674
        %v676 = vrot.slane %v675, 7
        %v677 = vrot.slane %v676, 2
        %679 = vst [vmem:[#allocation2 + $0x12] sm:$0x1] %v677
        %v680 = vcombine.high %v675, %v675
        %682 = vst [vmem:[#allocation2 + $0x14] sm:$0x1] %v680
        %v683 = vrot.slane %v680, 7
        %v684 = vrot.slane %v683, 2
        %686 = vst [vmem:[#allocation2 + $0x16] sm:$0x1] %v684
        %v687 = vcombine.high %v625, %v625
        %v689 = vunpack.c.l.s4 1983009808
        %v690 = vunpack.c.0.s8 %v689
        %v691 = vlaneseq
        %v692 = vshrl.u32 %v691, 7
        %v693 = vsub.s32 %v690, %v692
        %v694 = vrot.slane %v687, %v693
        %696 = vst [vmem:[#allocation2 + $0x18] sm:$0x1] %v694
        %v697 = vrot.slane %v694, 7
        %v698 = vrot.slane %v697, 2
        %700 = vst [vmem:[#allocation2 + $0x1a] sm:$0x1] %v698
        %v701 = vcombine.high %v694, %v694
        %703 = vst [vmem:[#allocation2 + $0x1c] sm:$0x1] %v701
        %v704 = vrot.slane %v701, 7
        %v705 = vrot.slane %v704, 2
        %707 = vst [vmem:[#allocation2 + $0x1e] sm:$0x1] %v705
        %v708 = vld [vmem:[#allocation3] sm:$0xff]
        %v709 = vld [vmem:[#allocation3 + $0x8] sm:$0xff]
        %v710 = vld [vmem:[#allocation3 + $0x10] sm:$0xff]
        %v711 = vld [vmem:[#allocation3 + $0x18] sm:$0xff]
        %s712 = scalar_lea.vmem %s0, 200
        %v713 = vld [vmem:[%s712] sm:$0xff]
        %v714 = vld [vmem:[%s712 + $0x8] sm:$0xff]
        %v715 = vld [vmem:[%s712 + $0x10] sm:$0xff]
        %v716 = vld [vmem:[%s712 + $0x18] sm:$0xff]
        %v717 = vld [vmem:[%s712 + $0x20] sm:$0xff]
        %v718 = vld [vmem:[%s712 + $0x28] sm:$0xff]
        %v719 = vld [vmem:[%s712 + $0x30] sm:$0xff]
        %v720 = vld [vmem:[%s712 + $0x38] sm:$0xff]
        %v721 = vld [vmem:[%s712 + $0x40] sm:$0xff]
        %v722 = vld [vmem:[%s712 + $0x48] sm:$0xff]
        %v723 = vld [vmem:[%s712 + $0x50] sm:$0xff]
        %v724 = vld [vmem:[%s712 + $0x58] sm:$0xff]
        %v725 = vld [vmem:[%s712 + $0x60] sm:$0xff]
        %v726 = vld [vmem:[%s712 + $0x68] sm:$0xff]
        %v727 = vld [vmem:[%s712 + $0x70] sm:$0xff]
        %v728 = vld [vmem:[%s712 + $0x78] sm:$0xff]
        %v729 = vld [vmem:[%s712 + $0x80] sm:$0xff]
        %v730 = vld [vmem:[%s712 + $0x88] sm:$0xff]
        %v731 = vld [vmem:[%s712 + $0x90] sm:$0xff]
        %v732 = vld [vmem:[%s712 + $0x98] sm:$0xff]
        %v733 = vld [vmem:[%s712 + $0xa0] sm:$0xff]
        %v734 = vld [vmem:[%s712 + $0xa8] sm:$0xff]
        %v735 = vld [vmem:[%s712 + $0xb0] sm:$0xff]
        %v736 = vld [vmem:[%s712 + $0xb8] sm:$0xff]
        %v737 = vld [vmem:[%s712 + $0xc0] sm:$0xf]
        %v739 = vsel %vm447, %v709, 0
        %v742 = vsel %vm447, %v711, 0
        %v745 = vsel %vm454, %v737, 0
        %747 = vmatprep.subr.mxu0 0.0
        %748 = vmatpush1.msra.mxu0 %v713
        %749 = vmatprep.subr.mxu0 0.0
        %750 = vmatpush1.msra.mxu0 %v714
        %751 = vmatprep.subr.mxu0 0.0
        %752 = vmatpush1.msra.mxu0 %v715
        %753 = vmatprep.subr.mxu0 0.0
        %754 = vmatpush1.msra.mxu0 %v716
        %755 = vmatprep.subr.mxu0 0.0
        %756 = vmatpush1.msra.mxu0 %v717
        %757 = vmatprep.subr.mxu0 0.0
        %758 = vmatpush1.msra.mxu0 %v718
        %759 = vmatprep.subr.mxu0 0.0
        %760 = vmatpush1.msra.mxu0 %v719
        %761 = vmatprep.subr.mxu0 0.0
        %762 = vmatpush1.msra.mxu0 %v720
        %763 = vmatprep.subr.mxu0 0.0
        %764 = vmatpush1.msra.mxu0 %v721
        %765 = vmatprep.subr.mxu0 0.0
        %766 = vmatpush1.msra.mxu0 %v722
        %767 = vmatprep.subr.mxu0 0.0
        %768 = vmatpush1.msra.mxu0 %v723
        %769 = vmatprep.subr.mxu0 0.0
        %770 = vmatpush1.msra.mxu0 %v724
        %771 = vmatprep.subr.mxu0 0.0
        %772 = vmatpush1.msra.mxu0 %v725
        %773 = vmatprep.subr.mxu0 0.0
        %774 = vmatpush1.msra.mxu0 %v726
        %775 = vmatprep.subr.mxu0 0.0
        %776 = vmatpush1.msra.mxu0 %v727
        %777 = vmatprep.subr.mxu0 0.0
        %778 = vmatpush1.msra.mxu0 %v728
        %779 = vmatprep.subr.mxu0 0.0
        %780 = vmatpush1.msra.mxu0 %v729
        %781 = vmatprep.subr.mxu0 0.0
        %782 = vmatpush1.msra.mxu0 %v730
        %783 = vmatprep.subr.mxu0 0.0
        %784 = vmatpush1.msra.mxu0 %v731
        %785 = vmatprep.subr.mxu0 0.0
        %786 = vmatpush1.msra.mxu0 %v732
        %787 = vmatprep.subr.mxu0 0.0
        %788 = vmatpush1.msra.mxu0 %v733
        %789 = vmatprep.subr.mxu0 0.0
        %790 = vmatpush1.msra.mxu0 %v734
        %791 = vmatprep.subr.mxu0 0.0
        %792 = vmatpush1.msra.mxu0 %v735
        %793 = vmatprep.subr.mxu0 0.0
        %794 = vmatpush1.msra.mxu0 %v736
        %795 = vmatprep.subr.mxu0 0.0
        %796 = vmatpush1.msra.mxu0 %v745
        %797 = vmatprep.subr.mxu0 0.0
        %798 = vmatpush1.msra.mxu0 0.0
        %799 = vmatprep.subr.mxu0 0.0
        %800 = vmatpush1.msra.mxu0 0.0
        %801 = vmatprep.subr.mxu0 0.0
        %802 = vmatpush1.msra.mxu0 0.0
        %803 = vmatprep.subr.mxu0 0.0
        %804 = vmatpush1.msra.mxu0 0.0
        %805 = vmatprep.subr.mxu0 0.0
        %806 = vmatpush1.msra.mxu0 0.0
        %807 = vmatprep.subr.mxu0 0.0
        %808 = vmatpush1.msra.mxu0 0.0
        %809 = vmatprep.subr.mxu0 0.0
        %810 = vmatpush1.msra.mxu0 0.0
        %811 = vmatprep.mubr.f32.mxu0 %v739
        %812 = vmatmul.mubr.f32.gmra.mrb[0].mxu0 %v708
        %v813 = vpop.f32.mrb[0].mxu0
        %v814 = vadd.f32 0.0, %v813
        %v815 = vpop.f32.mrb[0].mxu0
        %816 = vmatprep.mubr.f32.mxu0 %v742
        %817 = vmatmul.mubr.f32.gmra.mrb[0].mxu0 %v710
        %v818 = vpop.f32.mrb[0].mxu0
        %v819 = vadd.f32 0.0, %v818
        %v820 = vpop.f32.mrb[0].mxu0
        %821 = vdwg.mxu0
        %v822 = vld [vmem:[#allocation5] sm:$0xff]
        %v823 = vld [vmem:[#allocation5 + $0x8] sm:$0xff]
        %v824 = vld [vmem:[#allocation7] sm:$0x1]
        %v826 = vlaneseq
        %v827 = vshrl.u32 %v826, 7
        %v828 = vsub.s32 0, %v827
        %v829 = vrot.slane %v824, %v828
        %v832 = vsel %vm542, %v814, 0
        %v835 = vsel %vm542, %v819, 0
        %837 = vmatprep.subr.mxu0 0.0
        %838 = vmatpush1.msra.mxu0 %v822
        %839 = vmatprep.subr.mxu0 0.0
        %840 = vmatpush1.msra.mxu0 %v823
        %841 = vmatprep.subr.mxu0 0.0
        %842 = vmatpush1.msra.mxu0 0.0
        %843 = vmatprep.subr.mxu0 0.0
        %844 = vmatpush1.msra.mxu0 0.0
        %845 = vmatprep.subr.mxu0 0.0
        %846 = vmatpush1.msra.mxu0 0.0
        %847 = vmatprep.subr.mxu0 0.0
        %848 = vmatpush1.msra.mxu0 0.0
        %849 = vmatprep.subr.mxu0 0.0
        %850 = vmatpush1.msra.mxu0 0.0
        %851 = vmatprep.subr.mxu0 0.0
        %852 = vmatpush1.msra.mxu0 0.0
        %853 = vmatprep.subr.mxu0 0.0
        %854 = vmatpush1.msra.mxu0 0.0
        %855 = vmatprep.subr.mxu0 0.0
        %856 = vmatpush1.msra.mxu0 0.0
        %857 = vmatprep.subr.mxu0 0.0
        %858 = vmatpush1.msra.mxu0 0.0
        %859 = vmatprep.subr.mxu0 0.0
        %860 = vmatpush1.msra.mxu0 0.0
        %861 = vmatprep.subr.mxu0 0.0
        %862 = vmatpush1.msra.mxu0 0.0
        %863 = vmatprep.subr.mxu0 0.0
        %864 = vmatpush1.msra.mxu0 0.0
        %865 = vmatprep.subr.mxu0 0.0
        %866 = vmatpush1.msra.mxu0 0.0
        %867 = vmatprep.subr.mxu0 0.0
        %868 = vmatpush1.msra.mxu0 0.0
        %869 = vmatprep.subr.mxu0 0.0
        %870 = vmatpush1.msra.mxu0 0.0
        %871 = vmatprep.subr.mxu0 0.0
        %872 = vmatpush1.msra.mxu0 0.0
        %873 = vmatprep.subr.mxu0 0.0
        %874 = vmatpush1.msra.mxu0 0.0
        %875 = vmatprep.subr.mxu0 0.0
        %876 = vmatpush1.msra.mxu0 0.0
        %877 = vmatprep.subr.mxu0 0.0
        %878 = vmatpush1.msra.mxu0 0.0
        %879 = vmatprep.subr.mxu0 0.0
        %880 = vmatpush1.msra.mxu0 0.0
        %881 = vmatprep.subr.mxu0 0.0
        %882 = vmatpush1.msra.mxu0 0.0
        %883 = vmatprep.subr.mxu0 0.0
        %884 = vmatpush1.msra.mxu0 0.0
        %885 = vmatprep.subr.mxu0 0.0
        %886 = vmatpush1.msra.mxu0 0.0
        %887 = vmatprep.subr.mxu0 0.0
        %888 = vmatpush1.msra.mxu0 0.0
        %889 = vmatprep.subr.mxu0 0.0
        %890 = vmatpush1.msra.mxu0 0.0
        %891 = vmatprep.subr.mxu0 0.0
        %892 = vmatpush1.msra.mxu0 0.0
        %893 = vmatprep.subr.mxu0 0.0
        %894 = vmatpush1.msra.mxu0 0.0
        %895 = vmatprep.subr.mxu0 0.0
        %896 = vmatpush1.msra.mxu0 0.0
        %897 = vmatprep.subr.mxu0 0.0
        %898 = vmatpush1.msra.mxu0 0.0
        %899 = vmatprep.subr.mxu0 0.0
        %900 = vmatpush1.msra.mxu0 0.0
        %901 = vmatprep.mubr.f32.mxu0 0.0
        %902 = vmatmul.mubr.f32.gmra.mrb[0].mxu0 %v832
        %v903 = vpop.f32.mrb[0].mxu0
        %v904 = vadd.f32 %v829, %v903
        %v905 = vpop.f32.mrb[0].mxu0
        %906 = vmatprep.mubr.f32.mxu0 0.0
        %907 = vmatmul.mubr.f32.gmra.mrb[0].mxu0 %v835
        %v908 = vpop.f32.mrb[0].mxu0
        %v909 = vadd.f32 %v829, %v908
        %v910 = vpop.f32.mrb[0].mxu0
        %911 = vdwg.mxu0
        %v912 = vmax.f32 %v904, 0.0
        %v913 = vmax.f32 %v909, 0.0
        %914 = vst [vmem:[#allocation2 + $0x1] sm:$0x1] %v912
        %v917 = vunpack.c.l.s4 1983009808
        %v918 = vunpack.c.0.s8 %v917
        %v919 = vlaneseq
        %v920 = vshrl.u32 %v919, 7
        %v921 = vsub.s32 %v918, %v920
        %v922 = vrot.slane %v912, %v921
        %v923 = vrot.slane %v922, 7
        %v924 = vrot.slane %v923, 2
        %926 = vst [vmem:[#allocation2 + $0x3] sm:$0x1] %v924
        %v927 = vcombine.high %v922, %v922
        %929 = vst [vmem:[#allocation2 + $0x5] sm:$0x1] %v927
        %v930 = vrot.slane %v927, 7
        %v931 = vrot.slane %v930, 2
        %933 = vst [vmem:[#allocation2 + $0x7] sm:$0x1] %v931
        %v934 = vcombine.high %v912, %v912
        %v936 = vunpack.c.l.s4 1983009808
        %v937 = vunpack.c.0.s8 %v936
        %v938 = vlaneseq
        %v939 = vshrl.u32 %v938, 7
        %v940 = vsub.s32 %v937, %v939
        %v941 = vrot.slane %v934, %v940
        %943 = vst [vmem:[#allocation2 + $0x9] sm:$0x1] %v941
        %v944 = vrot.slane %v941, 7
        %v945 = vrot.slane %v944, 2
        %947 = vst [vmem:[#allocation2 + $0xb] sm:$0x1] %v945
        %v948 = vcombine.high %v941, %v941
        %950 = vst [vmem:[#allocation2 + $0xd] sm:$0x1] %v948
        %v951 = vrot.slane %v948, 7
        %v952 = vrot.slane %v951, 2
        %954 = vst [vmem:[#allocation2 + $0xf] sm:$0x1] %v952
        %955 = vst [vmem:[#allocation2 + $0x11] sm:$0x1] %v913
        %v958 = vunpack.c.l.s4 1983009808
        %v959 = vunpack.c.0.s8 %v958
        %v960 = vlaneseq
        %v961 = vshrl.u32 %v960, 7
        %v962 = vsub.s32 %v959, %v961
        %v963 = vrot.slane %v913, %v962
        %v964 = vrot.slane %v963, 7
        %v965 = vrot.slane %v964, 2
        %967 = vst [vmem:[#allocation2 + $0x13] sm:$0x1] %v965
        %v968 = vcombine.high %v963, %v963
        %970 = vst [vmem:[#allocation2 + $0x15] sm:$0x1] %v968
        %v971 = vrot.slane %v968, 7
        %v972 = vrot.slane %v971, 2
        %974 = vst [vmem:[#allocation2 + $0x17] sm:$0x1] %v972
        %v975 = vcombine.high %v913, %v913
        %v977 = vunpack.c.l.s4 1983009808
        %v978 = vunpack.c.0.s8 %v977
        %v979 = vlaneseq
        %v980 = vshrl.u32 %v979, 7
        %v981 = vsub.s32 %v978, %v980
        %v982 = vrot.slane %v975, %v981
        %984 = vst [vmem:[#allocation2 + $0x19] sm:$0x1] %v982
        %v985 = vrot.slane %v982, 7
        %v986 = vrot.slane %v985, 2
        %988 = vst [vmem:[#allocation2 + $0x1b] sm:$0x1] %v986
        %v989 = vcombine.high %v982, %v982
        %991 = vst [vmem:[#allocation2 + $0x1d] sm:$0x1] %v989
        %v992 = vrot.slane %v989, 7
        %v993 = vrot.slane %v992, 2
        %995 = vst [vmem:[#allocation2 + $0x1f] sm:$0x1] %v993
        %v996 = vld [vmem:[#allocation2] sm:$0xff]
        %v997 = vld [vmem:[#allocation2 + $0x8] sm:$0xff]
        %v998 = vld [vmem:[#allocation2 + $0x10] sm:$0xff]
        %v999 = vld [vmem:[#allocation2 + $0x18] sm:$0xff]
        %v1004 = vcombine.high %v996, %v996
        %v1006 = vunpack.c.l.s4 1983009808
        %v1007 = vunpack.c.0.s8 %v1006
        %v1008 = vlaneseq
        %v1009 = vshrl.u32 %v1008, 7
        %v1010 = vsub.s32 %v1007, %v1009
        %v1011 = vrot.slane %v996, %v1010
        %v1013 = vunpack.c.l.s4 1983009808
        %v1014 = vunpack.c.0.s8 %v1013
        %v1015 = vlaneseq
        %v1016 = vshrl.u32 %v1015, 7
        %v1017 = vsub.s32 %v1014, %v1016
        %v1018 = vrot.slane %v1004, %v1017
        %v1019 = vcombine.high %v1011, %v1011
        %v1020 = vcombine.high %v1018, %v1018
        %v1021 = vcombine.high %v997, %v997
        %v1023 = vunpack.c.l.s4 1983009808
        %v1024 = vunpack.c.0.s8 %v1023
        %v1025 = vlaneseq
        %v1026 = vshrl.u32 %v1025, 7
        %v1027 = vsub.s32 %v1024, %v1026
        %v1028 = vrot.slane %v997, %v1027
        %v1030 = vunpack.c.l.s4 1983009808
        %v1031 = vunpack.c.0.s8 %v1030
        %v1032 = vlaneseq
        %v1033 = vshrl.u32 %v1032, 7
        %v1034 = vsub.s32 %v1031, %v1033
        %v1035 = vrot.slane %v1021, %v1034
        %v1036 = vcombine.high %v1028, %v1028
        %v1037 = vcombine.high %v1035, %v1035
        %v1038 = vcombine.high %v998, %v998
        %v1040 = vunpack.c.l.s4 1983009808
        %v1041 = vunpack.c.0.s8 %v1040
        %v1042 = vlaneseq
        %v1043 = vshrl.u32 %v1042, 7
        %v1044 = vsub.s32 %v1041, %v1043
        %v1045 = vrot.slane %v998, %v1044
        %v1047 = vunpack.c.l.s4 1983009808
        %v1048 = vunpack.c.0.s8 %v1047
        %v1049 = vlaneseq
        %v1050 = vshrl.u32 %v1049, 7
        %v1051 = vsub.s32 %v1048, %v1050
        %v1052 = vrot.slane %v1038, %v1051
        %v1053 = vcombine.high %v1045, %v1045
        %v1054 = vcombine.high %v1052, %v1052
        %v1055 = vcombine.high %v999, %v999
        %v1057 = vunpack.c.l.s4 1983009808
        %v1058 = vunpack.c.0.s8 %v1057
        %v1059 = vlaneseq
        %v1060 = vshrl.u32 %v1059, 7
        %v1061 = vsub.s32 %v1058, %v1060
        %v1062 = vrot.slane %v999, %v1061
        %v1064 = vunpack.c.l.s4 1983009808
        %v1065 = vunpack.c.0.s8 %v1064
        %v1066 = vlaneseq
        %v1067 = vshrl.u32 %v1066, 7
        %v1068 = vsub.s32 %v1065, %v1067
        %v1069 = vrot.slane %v1055, %v1068
        %v1070 = vcombine.high %v1062, %v1062
        %v1071 = vcombine.high %v1069, %v1069
        %v1088 = vpack.c.bf16 %v1011, %v1011
        %v1089 = vpack.c.bf16 %v1019, %v1019
        %v1090 = vpack.c.bf16 %v1018, %v1018
        %v1091 = vpack.c.bf16 %v1020, %v1020
        %v1092 = vpack.c.bf16 %v1028, %v1028
        %v1093 = vpack.c.bf16 %v1036, %v1036
        %v1094 = vpack.c.bf16 %v1035, %v1035
        %v1095 = vpack.c.bf16 %v1037, %v1037
        %v1096 = vpack.c.bf16 %v1045, %v1045
        %v1097 = vpack.c.bf16 %v1053, %v1053
        %v1098 = vpack.c.bf16 %v1052, %v1052
        %v1099 = vpack.c.bf16 %v1054, %v1054
        %v1100 = vpack.c.bf16 %v1062, %v1062
        %v1101 = vpack.c.bf16 %v1070, %v1070
        %v1102 = vpack.c.bf16 %v1069, %v1069
        %v1103 = vpack.c.bf16 %v1071, %v1071
        %v1104 = vld [vmem:[%s352] sm:$0xff]
        %v1105 = vld [vmem:[%s352 + $0x8] sm:$0xff]
        %v1106 = vld [vmem:[%s352 + $0x10] sm:$0xff]
        %v1107 = vld [vmem:[%s352 + $0x18] sm:$0xff]
        %v1108 = vld [vmem:[%s352 + $0x20] sm:$0xff]
        %v1109 = vld [vmem:[%s352 + $0x28] sm:$0xff]
        %v1110 = vld [vmem:[%s352 + $0x30] sm:$0xff]
        %v1111 = vld [vmem:[%s352 + $0x38] sm:$0xff]
        %v1112 = vld [vmem:[%s352 + $0x40] sm:$0xff]
        %v1113 = vld [vmem:[%s352 + $0x48] sm:$0xff]
        %v1114 = vld [vmem:[%s352 + $0x50] sm:$0xff]
        %v1115 = vld [vmem:[%s352 + $0x58] sm:$0xff]
        %v1116 = vld [vmem:[%s352 + $0x60] sm:$0xff]
        %v1117 = vld [vmem:[%s352 + $0x68] sm:$0xff]
        %v1118 = vld [vmem:[%s352 + $0x70] sm:$0xff]
        %v1119 = vld [vmem:[%s352 + $0x78] sm:$0xff]
        %v1120 = vld [vmem:[%s352 + $0x80] sm:$0xff]
        %v1121 = vld [vmem:[%s352 + $0x88] sm:$0xff]
        %v1122 = vld [vmem:[%s352 + $0x90] sm:$0xff]
        %v1123 = vld [vmem:[%s352 + $0x98] sm:$0xff]
        %v1124 = vld [vmem:[%s352 + $0xa0] sm:$0xff]
        %v1125 = vld [vmem:[%s352 + $0xa8] sm:$0xff]
        %v1126 = vld [vmem:[%s352 + $0xb0] sm:$0xff]
        %v1127 = vld [vmem:[%s352 + $0xb8] sm:$0xff]
        %v1128 = vld [vmem:[%s352 + $0xc0] sm:$0xff]
        %v1129 = vld [vmem:[%s352 + $0xc8] sm:$0xff]
        %v1130 = vld [vmem:[%s352 + $0xd0] sm:$0xff]
        %v1131 = vld [vmem:[%s352 + $0xd8] sm:$0xff]
        %v1132 = vld [vmem:[%s352 + $0xe0] sm:$0xff]
        %v1133 = vld [vmem:[%s352 + $0xe8] sm:$0xff]
        %v1134 = vld [vmem:[%s352 + $0xf0] sm:$0xff]
        %v1135 = vld [vmem:[%s352 + $0xf8] sm:$0xff]
        %v1136 = vld [vmem:[%s352 + $0x100] sm:$0xff]
        %v1137 = vld [vmem:[%s352 + $0x108] sm:$0xff]
        %v1138 = vld [vmem:[%s352 + $0x110] sm:$0xff]
        %v1139 = vld [vmem:[%s352 + $0x118] sm:$0xff]
        %v1140 = vld [vmem:[%s352 + $0x120] sm:$0xff]
        %v1141 = vld [vmem:[%s352 + $0x128] sm:$0xff]
        %v1142 = vld [vmem:[%s352 + $0x130] sm:$0xff]
        %v1143 = vld [vmem:[%s352 + $0x138] sm:$0xff]
        %v1144 = vld [vmem:[%s352 + $0x140] sm:$0xff]
        %v1145 = vld [vmem:[%s352 + $0x148] sm:$0xff]
        %v1146 = vld [vmem:[%s352 + $0x150] sm:$0xff]
        %v1147 = vld [vmem:[%s352 + $0x158] sm:$0xff]
        %v1148 = vld [vmem:[%s352 + $0x160] sm:$0xff]
        %v1149 = vld [vmem:[%s352 + $0x168] sm:$0xff]
        %v1150 = vld [vmem:[%s352 + $0x170] sm:$0xff]
        %v1151 = vld [vmem:[%s352 + $0x178] sm:$0xff]
        %v1152 = vld [vmem:[%s352 + $0x180] sm:$0xff]
        %v1153 = vld [vmem:[%s352 + $0x188] sm:$0xff]
        %v1154 = vld [vmem:[%s352 + $0x190] sm:$0xff]
        %v1155 = vld [vmem:[%s352 + $0x198] sm:$0xff]
        %v1156 = vld [vmem:[%s352 + $0x1a0] sm:$0xff]
        %v1157 = vld [vmem:[%s352 + $0x1a8] sm:$0xff]
        %v1158 = vld [vmem:[%s352 + $0x1b0] sm:$0xff]
        %v1159 = vld [vmem:[%s352 + $0x1b8] sm:$0xff]
        %v1160 = vld [vmem:[%s352 + $0x1c0] sm:$0xff]
        %v1161 = vld [vmem:[%s352 + $0x1c8] sm:$0xff]
        %v1162 = vld [vmem:[%s352 + $0x1d0] sm:$0xff]
        %v1163 = vld [vmem:[%s352 + $0x1d8] sm:$0xff]
        %v1164 = vld [vmem:[%s352 + $0x1e0] sm:$0xff]
        %v1165 = vld [vmem:[%s352 + $0x1e8] sm:$0xff]
        %v1166 = vld [vmem:[%s352 + $0x1f0] sm:$0xff]
        %v1167 = vld [vmem:[%s352 + $0x1f8] sm:$0xff]
        %v1168 = vld [vmem:[%s352 + $0x200] sm:$0xff]
        %v1169 = vld [vmem:[%s352 + $0x208] sm:$0xff]
        %v1170 = vld [vmem:[%s352 + $0x210] sm:$0xff]
        %v1171 = vld [vmem:[%s352 + $0x218] sm:$0xff]
        %v1172 = vld [vmem:[%s352 + $0x220] sm:$0xff]
        %v1173 = vld [vmem:[%s352 + $0x228] sm:$0xff]
        %v1174 = vld [vmem:[%s352 + $0x230] sm:$0xff]
        %v1175 = vld [vmem:[%s352 + $0x238] sm:$0xff]
        %v1176 = vld [vmem:[%s352 + $0x240] sm:$0xff]
        %v1177 = vld [vmem:[%s352 + $0x248] sm:$0xff]
        %v1178 = vld [vmem:[%s352 + $0x250] sm:$0xff]
        %v1179 = vld [vmem:[%s352 + $0x258] sm:$0xff]
        %v1180 = vld [vmem:[%s352 + $0x260] sm:$0xff]
        %v1181 = vld [vmem:[%s352 + $0x268] sm:$0xff]
        %v1182 = vld [vmem:[%s352 + $0x270] sm:$0xff]
        %v1183 = vld [vmem:[%s352 + $0x278] sm:$0xff]
        %v1184 = vld [vmem:[%s352 + $0x280] sm:$0xff]
        %v1185 = vld [vmem:[%s352 + $0x288] sm:$0xff]
        %v1186 = vld [vmem:[%s352 + $0x290] sm:$0xff]
        %v1187 = vld [vmem:[%s352 + $0x298] sm:$0xff]
        %v1188 = vld [vmem:[%s352 + $0x2a0] sm:$0xff]
        %v1189 = vld [vmem:[%s352 + $0x2a8] sm:$0xff]
        %v1190 = vld [vmem:[%s352 + $0x2b0] sm:$0xff]
        %v1191 = vld [vmem:[%s352 + $0x2b8] sm:$0xff]
        %v1192 = vld [vmem:[%s352 + $0x2c0] sm:$0xff]
        %v1193 = vld [vmem:[%s352 + $0x2c8] sm:$0xff]
        %v1194 = vld [vmem:[%s352 + $0x2d0] sm:$0xff]
        %v1195 = vld [vmem:[%s352 + $0x2d8] sm:$0xff]
        %v1196 = vld [vmem:[%s352 + $0x2e0] sm:$0xff]
        %v1197 = vld [vmem:[%s352 + $0x2e8] sm:$0xff]
        %v1198 = vld [vmem:[%s352 + $0x2f0] sm:$0xff]
        %v1199 = vld [vmem:[%s352 + $0x2f8] sm:$0xff]
        %v1200 = vld [vmem:[%s352 + $0x300] sm:$0xff]
        %v1201 = vld [vmem:[%s352 + $0x308] sm:$0xff]
        %v1202 = vld [vmem:[%s352 + $0x310] sm:$0xff]
        %v1203 = vld [vmem:[%s352 + $0x318] sm:$0xff]
        %v1204 = vld [vmem:[%s352 + $0x320] sm:$0xff]
        %v1205 = vld [vmem:[%s352 + $0x328] sm:$0xff]
        %v1206 = vld [vmem:[%s352 + $0x330] sm:$0xff]
        %v1207 = vld [vmem:[%s352 + $0x338] sm:$0xff]
        %v1208 = vld [vmem:[%s352 + $0x340] sm:$0xff]
        %v1209 = vld [vmem:[%s352 + $0x348] sm:$0xff]
        %v1210 = vld [vmem:[%s352 + $0x350] sm:$0xff]
        %v1211 = vld [vmem:[%s352 + $0x358] sm:$0xff]
        %v1212 = vld [vmem:[%s352 + $0x360] sm:$0xff]
        %v1213 = vld [vmem:[%s352 + $0x368] sm:$0xff]
        %v1214 = vld [vmem:[%s352 + $0x370] sm:$0xff]
        %v1215 = vld [vmem:[%s352 + $0x378] sm:$0xff]
        %v1216 = vld [vmem:[%s352 + $0x380] sm:$0xff]
        %v1217 = vld [vmem:[%s352 + $0x388] sm:$0xff]
        %v1218 = vld [vmem:[%s352 + $0x390] sm:$0xff]
        %v1219 = vld [vmem:[%s352 + $0x398] sm:$0xff]
        %v1220 = vld [vmem:[%s352 + $0x3a0] sm:$0xff]
        %v1221 = vld [vmem:[%s352 + $0x3a8] sm:$0xff]
        %v1222 = vld [vmem:[%s352 + $0x3b0] sm:$0xff]
        %v1223 = vld [vmem:[%s352 + $0x3b8] sm:$0xff]
        %v1224 = vld [vmem:[%s352 + $0x3c0] sm:$0xff]
        %v1225 = vld [vmem:[%s352 + $0x3c8] sm:$0xff]
        %v1226 = vld [vmem:[%s352 + $0x3d0] sm:$0xff]
        %v1227 = vld [vmem:[%s352 + $0x3d8] sm:$0xff]
        %v1228 = vld [vmem:[%s352 + $0x3e0] sm:$0xff]
        %v1229 = vld [vmem:[%s352 + $0x3e8] sm:$0xff]
        %v1230 = vld [vmem:[%s352 + $0x3f0] sm:$0xff]
        %v1231 = vld [vmem:[%s352 + $0x3f8] sm:$0xff]
        %v1232 = vld [vmem:[%s352 + $0x400] sm:$0xff]
        %v1233 = vld [vmem:[%s352 + $0x408] sm:$0xff]
        %v1234 = vld [vmem:[%s352 + $0x410] sm:$0xff]
        %v1235 = vld [vmem:[%s352 + $0x418] sm:$0xff]
        %v1236 = vld [vmem:[%s352 + $0x420] sm:$0xff]
        %v1237 = vld [vmem:[%s352 + $0x428] sm:$0xff]
        %v1238 = vld [vmem:[%s352 + $0x430] sm:$0xff]
        %v1239 = vld [vmem:[%s352 + $0x438] sm:$0xff]
        %v1240 = vld [vmem:[%s352 + $0x440] sm:$0xff]
        %v1241 = vld [vmem:[%s352 + $0x448] sm:$0xff]
        %v1242 = vld [vmem:[%s352 + $0x450] sm:$0xff]
        %v1243 = vld [vmem:[%s352 + $0x458] sm:$0xff]
        %v1244 = vld [vmem:[%s352 + $0x460] sm:$0xff]
        %v1245 = vld [vmem:[%s352 + $0x468] sm:$0xff]
        %v1246 = vld [vmem:[%s352 + $0x470] sm:$0xff]
        %v1247 = vld [vmem:[%s352 + $0x478] sm:$0xff]
        %v1248 = vld [vmem:[%s352 + $0x480] sm:$0xff]
        %v1249 = vld [vmem:[%s352 + $0x488] sm:$0xff]
        %v1250 = vld [vmem:[%s352 + $0x490] sm:$0xff]
        %v1251 = vld [vmem:[%s352 + $0x498] sm:$0xff]
        %v1252 = vld [vmem:[%s352 + $0x4a0] sm:$0xff]
        %v1253 = vld [vmem:[%s352 + $0x4a8] sm:$0xff]
        %v1254 = vld [vmem:[%s352 + $0x4b0] sm:$0xff]
        %v1255 = vld [vmem:[%s352 + $0x4b8] sm:$0xff]
        %v1256 = vld [vmem:[%s352 + $0x4c0] sm:$0xff]
        %v1257 = vld [vmem:[%s352 + $0x4c8] sm:$0xff]
        %v1258 = vld [vmem:[%s352 + $0x4d0] sm:$0xff]
        %v1259 = vld [vmem:[%s352 + $0x4d8] sm:$0xff]
        %v1260 = vld [vmem:[%s352 + $0x4e0] sm:$0xff]
        %v1261 = vld [vmem:[%s352 + $0x4e8] sm:$0xff]
        %v1262 = vld [vmem:[%s352 + $0x4f0] sm:$0xff]
        %v1263 = vld [vmem:[%s352 + $0x4f8] sm:$0xff]
        %v1264 = vld [vmem:[%s352 + $0x500] sm:$0xff]
        %v1265 = vld [vmem:[%s352 + $0x508] sm:$0xff]
        %v1266 = vld [vmem:[%s352 + $0x510] sm:$0xff]
        %v1267 = vld [vmem:[%s352 + $0x518] sm:$0xff]
        %v1268 = vld [vmem:[%s352 + $0x520] sm:$0xff]
        %v1269 = vld [vmem:[%s352 + $0x528] sm:$0xff]
        %v1270 = vld [vmem:[%s352 + $0x530] sm:$0xff]
        %v1271 = vld [vmem:[%s352 + $0x538] sm:$0xff]
        %v1272 = vld [vmem:[%s352 + $0x540] sm:$0xff]
        %v1273 = vld [vmem:[%s352 + $0x548] sm:$0xff]
        %v1274 = vld [vmem:[%s352 + $0x550] sm:$0xff]
        %v1275 = vld [vmem:[%s352 + $0x558] sm:$0xff]
        %v1276 = vld [vmem:[%s352 + $0x560] sm:$0xff]
        %v1277 = vld [vmem:[%s352 + $0x568] sm:$0xff]
        %v1278 = vld [vmem:[%s352 + $0x570] sm:$0xff]
        %v1279 = vld [vmem:[%s352 + $0x578] sm:$0xff]
        %v1280 = vld [vmem:[%s352 + $0x580] sm:$0xff]
        %v1281 = vld [vmem:[%s352 + $0x588] sm:$0xff]
        %v1282 = vld [vmem:[%s352 + $0x590] sm:$0xff]
        %v1283 = vld [vmem:[%s352 + $0x598] sm:$0xff]
        %v1284 = vld [vmem:[%s352 + $0x5a0] sm:$0xff]
        %v1285 = vld [vmem:[%s352 + $0x5a8] sm:$0xff]
        %v1286 = vld [vmem:[%s352 + $0x5b0] sm:$0xff]
        %v1287 = vld [vmem:[%s352 + $0x5b8] sm:$0xff]
        %v1288 = vld [vmem:[%s352 + $0x5c0] sm:$0xff]
        %v1289 = vld [vmem:[%s352 + $0x5c8] sm:$0xff]
        %v1290 = vld [vmem:[%s352 + $0x5d0] sm:$0xff]
        %v1291 = vld [vmem:[%s352 + $0x5d8] sm:$0xff]
        %v1292 = vld [vmem:[%s352 + $0x5e0] sm:$0xff]
        %v1293 = vld [vmem:[%s352 + $0x5e8] sm:$0xff]
        %v1294 = vld [vmem:[%s352 + $0x5f0] sm:$0xff]
        %v1295 = vld [vmem:[%s352 + $0x5f8] sm:$0xff]
        %v1296 = vld [vmem:[%s352 + $0x600] sm:$0xff]
        %v1297 = vld [vmem:[%s352 + $0x608] sm:$0xff]
        %v1298 = vld [vmem:[%s352 + $0x610] sm:$0xff]
        %v1299 = vld [vmem:[%s352 + $0x618] sm:$0xff]
        %v1300 = vld [vmem:[%s352 + $0x620] sm:$0xff]
        %v1301 = vld [vmem:[%s352 + $0x628] sm:$0xff]
        %v1302 = vld [vmem:[%s352 + $0x630] sm:$0xff]
        %v1303 = vld [vmem:[%s352 + $0x638] sm:$0xff]
        %v1304 = vld [vmem:[%s352 + $0x640] sm:$0xff]
        %v1305 = vld [vmem:[%s352 + $0x648] sm:$0xff]
        %v1306 = vld [vmem:[%s352 + $0x650] sm:$0xff]
        %v1307 = vld [vmem:[%s352 + $0x658] sm:$0xff]
        %v1308 = vld [vmem:[%s352 + $0x660] sm:$0xff]
        %v1309 = vld [vmem:[%s352 + $0x668] sm:$0xff]
        %v1310 = vld [vmem:[%s352 + $0x670] sm:$0xff]
        %v1311 = vld [vmem:[%s352 + $0x678] sm:$0xff]
        %v1312 = vld [vmem:[%s352 + $0x680] sm:$0xff]
        %v1313 = vld [vmem:[%s352 + $0x688] sm:$0xff]
        %v1314 = vld [vmem:[%s352 + $0x690] sm:$0xff]
        %v1315 = vld [vmem:[%s352 + $0x698] sm:$0xff]
        %v1316 = vld [vmem:[%s352 + $0x6a0] sm:$0xff]
        %v1317 = vld [vmem:[%s352 + $0x6a8] sm:$0xff]
        %v1318 = vld [vmem:[%s352 + $0x6b0] sm:$0xff]
        %v1319 = vld [vmem:[%s352 + $0x6b8] sm:$0xff]
        %v1320 = vld [vmem:[%s352 + $0x6c0] sm:$0xff]
        %v1321 = vld [vmem:[%s352 + $0x6c8] sm:$0xff]
        %v1322 = vld [vmem:[%s352 + $0x6d0] sm:$0xff]
        %v1323 = vld [vmem:[%s352 + $0x6d8] sm:$0xff]
        %v1324 = vld [vmem:[%s352 + $0x6e0] sm:$0xff]
        %v1325 = vld [vmem:[%s352 + $0x6e8] sm:$0xff]
        %v1326 = vld [vmem:[%s352 + $0x6f0] sm:$0xff]
        %v1327 = vld [vmem:[%s352 + $0x6f8] sm:$0xff]
        %v1328 = vld [vmem:[%s352 + $0x700] sm:$0xff]
        %v1329 = vld [vmem:[%s352 + $0x708] sm:$0xff]
        %v1330 = vld [vmem:[%s352 + $0x710] sm:$0xff]
        %v1331 = vld [vmem:[%s352 + $0x718] sm:$0xff]
        %v1332 = vld [vmem:[%s352 + $0x720] sm:$0xff]
        %v1333 = vld [vmem:[%s352 + $0x728] sm:$0xff]
        %v1334 = vld [vmem:[%s352 + $0x730] sm:$0xff]
        %v1335 = vld [vmem:[%s352 + $0x738] sm:$0xff]
        %v1336 = vld [vmem:[%s352 + $0x740] sm:$0xff]
        %v1337 = vld [vmem:[%s352 + $0x748] sm:$0xff]
        %v1338 = vld [vmem:[%s352 + $0x750] sm:$0xff]
        %v1339 = vld [vmem:[%s352 + $0x758] sm:$0xff]
        %v1340 = vld [vmem:[%s352 + $0x760] sm:$0xff]
        %v1341 = vld [vmem:[%s352 + $0x768] sm:$0xff]
        %v1342 = vld [vmem:[%s352 + $0x770] sm:$0xff]
        %v1343 = vld [vmem:[%s352 + $0x778] sm:$0xff]
        %v1344 = vld [vmem:[%s352 + $0x780] sm:$0xff]
        %v1345 = vld [vmem:[%s352 + $0x788] sm:$0xff]
        %v1346 = vld [vmem:[%s352 + $0x790] sm:$0xff]
        %v1347 = vld [vmem:[%s352 + $0x798] sm:$0xff]
        %v1348 = vld [vmem:[%s352 + $0x7a0] sm:$0xff]
        %v1349 = vld [vmem:[%s352 + $0x7a8] sm:$0xff]
        %v1350 = vld [vmem:[%s352 + $0x7b0] sm:$0xff]
        %v1351 = vld [vmem:[%s352 + $0x7b8] sm:$0xff]
        %v1352 = vld [vmem:[%s352 + $0x7c0] sm:$0xff]
        %v1353 = vld [vmem:[%s352 + $0x7c8] sm:$0xff]
        %v1354 = vld [vmem:[%s352 + $0x7d0] sm:$0xff]
        %v1355 = vld [vmem:[%s352 + $0x7d8] sm:$0xff]
        %v1356 = vld [vmem:[%s352 + $0x7e0] sm:$0xff]
        %v1357 = vld [vmem:[%s352 + $0x7e8] sm:$0xff]
        %v1358 = vld [vmem:[%s352 + $0x7f0] sm:$0xff]
        %v1359 = vld [vmem:[%s352 + $0x7f8] sm:$0xff]
        %v1360 = vld [vmem:[%s352 + $0x800] sm:$0xff]
        %v1361 = vld [vmem:[%s352 + $0x808] sm:$0xff]
        %v1362 = vld [vmem:[%s352 + $0x810] sm:$0xff]
        %v1363 = vld [vmem:[%s352 + $0x818] sm:$0xff]
        %v1364 = vld [vmem:[%s352 + $0x820] sm:$0xff]
        %v1365 = vld [vmem:[%s352 + $0x828] sm:$0xff]
        %v1366 = vld [vmem:[%s352 + $0x830] sm:$0xff]
        %v1367 = vld [vmem:[%s352 + $0x838] sm:$0xff]
        %v1368 = vld [vmem:[%s352 + $0x840] sm:$0xff]
        %v1369 = vld [vmem:[%s352 + $0x848] sm:$0xff]
        %v1370 = vld [vmem:[%s352 + $0x850] sm:$0xff]
        %v1371 = vld [vmem:[%s352 + $0x858] sm:$0xff]
        %v1372 = vld [vmem:[%s352 + $0x860] sm:$0xff]
        %v1373 = vld [vmem:[%s352 + $0x868] sm:$0xff]
        %v1374 = vld [vmem:[%s352 + $0x870] sm:$0xff]
        %v1375 = vld [vmem:[%s352 + $0x878] sm:$0xff]
        %v1376 = vld [vmem:[%s352 + $0x880] sm:$0xff]
        %v1377 = vld [vmem:[%s352 + $0x888] sm:$0xff]
        %v1378 = vld [vmem:[%s352 + $0x890] sm:$0xff]
        %v1379 = vld [vmem:[%s352 + $0x898] sm:$0xff]
        %v1380 = vld [vmem:[%s352 + $0x8a0] sm:$0xff]
        %v1381 = vld [vmem:[%s352 + $0x8a8] sm:$0xff]
        %v1382 = vld [vmem:[%s352 + $0x8b0] sm:$0xff]
        %v1383 = vld [vmem:[%s352 + $0x8b8] sm:$0xff]
        %v1384 = vld [vmem:[%s352 + $0x8c0] sm:$0xff]
        %v1385 = vld [vmem:[%s352 + $0x8c8] sm:$0xff]
        %v1386 = vld [vmem:[%s352 + $0x8d0] sm:$0xff]
        %v1387 = vld [vmem:[%s352 + $0x8d8] sm:$0xff]
        %v1388 = vld [vmem:[%s352 + $0x8e0] sm:$0xff]
        %v1389 = vld [vmem:[%s352 + $0x8e8] sm:$0xff]
        %v1390 = vld [vmem:[%s352 + $0x8f0] sm:$0xff]
        %v1391 = vld [vmem:[%s352 + $0x8f8] sm:$0xff]
        %v1392 = vld [vmem:[%s352 + $0x900] sm:$0xff]
        %v1393 = vld [vmem:[%s352 + $0x908] sm:$0xff]
        %v1394 = vld [vmem:[%s352 + $0x910] sm:$0xff]
        %v1395 = vld [vmem:[%s352 + $0x918] sm:$0xff]
        %v1396 = vld [vmem:[%s352 + $0x920] sm:$0xff]
        %v1397 = vld [vmem:[%s352 + $0x928] sm:$0xff]
        %v1398 = vld [vmem:[%s352 + $0x930] sm:$0xff]
        %v1399 = vld [vmem:[%s352 + $0x938] sm:$0xff]
        %v1400 = vld [vmem:[%s352 + $0x940] sm:$0xff]
        %v1401 = vld [vmem:[%s352 + $0x948] sm:$0xff]
        %v1402 = vld [vmem:[%s352 + $0x950] sm:$0xff]
        %v1403 = vld [vmem:[%s352 + $0x958] sm:$0xff]
        %v1404 = vld [vmem:[%s352 + $0x960] sm:$0xff]
        %v1405 = vld [vmem:[%s352 + $0x968] sm:$0xff]
        %v1406 = vld [vmem:[%s352 + $0x970] sm:$0xff]
        %v1407 = vld [vmem:[%s352 + $0x978] sm:$0xff]
        %v1408 = vld [vmem:[%s352 + $0x980] sm:$0xff]
        %v1409 = vld [vmem:[%s352 + $0x988] sm:$0xff]
        %v1410 = vld [vmem:[%s352 + $0x990] sm:$0xff]
        %v1411 = vld [vmem:[%s352 + $0x998] sm:$0xff]
        %v1412 = vld [vmem:[%s352 + $0x9a0] sm:$0xff]
        %v1413 = vld [vmem:[%s352 + $0x9a8] sm:$0xff]
        %v1414 = vld [vmem:[%s352 + $0x9b0] sm:$0xff]
        %v1415 = vld [vmem:[%s352 + $0x9b8] sm:$0xff]
        %v1416 = vld [vmem:[%s352 + $0x9c0] sm:$0xff]
        %v1417 = vld [vmem:[%s352 + $0x9c8] sm:$0xff]
        %v1418 = vld [vmem:[%s352 + $0x9d0] sm:$0xff]
        %v1419 = vld [vmem:[%s352 + $0x9d8] sm:$0xff]
        %v1420 = vld [vmem:[%s352 + $0x9e0] sm:$0xff]
        %v1421 = vld [vmem:[%s352 + $0x9e8] sm:$0xff]
        %v1422 = vld [vmem:[%s352 + $0x9f0] sm:$0xff]
        %v1423 = vld [vmem:[%s352 + $0x9f8] sm:$0xff]
        %v1424 = vld [vmem:[%s352 + $0xa00] sm:$0xff]
        %v1425 = vld [vmem:[%s352 + $0xa08] sm:$0xff]
        %v1426 = vld [vmem:[%s352 + $0xa10] sm:$0xff]
        %v1427 = vld [vmem:[%s352 + $0xa18] sm:$0xff]
        %v1428 = vld [vmem:[%s352 + $0xa20] sm:$0xff]
        %v1429 = vld [vmem:[%s352 + $0xa28] sm:$0xff]
        %v1430 = vld [vmem:[%s352 + $0xa30] sm:$0xff]
        %v1431 = vld [vmem:[%s352 + $0xa38] sm:$0xff]
        %v1432 = vld [vmem:[%s352 + $0xa40] sm:$0xff]
        %v1433 = vld [vmem:[%s352 + $0xa48] sm:$0xff]
        %v1434 = vld [vmem:[%s352 + $0xa50] sm:$0xff]
        %v1435 = vld [vmem:[%s352 + $0xa58] sm:$0xff]
        %v1436 = vld [vmem:[%s352 + $0xa60] sm:$0xff]
        %v1437 = vld [vmem:[%s352 + $0xa68] sm:$0xff]
        %v1438 = vld [vmem:[%s352 + $0xa70] sm:$0xff]
        %v1439 = vld [vmem:[%s352 + $0xa78] sm:$0xff]
        %v1440 = vld [vmem:[%s352 + $0xa80] sm:$0xff]
        %v1441 = vld [vmem:[%s352 + $0xa88] sm:$0xff]
        %v1442 = vld [vmem:[%s352 + $0xa90] sm:$0xff]
        %v1443 = vld [vmem:[%s352 + $0xa98] sm:$0xff]
        %v1444 = vld [vmem:[%s352 + $0xaa0] sm:$0xff]
        %v1445 = vld [vmem:[%s352 + $0xaa8] sm:$0xff]
        %v1446 = vld [vmem:[%s352 + $0xab0] sm:$0xff]
        %v1447 = vld [vmem:[%s352 + $0xab8] sm:$0xff]
        %v1448 = vld [vmem:[%s352 + $0xac0] sm:$0xff]
        %v1449 = vld [vmem:[%s352 + $0xac8] sm:$0xff]
        %v1450 = vld [vmem:[%s352 + $0xad0] sm:$0xff]
        %v1451 = vld [vmem:[%s352 + $0xad8] sm:$0xff]
        %v1452 = vld [vmem:[%s352 + $0xae0] sm:$0xff]
        %v1453 = vld [vmem:[%s352 + $0xae8] sm:$0xff]
        %v1454 = vld [vmem:[%s352 + $0xaf0] sm:$0xff]
        %v1455 = vld [vmem:[%s352 + $0xaf8] sm:$0xff]
        %v1456 = vld [vmem:[%s352 + $0xb00] sm:$0xff]
        %v1457 = vld [vmem:[%s352 + $0xb08] sm:$0xff]
        %v1458 = vld [vmem:[%s352 + $0xb10] sm:$0xff]
        %v1459 = vld [vmem:[%s352 + $0xb18] sm:$0xff]
        %v1460 = vld [vmem:[%s352 + $0xb20] sm:$0xff]
        %v1461 = vld [vmem:[%s352 + $0xb28] sm:$0xff]
        %v1462 = vld [vmem:[%s352 + $0xb30] sm:$0xff]
        %v1463 = vld [vmem:[%s352 + $0xb38] sm:$0xff]
        %v1464 = vld [vmem:[%s352 + $0xb40] sm:$0xff]
        %v1465 = vld [vmem:[%s352 + $0xb48] sm:$0xff]
        %v1466 = vld [vmem:[%s352 + $0xb50] sm:$0xff]
        %v1467 = vld [vmem:[%s352 + $0xb58] sm:$0xff]
        %v1468 = vld [vmem:[%s352 + $0xb60] sm:$0xff]
        %v1469 = vld [vmem:[%s352 + $0xb68] sm:$0xff]
        %v1470 = vld [vmem:[%s352 + $0xb70] sm:$0xff]
        %v1471 = vld [vmem:[%s352 + $0xb78] sm:$0xff]
        %v1472 = vld [vmem:[%s352 + $0xb80] sm:$0xff]
        %v1473 = vld [vmem:[%s352 + $0xb88] sm:$0xff]
        %v1474 = vld [vmem:[%s352 + $0xb90] sm:$0xff]
        %v1475 = vld [vmem:[%s352 + $0xb98] sm:$0xff]
        %v1476 = vld [vmem:[%s352 + $0xba0] sm:$0xff]
        %v1477 = vld [vmem:[%s352 + $0xba8] sm:$0xff]
        %v1478 = vld [vmem:[%s352 + $0xbb0] sm:$0xff]
        %v1479 = vld [vmem:[%s352 + $0xbb8] sm:$0xff]
        %v1480 = vld [vmem:[%s352 + $0xbc0] sm:$0xff]
        %v1481 = vld [vmem:[%s352 + $0xbc8] sm:$0xff]
        %v1482 = vld [vmem:[%s352 + $0xbd0] sm:$0xff]
        %v1483 = vld [vmem:[%s352 + $0xbd8] sm:$0xff]
        %v1484 = vld [vmem:[%s352 + $0xbe0] sm:$0xff]
        %v1485 = vld [vmem:[%s352 + $0xbe8] sm:$0xff]
        %v1486 = vld [vmem:[%s352 + $0xbf0] sm:$0xff]
        %v1487 = vld [vmem:[%s352 + $0xbf8] sm:$0xff]
        %v1488 = vld [vmem:[%s352 + $0xc00] sm:$0xff]
        %v1489 = vld [vmem:[%s352 + $0xc08] sm:$0xff]
        %v1490 = vld [vmem:[%s352 + $0xc10] sm:$0xff]
        %v1491 = vld [vmem:[%s352 + $0xc18] sm:$0xff]
        %v1492 = vld [vmem:[%s352 + $0xc20] sm:$0xff]
        %v1493 = vld [vmem:[%s352 + $0xc28] sm:$0xff]
        %v1494 = vld [vmem:[%s352 + $0xc30] sm:$0xff]
        %v1495 = vld [vmem:[%s352 + $0xc38] sm:$0xff]
        %v1496 = vld [vmem:[%s352 + $0xc40] sm:$0xff]
        %v1497 = vld [vmem:[%s352 + $0xc48] sm:$0xff]
        %v1498 = vld [vmem:[%s352 + $0xc50] sm:$0xff]
        %v1499 = vld [vmem:[%s352 + $0xc58] sm:$0xff]
        %v1500 = vld [vmem:[%s352 + $0xc60] sm:$0xff]
        %v1501 = vld [vmem:[%s352 + $0xc68] sm:$0xff]
        %v1502 = vld [vmem:[%s352 + $0xc70] sm:$0xff]
        %v1503 = vld [vmem:[%s352 + $0xc78] sm:$0xff]
        %v1504 = vld [vmem:[%s352 + $0xc80] sm:$0xff]
        %v1505 = vld [vmem:[%s352 + $0xc88] sm:$0xff]
        %v1506 = vld [vmem:[%s352 + $0xc90] sm:$0xff]
        %v1507 = vld [vmem:[%s352 + $0xc98] sm:$0xff]
        %v1508 = vld [vmem:[%s352 + $0xca0] sm:$0xff]
        %v1509 = vld [vmem:[%s352 + $0xca8] sm:$0xff]
        %v1510 = vld [vmem:[%s352 + $0xcb0] sm:$0xff]
        %v1511 = vld [vmem:[%s352 + $0xcb8] sm:$0xff]
        %v1512 = vld [vmem:[%s352 + $0xcc0] sm:$0xff]
        %v1513 = vld [vmem:[%s352 + $0xcc8] sm:$0xff]
        %v1514 = vld [vmem:[%s352 + $0xcd0] sm:$0xff]
        %v1515 = vld [vmem:[%s352 + $0xcd8] sm:$0xff]
        %v1516 = vld [vmem:[%s352 + $0xce0] sm:$0xff]
        %v1517 = vld [vmem:[%s352 + $0xce8] sm:$0xff]
        %v1518 = vld [vmem:[%s352 + $0xcf0] sm:$0xff]
        %v1519 = vld [vmem:[%s352 + $0xcf8] sm:$0xff]
        %v1520 = vld [vmem:[%s352 + $0xd00] sm:$0xff]
        %v1521 = vld [vmem:[%s352 + $0xd08] sm:$0xff]
        %v1522 = vld [vmem:[%s352 + $0xd10] sm:$0xff]
        %v1523 = vld [vmem:[%s352 + $0xd18] sm:$0xff]
        %v1524 = vld [vmem:[%s352 + $0xd20] sm:$0xff]
        %v1525 = vld [vmem:[%s352 + $0xd28] sm:$0xff]
        %v1526 = vld [vmem:[%s352 + $0xd30] sm:$0xff]
        %v1527 = vld [vmem:[%s352 + $0xd38] sm:$0xff]
        %v1528 = vld [vmem:[%s352 + $0xd40] sm:$0xff]
        %v1529 = vld [vmem:[%s352 + $0xd48] sm:$0xff]
        %v1530 = vld [vmem:[%s352 + $0xd50] sm:$0xff]
        %v1531 = vld [vmem:[%s352 + $0xd58] sm:$0xff]
        %v1532 = vld [vmem:[%s352 + $0xd60] sm:$0xff]
        %v1533 = vld [vmem:[%s352 + $0xd68] sm:$0xff]
        %v1534 = vld [vmem:[%s352 + $0xd70] sm:$0xff]
        %v1535 = vld [vmem:[%s352 + $0xd78] sm:$0xff]
        %v1536 = vld [vmem:[%s352 + $0xd80] sm:$0xff]
        %v1537 = vld [vmem:[%s352 + $0xd88] sm:$0xff]
        %v1538 = vld [vmem:[%s352 + $0xd90] sm:$0xff]
        %v1539 = vld [vmem:[%s352 + $0xd98] sm:$0xff]
        %v1540 = vld [vmem:[%s352 + $0xda0] sm:$0xff]
        %v1541 = vld [vmem:[%s352 + $0xda8] sm:$0xff]
        %v1542 = vld [vmem:[%s352 + $0xdb0] sm:$0xff]
        %v1543 = vld [vmem:[%s352 + $0xdb8] sm:$0xff]
        %v1544 = vld [vmem:[%s352 + $0xdc0] sm:$0xff]
        %v1545 = vld [vmem:[%s352 + $0xdc8] sm:$0xff]
        %v1546 = vld [vmem:[%s352 + $0xdd0] sm:$0xff]
        %v1547 = vld [vmem:[%s352 + $0xdd8] sm:$0xff]
        %v1548 = vld [vmem:[%s352 + $0xde0] sm:$0xff]
        %v1549 = vld [vmem:[%s352 + $0xde8] sm:$0xff]
        %v1550 = vld [vmem:[%s352 + $0xdf0] sm:$0xff]
        %v1551 = vld [vmem:[%s352 + $0xdf8] sm:$0xff]
        %v1552 = vld [vmem:[%s352 + $0xe00] sm:$0xff]
        %v1553 = vld [vmem:[%s352 + $0xe08] sm:$0xff]
        %v1554 = vld [vmem:[%s352 + $0xe10] sm:$0xff]
        %v1555 = vld [vmem:[%s352 + $0xe18] sm:$0xff]
        %v1556 = vld [vmem:[%s352 + $0xe20] sm:$0xff]
        %v1557 = vld [vmem:[%s352 + $0xe28] sm:$0xff]
        %v1558 = vld [vmem:[%s352 + $0xe30] sm:$0xff]
        %v1559 = vld [vmem:[%s352 + $0xe38] sm:$0xff]
        %v1560 = vld [vmem:[%s352 + $0xe40] sm:$0xff]
        %v1561 = vld [vmem:[%s352 + $0xe48] sm:$0xff]
        %v1562 = vld [vmem:[%s352 + $0xe50] sm:$0xff]
        %v1563 = vld [vmem:[%s352 + $0xe58] sm:$0xff]
        %v1564 = vld [vmem:[%s352 + $0xe60] sm:$0xff]
        %v1565 = vld [vmem:[%s352 + $0xe68] sm:$0xff]
        %v1566 = vld [vmem:[%s352 + $0xe70] sm:$0xff]
        %v1567 = vld [vmem:[%s352 + $0xe78] sm:$0xff]
        %v1568 = vld [vmem:[%s352 + $0xe80] sm:$0xff]
        %v1569 = vld [vmem:[%s352 + $0xe88] sm:$0xff]
        %v1570 = vld [vmem:[%s352 + $0xe90] sm:$0xff]
        %v1571 = vld [vmem:[%s352 + $0xe98] sm:$0xff]
        %v1572 = vld [vmem:[%s352 + $0xea0] sm:$0xff]
        %v1573 = vld [vmem:[%s352 + $0xea8] sm:$0xff]
        %v1574 = vld [vmem:[%s352 + $0xeb0] sm:$0xff]
        %v1575 = vld [vmem:[%s352 + $0xeb8] sm:$0xff]
        %v1576 = vld [vmem:[%s352 + $0xec0] sm:$0xff]
        %v1577 = vld [vmem:[%s352 + $0xec8] sm:$0xff]
        %v1578 = vld [vmem:[%s352 + $0xed0] sm:$0xff]
        %v1579 = vld [vmem:[%s352 + $0xed8] sm:$0xff]
        %v1580 = vld [vmem:[%s352 + $0xee0] sm:$0xff]
        %v1581 = vld [vmem:[%s352 + $0xee8] sm:$0xff]
        %v1582 = vld [vmem:[%s352 + $0xef0] sm:$0xff]
        %v1583 = vld [vmem:[%s352 + $0xef8] sm:$0xff]
        %v1584 = vld [vmem:[%s352 + $0xf00] sm:$0xff]
        %v1585 = vld [vmem:[%s352 + $0xf08] sm:$0xff]
        %v1586 = vld [vmem:[%s352 + $0xf10] sm:$0xff]
        %v1587 = vld [vmem:[%s352 + $0xf18] sm:$0xff]
        %v1588 = vld [vmem:[%s352 + $0xf20] sm:$0xff]
        %v1589 = vld [vmem:[%s352 + $0xf28] sm:$0xff]
        %v1590 = vld [vmem:[%s352 + $0xf30] sm:$0xff]
        %v1591 = vld [vmem:[%s352 + $0xf38] sm:$0xff]
        %v1592 = vld [vmem:[%s352 + $0xf40] sm:$0xff]
        %v1593 = vld [vmem:[%s352 + $0xf48] sm:$0xff]
        %v1594 = vld [vmem:[%s352 + $0xf50] sm:$0xff]
        %v1595 = vld [vmem:[%s352 + $0xf58] sm:$0xff]
        %v1596 = vld [vmem:[%s352 + $0xf60] sm:$0xff]
        %v1597 = vld [vmem:[%s352 + $0xf68] sm:$0xff]
        %v1598 = vld [vmem:[%s352 + $0xf70] sm:$0xff]
        %v1599 = vld [vmem:[%s352 + $0xf78] sm:$0xff]
        %v1600 = vld [vmem:[%s352 + $0xf80] sm:$0xff]
        %v1601 = vld [vmem:[%s352 + $0xf88] sm:$0xff]
        %v1602 = vld [vmem:[%s352 + $0xf90] sm:$0xff]
        %v1603 = vld [vmem:[%s352 + $0xf98] sm:$0xff]
        %v1604 = vld [vmem:[%s352 + $0xfa0] sm:$0xff]
        %v1605 = vld [vmem:[%s352 + $0xfa8] sm:$0xff]
        %v1606 = vld [vmem:[%s352 + $0xfb0] sm:$0xff]
        %v1607 = vld [vmem:[%s352 + $0xfb8] sm:$0xff]
        %v1608 = vld [vmem:[%s352 + $0xfc0] sm:$0xff]
        %v1609 = vld [vmem:[%s352 + $0xfc8] sm:$0xff]
        %v1610 = vld [vmem:[%s352 + $0xfd0] sm:$0xff]
        %v1611 = vld [vmem:[%s352 + $0xfd8] sm:$0xff]
        %v1612 = vld [vmem:[%s352 + $0xfe0] sm:$0xff]
        %v1613 = vld [vmem:[%s352 + $0xfe8] sm:$0xff]
        %v1614 = vld [vmem:[%s352 + $0xff0] sm:$0xff]
        %v1615 = vld [vmem:[%s352 + $0xff8] sm:$0xff]
        %v1616 = vld [vmem:[%s361] sm:$0xf]
        %v1618 = vlaneseq
        %v1619 = vshrl.u32 %v1618, 7
        %v1620 = vsub.s32 0, %v1619
        %v1621 = vrot.slane %v1616, %v1620
        %v1622 = vlaneseq
        %v1623 = vshrl.u32 %v1622, 7
        %v1624 = vsub.s32 1, %v1623
        %v1625 = vrot.slane %v1616, %v1624
        %v1626 = vlaneseq
        %v1627 = vshrl.u32 %v1626, 7
        %v1628 = vsub.s32 2, %v1627
        %v1629 = vrot.slane %v1616, %v1628
        %v1630 = vlaneseq
        %v1631 = vshrl.u32 %v1630, 7
        %v1632 = vsub.s32 3, %v1631
        %v1633 = vrot.slane %v1616, %v1632
        %v2150 = vunpack.c.l.b16 %v1104
        %v2151 = vunpack.c.h.b16 %v1104
        %v2152 = vunpack.c.l.b16 %v1105
        %v2153 = vunpack.c.h.b16 %v1105
        %v2154 = vunpack.c.l.b16 %v1106
        %v2155 = vunpack.c.h.b16 %v1106
        %v2156 = vunpack.c.l.b16 %v1107
        %v2157 = vunpack.c.h.b16 %v1107
        %v2158 = vunpack.c.l.b16 %v1108
        %v2159 = vunpack.c.h.b16 %v1108
        %v2160 = vunpack.c.l.b16 %v1109
        %v2161 = vunpack.c.h.b16 %v1109
        %v2162 = vunpack.c.l.b16 %v1110
        %v2163 = vunpack.c.h.b16 %v1110
        %v2164 = vunpack.c.l.b16 %v1111
        %v2165 = vunpack.c.h.b16 %v1111
        %v2166 = vunpack.c.l.b16 %v1112
        %v2167 = vunpack.c.h.b16 %v1112
        %v2168 = vunpack.c.l.b16 %v1113
        %v2169 = vunpack.c.h.b16 %v1113
        %v2170 = vunpack.c.l.b16 %v1114
        %v2171 = vunpack.c.h.b16 %v1114
        %v2172 = vunpack.c.l.b16 %v1115
        %v2173 = vunpack.c.h.b16 %v1115
        %v2174 = vunpack.c.l.b16 %v1116
        %v2175 = vunpack.c.h.b16 %v1116
        %v2176 = vunpack.c.l.b16 %v1117
        %v2177 = vunpack.c.h.b16 %v1117
        %v2178 = vunpack.c.l.b16 %v1118
        %v2179 = vunpack.c.h.b16 %v1118
        %v2180 = vunpack.c.l.b16 %v1119
        %v2181 = vunpack.c.h.b16 %v1119
        %v2182 = vunpack.c.l.b16 %v1120
        %v2183 = vunpack.c.h.b16 %v1120
        %v2184 = vunpack.c.l.b16 %v1121
        %v2185 = vunpack.c.h.b16 %v1121
        %v2186 = vunpack.c.l.b16 %v1122
        %v2187 = vunpack.c.h.b16 %v1122
        %v2188 = vunpack.c.l.b16 %v1123
        %v2189 = vunpack.c.h.b16 %v1123
        %v2190 = vunpack.c.l.b16 %v1124
        %v2191 = vunpack.c.h.b16 %v1124
        %v2192 = vunpack.c.l.b16 %v1125
        %v2193 = vunpack.c.h.b16 %v1125
        %v2194 = vunpack.c.l.b16 %v1126
        %v2195 = vunpack.c.h.b16 %v1126
        %v2196 = vunpack.c.l.b16 %v1127
        %v2197 = vunpack.c.h.b16 %v1127
        %v2198 = vunpack.c.l.b16 %v1128
        %v2199 = vunpack.c.h.b16 %v1128
        %v2200 = vunpack.c.l.b16 %v1129
        %v2201 = vunpack.c.h.b16 %v1129
        %v2202 = vunpack.c.l.b16 %v1130
        %v2203 = vunpack.c.h.b16 %v1130
        %v2204 = vunpack.c.l.b16 %v1131
        %v2205 = vunpack.c.h.b16 %v1131
        %v2206 = vunpack.c.l.b16 %v1132
        %v2207 = vunpack.c.h.b16 %v1132
        %v2208 = vunpack.c.l.b16 %v1133
        %v2209 = vunpack.c.h.b16 %v1133
        %v2210 = vunpack.c.l.b16 %v1134
        %v2211 = vunpack.c.h.b16 %v1134
        %v2212 = vunpack.c.l.b16 %v1135
        %v2213 = vunpack.c.h.b16 %v1135
        %v2214 = vunpack.c.l.b16 %v1136
        %v2215 = vunpack.c.h.b16 %v1136
        %v2216 = vunpack.c.l.b16 %v1137
        %v2217 = vunpack.c.h.b16 %v1137
        %v2218 = vunpack.c.l.b16 %v1138
        %v2219 = vunpack.c.h.b16 %v1138
        %v2220 = vunpack.c.l.b16 %v1139
        %v2221 = vunpack.c.h.b16 %v1139
        %v2222 = vunpack.c.l.b16 %v1140
        %v2223 = vunpack.c.h.b16 %v1140
        %v2224 = vunpack.c.l.b16 %v1141
        %v2225 = vunpack.c.h.b16 %v1141
        %v2226 = vunpack.c.l.b16 %v1142
        %v2227 = vunpack.c.h.b16 %v1142
        %v2228 = vunpack.c.l.b16 %v1143
        %v2229 = vunpack.c.h.b16 %v1143
        %v2230 = vunpack.c.l.b16 %v1144
        %v2231 = vunpack.c.h.b16 %v1144
        %v2232 = vunpack.c.l.b16 %v1145
        %v2233 = vunpack.c.h.b16 %v1145
        %v2234 = vunpack.c.l.b16 %v1146
        %v2235 = vunpack.c.h.b16 %v1146
        %v2236 = vunpack.c.l.b16 %v1147
        %v2237 = vunpack.c.h.b16 %v1147
        %v2238 = vunpack.c.l.b16 %v1148
        %v2239 = vunpack.c.h.b16 %v1148
        %v2240 = vunpack.c.l.b16 %v1149
        %v2241 = vunpack.c.h.b16 %v1149
        %v2242 = vunpack.c.l.b16 %v1150
        %v2243 = vunpack.c.h.b16 %v1150
        %v2244 = vunpack.c.l.b16 %v1151
        %v2245 = vunpack.c.h.b16 %v1151
        %v2246 = vunpack.c.l.b16 %v1152
        %v2247 = vunpack.c.h.b16 %v1152
        %v2248 = vunpack.c.l.b16 %v1153
        %v2249 = vunpack.c.h.b16 %v1153
        %v2250 = vunpack.c.l.b16 %v1154
        %v2251 = vunpack.c.h.b16 %v1154
        %v2252 = vunpack.c.l.b16 %v1155
        %v2253 = vunpack.c.h.b16 %v1155
        %v2254 = vunpack.c.l.b16 %v1156
        %v2255 = vunpack.c.h.b16 %v1156
        %v2256 = vunpack.c.l.b16 %v1157
        %v2257 = vunpack.c.h.b16 %v1157
        %v2258 = vunpack.c.l.b16 %v1158
        %v2259 = vunpack.c.h.b16 %v1158
        %v2260 = vunpack.c.l.b16 %v1159
        %v2261 = vunpack.c.h.b16 %v1159
        %v2262 = vunpack.c.l.b16 %v1160
        %v2263 = vunpack.c.h.b16 %v1160
        %v2264 = vunpack.c.l.b16 %v1161
        %v2265 = vunpack.c.h.b16 %v1161
        %v2266 = vunpack.c.l.b16 %v1162
        %v2267 = vunpack.c.h.b16 %v1162
        %v2268 = vunpack.c.l.b16 %v1163
        %v2269 = vunpack.c.h.b16 %v1163
        %v2270 = vunpack.c.l.b16 %v1164
        %v2271 = vunpack.c.h.b16 %v1164
        %v2272 = vunpack.c.l.b16 %v1165
        %v2273 = vunpack.c.h.b16 %v1165
        %v2274 = vunpack.c.l.b16 %v1166
        %v2275 = vunpack.c.h.b16 %v1166
        %v2276 = vunpack.c.l.b16 %v1167
        %v2277 = vunpack.c.h.b16 %v1167
        %v2278 = vunpack.c.l.b16 %v1168
        %v2279 = vunpack.c.h.b16 %v1168
        %v2280 = vunpack.c.l.b16 %v1169
        %v2281 = vunpack.c.h.b16 %v1169
        %v2282 = vunpack.c.l.b16 %v1170
        %v2283 = vunpack.c.h.b16 %v1170
        %v2284 = vunpack.c.l.b16 %v1171
        %v2285 = vunpack.c.h.b16 %v1171
        %v2286 = vunpack.c.l.b16 %v1172
        %v2287 = vunpack.c.h.b16 %v1172
        %v2288 = vunpack.c.l.b16 %v1173
        %v2289 = vunpack.c.h.b16 %v1173
        %v2290 = vunpack.c.l.b16 %v1174
        %v2291 = vunpack.c.h.b16 %v1174
        %v2292 = vunpack.c.l.b16 %v1175
        %v2293 = vunpack.c.h.b16 %v1175
        %v2294 = vunpack.c.l.b16 %v1176
        %v2295 = vunpack.c.h.b16 %v1176
        %v2296 = vunpack.c.l.b16 %v1177
        %v2297 = vunpack.c.h.b16 %v1177
        %v2298 = vunpack.c.l.b16 %v1178
        %v2299 = vunpack.c.h.b16 %v1178
        %v2300 = vunpack.c.l.b16 %v1179
        %v2301 = vunpack.c.h.b16 %v1179
        %v2302 = vunpack.c.l.b16 %v1180
        %v2303 = vunpack.c.h.b16 %v1180
        %v2304 = vunpack.c.l.b16 %v1181
        %v2305 = vunpack.c.h.b16 %v1181
        %v2306 = vunpack.c.l.b16 %v1182
        %v2307 = vunpack.c.h.b16 %v1182
        %v2308 = vunpack.c.l.b16 %v1183
        %v2309 = vunpack.c.h.b16 %v1183
        %v2310 = vunpack.c.l.b16 %v1184
        %v2311 = vunpack.c.h.b16 %v1184
        %v2312 = vunpack.c.l.b16 %v1185
        %v2313 = vunpack.c.h.b16 %v1185
        %v2314 = vunpack.c.l.b16 %v1186
        %v2315 = vunpack.c.h.b16 %v1186
        %v2316 = vunpack.c.l.b16 %v1187
        %v2317 = vunpack.c.h.b16 %v1187
        %v2318 = vunpack.c.l.b16 %v1188
        %v2319 = vunpack.c.h.b16 %v1188
        %v2320 = vunpack.c.l.b16 %v1189
        %v2321 = vunpack.c.h.b16 %v1189
        %v2322 = vunpack.c.l.b16 %v1190
        %v2323 = vunpack.c.h.b16 %v1190
        %v2324 = vunpack.c.l.b16 %v1191
        %v2325 = vunpack.c.h.b16 %v1191
        %v2326 = vunpack.c.l.b16 %v1192
        %v2327 = vunpack.c.h.b16 %v1192
        %v2328 = vunpack.c.l.b16 %v1193
        %v2329 = vunpack.c.h.b16 %v1193
        %v2330 = vunpack.c.l.b16 %v1194
        %v2331 = vunpack.c.h.b16 %v1194
        %v2332 = vunpack.c.l.b16 %v1195
        %v2333 = vunpack.c.h.b16 %v1195
        %v2334 = vunpack.c.l.b16 %v1196
        %v2335 = vunpack.c.h.b16 %v1196
        %v2336 = vunpack.c.l.b16 %v1197
        %v2337 = vunpack.c.h.b16 %v1197
        %v2338 = vunpack.c.l.b16 %v1198
        %v2339 = vunpack.c.h.b16 %v1198
        %v2340 = vunpack.c.l.b16 %v1199
        %v2341 = vunpack.c.h.b16 %v1199
        %v2342 = vunpack.c.l.b16 %v1200
        %v2343 = vunpack.c.h.b16 %v1200
        %v2344 = vunpack.c.l.b16 %v1201
        %v2345 = vunpack.c.h.b16 %v1201
        %v2346 = vunpack.c.l.b16 %v1202
        %v2347 = vunpack.c.h.b16 %v1202
        %v2348 = vunpack.c.l.b16 %v1203
        %v2349 = vunpack.c.h.b16 %v1203
        %v2350 = vunpack.c.l.b16 %v1204
        %v2351 = vunpack.c.h.b16 %v1204
        %v2352 = vunpack.c.l.b16 %v1205
        %v2353 = vunpack.c.h.b16 %v1205
        %v2354 = vunpack.c.l.b16 %v1206
        %v2355 = vunpack.c.h.b16 %v1206
        %v2356 = vunpack.c.l.b16 %v1207
        %v2357 = vunpack.c.h.b16 %v1207
        %v2358 = vunpack.c.l.b16 %v1208
        %v2359 = vunpack.c.h.b16 %v1208
        %v2360 = vunpack.c.l.b16 %v1209
        %v2361 = vunpack.c.h.b16 %v1209
        %v2362 = vunpack.c.l.b16 %v1210
        %v2363 = vunpack.c.h.b16 %v1210
        %v2364 = vunpack.c.l.b16 %v1211
        %v2365 = vunpack.c.h.b16 %v1211
        %v2366 = vunpack.c.l.b16 %v1212
        %v2367 = vunpack.c.h.b16 %v1212
        %v2368 = vunpack.c.l.b16 %v1213
        %v2369 = vunpack.c.h.b16 %v1213
        %v2370 = vunpack.c.l.b16 %v1214
        %v2371 = vunpack.c.h.b16 %v1214
        %v2372 = vunpack.c.l.b16 %v1215
        %v2373 = vunpack.c.h.b16 %v1215
        %v2374 = vunpack.c.l.b16 %v1216
        %v2375 = vunpack.c.h.b16 %v1216
        %v2376 = vunpack.c.l.b16 %v1217
        %v2377 = vunpack.c.h.b16 %v1217
        %v2378 = vunpack.c.l.b16 %v1218
        %v2379 = vunpack.c.h.b16 %v1218
        %v2380 = vunpack.c.l.b16 %v1219
        %v2381 = vunpack.c.h.b16 %v1219
        %v2382 = vunpack.c.l.b16 %v1220
        %v2383 = vunpack.c.h.b16 %v1220
        %v2384 = vunpack.c.l.b16 %v1221
        %v2385 = vunpack.c.h.b16 %v1221
        %v2386 = vunpack.c.l.b16 %v1222
        %v2387 = vunpack.c.h.b16 %v1222
        %v2388 = vunpack.c.l.b16 %v1223
        %v2389 = vunpack.c.h.b16 %v1223
        %v2390 = vunpack.c.l.b16 %v1224
        %v2391 = vunpack.c.h.b16 %v1224
        %v2392 = vunpack.c.l.b16 %v1225
        %v2393 = vunpack.c.h.b16 %v1225
        %v2394 = vunpack.c.l.b16 %v1226
        %v2395 = vunpack.c.h.b16 %v1226
        %v2396 = vunpack.c.l.b16 %v1227
        %v2397 = vunpack.c.h.b16 %v1227
        %v2398 = vunpack.c.l.b16 %v1228
        %v2399 = vunpack.c.h.b16 %v1228
        %v2400 = vunpack.c.l.b16 %v1229
        %v2401 = vunpack.c.h.b16 %v1229
        %v2402 = vunpack.c.l.b16 %v1230
        %v2403 = vunpack.c.h.b16 %v1230
        %v2404 = vunpack.c.l.b16 %v1231
        %v2405 = vunpack.c.h.b16 %v1231
        %v2406 = vunpack.c.l.b16 %v1232
        %v2407 = vunpack.c.h.b16 %v1232
        %v2408 = vunpack.c.l.b16 %v1233
        %v2409 = vunpack.c.h.b16 %v1233
        %v2410 = vunpack.c.l.b16 %v1234
        %v2411 = vunpack.c.h.b16 %v1234
        %v2412 = vunpack.c.l.b16 %v1235
        %v2413 = vunpack.c.h.b16 %v1235
        %v2414 = vunpack.c.l.b16 %v1236
        %v2415 = vunpack.c.h.b16 %v1236
        %v2416 = vunpack.c.l.b16 %v1237
        %v2417 = vunpack.c.h.b16 %v1237
        %v2418 = vunpack.c.l.b16 %v1238
        %v2419 = vunpack.c.h.b16 %v1238
        %v2420 = vunpack.c.l.b16 %v1239
        %v2421 = vunpack.c.h.b16 %v1239
        %v2422 = vunpack.c.l.b16 %v1240
        %v2423 = vunpack.c.h.b16 %v1240
        %v2424 = vunpack.c.l.b16 %v1241
        %v2425 = vunpack.c.h.b16 %v1241
        %v2426 = vunpack.c.l.b16 %v1242
        %v2427 = vunpack.c.h.b16 %v1242
        %v2428 = vunpack.c.l.b16 %v1243
        %v2429 = vunpack.c.h.b16 %v1243
        %v2430 = vunpack.c.l.b16 %v1244
        %v2431 = vunpack.c.h.b16 %v1244
        %v2432 = vunpack.c.l.b16 %v1245
        %v2433 = vunpack.c.h.b16 %v1245
        %v2434 = vunpack.c.l.b16 %v1246
        %v2435 = vunpack.c.h.b16 %v1246
        %v2436 = vunpack.c.l.b16 %v1247
        %v2437 = vunpack.c.h.b16 %v1247
        %v2438 = vunpack.c.l.b16 %v1248
        %v2439 = vunpack.c.h.b16 %v1248
        %v2440 = vunpack.c.l.b16 %v1249
        %v2441 = vunpack.c.h.b16 %v1249
        %v2442 = vunpack.c.l.b16 %v1250
        %v2443 = vunpack.c.h.b16 %v1250
        %v2444 = vunpack.c.l.b16 %v1251
        %v2445 = vunpack.c.h.b16 %v1251
        %v2446 = vunpack.c.l.b16 %v1252
        %v2447 = vunpack.c.h.b16 %v1252
        %v2448 = vunpack.c.l.b16 %v1253
        %v2449 = vunpack.c.h.b16 %v1253
        %v2450 = vunpack.c.l.b16 %v1254
        %v2451 = vunpack.c.h.b16 %v1254
        %v2452 = vunpack.c.l.b16 %v1255
        %v2453 = vunpack.c.h.b16 %v1255
        %v2454 = vunpack.c.l.b16 %v1256
        %v2455 = vunpack.c.h.b16 %v1256
        %v2456 = vunpack.c.l.b16 %v1257
        %v2457 = vunpack.c.h.b16 %v1257
        %v2458 = vunpack.c.l.b16 %v1258
        %v2459 = vunpack.c.h.b16 %v1258
        %v2460 = vunpack.c.l.b16 %v1259
        %v2461 = vunpack.c.h.b16 %v1259
        %v2462 = vunpack.c.l.b16 %v1260
        %v2463 = vunpack.c.h.b16 %v1260
        %v2464 = vunpack.c.l.b16 %v1261
        %v2465 = vunpack.c.h.b16 %v1261
        %v2466 = vunpack.c.l.b16 %v1262
        %v2467 = vunpack.c.h.b16 %v1262
        %v2468 = vunpack.c.l.b16 %v1263
        %v2469 = vunpack.c.h.b16 %v1263
        %v2470 = vunpack.c.l.b16 %v1264
        %v2471 = vunpack.c.h.b16 %v1264
        %v2472 = vunpack.c.l.b16 %v1265
        %v2473 = vunpack.c.h.b16 %v1265
        %v2474 = vunpack.c.l.b16 %v1266
        %v2475 = vunpack.c.h.b16 %v1266
        %v2476 = vunpack.c.l.b16 %v1267
        %v2477 = vunpack.c.h.b16 %v1267
        %v2478 = vunpack.c.l.b16 %v1268
        %v2479 = vunpack.c.h.b16 %v1268
        %v2480 = vunpack.c.l.b16 %v1269
        %v2481 = vunpack.c.h.b16 %v1269
        %v2482 = vunpack.c.l.b16 %v1270
        %v2483 = vunpack.c.h.b16 %v1270
        %v2484 = vunpack.c.l.b16 %v1271
        %v2485 = vunpack.c.h.b16 %v1271
        %v2486 = vunpack.c.l.b16 %v1272
        %v2487 = vunpack.c.h.b16 %v1272
        %v2488 = vunpack.c.l.b16 %v1273
        %v2489 = vunpack.c.h.b16 %v1273
        %v2490 = vunpack.c.l.b16 %v1274
        %v2491 = vunpack.c.h.b16 %v1274
        %v2492 = vunpack.c.l.b16 %v1275
        %v2493 = vunpack.c.h.b16 %v1275
        %v2494 = vunpack.c.l.b16 %v1276
        %v2495 = vunpack.c.h.b16 %v1276
        %v2496 = vunpack.c.l.b16 %v1277
        %v2497 = vunpack.c.h.b16 %v1277
        %v2498 = vunpack.c.l.b16 %v1278
        %v2499 = vunpack.c.h.b16 %v1278
        %v2500 = vunpack.c.l.b16 %v1279
        %v2501 = vunpack.c.h.b16 %v1279
        %v2502 = vunpack.c.l.b16 %v1280
        %v2503 = vunpack.c.h.b16 %v1280
        %v2504 = vunpack.c.l.b16 %v1281
        %v2505 = vunpack.c.h.b16 %v1281
        %v2506 = vunpack.c.l.b16 %v1282
        %v2507 = vunpack.c.h.b16 %v1282
        %v2508 = vunpack.c.l.b16 %v1283
        %v2509 = vunpack.c.h.b16 %v1283
        %v2510 = vunpack.c.l.b16 %v1284
        %v2511 = vunpack.c.h.b16 %v1284
        %v2512 = vunpack.c.l.b16 %v1285
        %v2513 = vunpack.c.h.b16 %v1285
        %v2514 = vunpack.c.l.b16 %v1286
        %v2515 = vunpack.c.h.b16 %v1286
        %v2516 = vunpack.c.l.b16 %v1287
        %v2517 = vunpack.c.h.b16 %v1287
        %v2518 = vunpack.c.l.b16 %v1288
        %v2519 = vunpack.c.h.b16 %v1288
        %v2520 = vunpack.c.l.b16 %v1289
        %v2521 = vunpack.c.h.b16 %v1289
        %v2522 = vunpack.c.l.b16 %v1290
        %v2523 = vunpack.c.h.b16 %v1290
        %v2524 = vunpack.c.l.b16 %v1291
        %v2525 = vunpack.c.h.b16 %v1291
        %v2526 = vunpack.c.l.b16 %v1292
        %v2527 = vunpack.c.h.b16 %v1292
        %v2528 = vunpack.c.l.b16 %v1293
        %v2529 = vunpack.c.h.b16 %v1293
        %v2530 = vunpack.c.l.b16 %v1294
        %v2531 = vunpack.c.h.b16 %v1294
        %v2532 = vunpack.c.l.b16 %v1295
        %v2533 = vunpack.c.h.b16 %v1295
        %v2534 = vunpack.c.l.b16 %v1296
        %v2535 = vunpack.c.h.b16 %v1296
        %v2536 = vunpack.c.l.b16 %v1297
        %v2537 = vunpack.c.h.b16 %v1297
        %v2538 = vunpack.c.l.b16 %v1298
        %v2539 = vunpack.c.h.b16 %v1298
        %v2540 = vunpack.c.l.b16 %v1299
        %v2541 = vunpack.c.h.b16 %v1299
        %v2542 = vunpack.c.l.b16 %v1300
        %v2543 = vunpack.c.h.b16 %v1300
        %v2544 = vunpack.c.l.b16 %v1301
        %v2545 = vunpack.c.h.b16 %v1301
        %v2546 = vunpack.c.l.b16 %v1302
        %v2547 = vunpack.c.h.b16 %v1302
        %v2548 = vunpack.c.l.b16 %v1303
        %v2549 = vunpack.c.h.b16 %v1303
        %v2550 = vunpack.c.l.b16 %v1304
        %v2551 = vunpack.c.h.b16 %v1304
        %v2552 = vunpack.c.l.b16 %v1305
        %v2553 = vunpack.c.h.b16 %v1305
        %v2554 = vunpack.c.l.b16 %v1306
        %v2555 = vunpack.c.h.b16 %v1306
        %v2556 = vunpack.c.l.b16 %v1307
        %v2557 = vunpack.c.h.b16 %v1307
        %v2558 = vunpack.c.l.b16 %v1308
        %v2559 = vunpack.c.h.b16 %v1308
        %v2560 = vunpack.c.l.b16 %v1309
        %v2561 = vunpack.c.h.b16 %v1309
        %v2562 = vunpack.c.l.b16 %v1310
        %v2563 = vunpack.c.h.b16 %v1310
        %v2564 = vunpack.c.l.b16 %v1311
        %v2565 = vunpack.c.h.b16 %v1311
        %v2566 = vunpack.c.l.b16 %v1312
        %v2567 = vunpack.c.h.b16 %v1312
        %v2568 = vunpack.c.l.b16 %v1313
        %v2569 = vunpack.c.h.b16 %v1313
        %v2570 = vunpack.c.l.b16 %v1314
        %v2571 = vunpack.c.h.b16 %v1314
        %v2572 = vunpack.c.l.b16 %v1315
        %v2573 = vunpack.c.h.b16 %v1315
        %v2574 = vunpack.c.l.b16 %v1316
        %v2575 = vunpack.c.h.b16 %v1316
        %v2576 = vunpack.c.l.b16 %v1317
        %v2577 = vunpack.c.h.b16 %v1317
        %v2578 = vunpack.c.l.b16 %v1318
        %v2579 = vunpack.c.h.b16 %v1318
        %v2580 = vunpack.c.l.b16 %v1319
        %v2581 = vunpack.c.h.b16 %v1319
        %v2582 = vunpack.c.l.b16 %v1320
        %v2583 = vunpack.c.h.b16 %v1320
        %v2584 = vunpack.c.l.b16 %v1321
        %v2585 = vunpack.c.h.b16 %v1321
        %v2586 = vunpack.c.l.b16 %v1322
        %v2587 = vunpack.c.h.b16 %v1322
        %v2588 = vunpack.c.l.b16 %v1323
        %v2589 = vunpack.c.h.b16 %v1323
        %v2590 = vunpack.c.l.b16 %v1324
        %v2591 = vunpack.c.h.b16 %v1324
        %v2592 = vunpack.c.l.b16 %v1325
        %v2593 = vunpack.c.h.b16 %v1325
        %v2594 = vunpack.c.l.b16 %v1326
        %v2595 = vunpack.c.h.b16 %v1326
        %v2596 = vunpack.c.l.b16 %v1327
        %v2597 = vunpack.c.h.b16 %v1327
        %v2598 = vunpack.c.l.b16 %v1328
        %v2599 = vunpack.c.h.b16 %v1328
        %v2600 = vunpack.c.l.b16 %v1329
        %v2601 = vunpack.c.h.b16 %v1329
        %v2602 = vunpack.c.l.b16 %v1330
        %v2603 = vunpack.c.h.b16 %v1330
        %v2604 = vunpack.c.l.b16 %v1331
        %v2605 = vunpack.c.h.b16 %v1331
        %v2606 = vunpack.c.l.b16 %v1332
        %v2607 = vunpack.c.h.b16 %v1332
        %v2608 = vunpack.c.l.b16 %v1333
        %v2609 = vunpack.c.h.b16 %v1333
        %v2610 = vunpack.c.l.b16 %v1334
        %v2611 = vunpack.c.h.b16 %v1334
        %v2612 = vunpack.c.l.b16 %v1335
        %v2613 = vunpack.c.h.b16 %v1335
        %v2614 = vunpack.c.l.b16 %v1336
        %v2615 = vunpack.c.h.b16 %v1336
        %v2616 = vunpack.c.l.b16 %v1337
        %v2617 = vunpack.c.h.b16 %v1337
        %v2618 = vunpack.c.l.b16 %v1338
        %v2619 = vunpack.c.h.b16 %v1338
        %v2620 = vunpack.c.l.b16 %v1339
        %v2621 = vunpack.c.h.b16 %v1339
        %v2622 = vunpack.c.l.b16 %v1340
        %v2623 = vunpack.c.h.b16 %v1340
        %v2624 = vunpack.c.l.b16 %v1341
        %v2625 = vunpack.c.h.b16 %v1341
        %v2626 = vunpack.c.l.b16 %v1342
        %v2627 = vunpack.c.h.b16 %v1342
        %v2628 = vunpack.c.l.b16 %v1343
        %v2629 = vunpack.c.h.b16 %v1343
        %v2630 = vunpack.c.l.b16 %v1344
        %v2631 = vunpack.c.h.b16 %v1344
        %v2632 = vunpack.c.l.b16 %v1345
        %v2633 = vunpack.c.h.b16 %v1345
        %v2634 = vunpack.c.l.b16 %v1346
        %v2635 = vunpack.c.h.b16 %v1346
        %v2636 = vunpack.c.l.b16 %v1347
        %v2637 = vunpack.c.h.b16 %v1347
        %v2638 = vunpack.c.l.b16 %v1348
        %v2639 = vunpack.c.h.b16 %v1348
        %v2640 = vunpack.c.l.b16 %v1349
        %v2641 = vunpack.c.h.b16 %v1349
        %v2642 = vunpack.c.l.b16 %v1350
        %v2643 = vunpack.c.h.b16 %v1350
        %v2644 = vunpack.c.l.b16 %v1351
        %v2645 = vunpack.c.h.b16 %v1351
        %v2646 = vunpack.c.l.b16 %v1352
        %v2647 = vunpack.c.h.b16 %v1352
        %v2648 = vunpack.c.l.b16 %v1353
        %v2649 = vunpack.c.h.b16 %v1353
        %v2650 = vunpack.c.l.b16 %v1354
        %v2651 = vunpack.c.h.b16 %v1354
        %v2652 = vunpack.c.l.b16 %v1355
        %v2653 = vunpack.c.h.b16 %v1355
        %v2654 = vunpack.c.l.b16 %v1356
        %v2655 = vunpack.c.h.b16 %v1356
        %v2656 = vunpack.c.l.b16 %v1357
        %v2657 = vunpack.c.h.b16 %v1357
        %v2658 = vunpack.c.l.b16 %v1358
        %v2659 = vunpack.c.h.b16 %v1358
        %v2660 = vunpack.c.l.b16 %v1359
        %v2661 = vunpack.c.h.b16 %v1359
        %v2662 = vunpack.c.l.b16 %v1360
        %v2663 = vunpack.c.h.b16 %v1360
        %v2664 = vunpack.c.l.b16 %v1361
        %v2665 = vunpack.c.h.b16 %v1361
        %v2666 = vunpack.c.l.b16 %v1362
        %v2667 = vunpack.c.h.b16 %v1362
        %v2668 = vunpack.c.l.b16 %v1363
        %v2669 = vunpack.c.h.b16 %v1363
        %v2670 = vunpack.c.l.b16 %v1364
        %v2671 = vunpack.c.h.b16 %v1364
        %v2672 = vunpack.c.l.b16 %v1365
        %v2673 = vunpack.c.h.b16 %v1365
        %v2674 = vunpack.c.l.b16 %v1366
        %v2675 = vunpack.c.h.b16 %v1366
        %v2676 = vunpack.c.l.b16 %v1367
        %v2677 = vunpack.c.h.b16 %v1367
        %v2678 = vunpack.c.l.b16 %v1368
        %v2679 = vunpack.c.h.b16 %v1368
        %v2680 = vunpack.c.l.b16 %v1369
        %v2681 = vunpack.c.h.b16 %v1369
        %v2682 = vunpack.c.l.b16 %v1370
        %v2683 = vunpack.c.h.b16 %v1370
        %v2684 = vunpack.c.l.b16 %v1371
        %v2685 = vunpack.c.h.b16 %v1371
        %v2686 = vunpack.c.l.b16 %v1372
        %v2687 = vunpack.c.h.b16 %v1372
        %v2688 = vunpack.c.l.b16 %v1373
        %v2689 = vunpack.c.h.b16 %v1373
        %v2690 = vunpack.c.l.b16 %v1374
        %v2691 = vunpack.c.h.b16 %v1374
        %v2692 = vunpack.c.l.b16 %v1375
        %v2693 = vunpack.c.h.b16 %v1375
        %v2694 = vunpack.c.l.b16 %v1376
        %v2695 = vunpack.c.h.b16 %v1376
        %v2696 = vunpack.c.l.b16 %v1377
        %v2697 = vunpack.c.h.b16 %v1377
        %v2698 = vunpack.c.l.b16 %v1378
        %v2699 = vunpack.c.h.b16 %v1378
        %v2700 = vunpack.c.l.b16 %v1379
        %v2701 = vunpack.c.h.b16 %v1379
        %v2702 = vunpack.c.l.b16 %v1380
        %v2703 = vunpack.c.h.b16 %v1380
        %v2704 = vunpack.c.l.b16 %v1381
        %v2705 = vunpack.c.h.b16 %v1381
        %v2706 = vunpack.c.l.b16 %v1382
        %v2707 = vunpack.c.h.b16 %v1382
        %v2708 = vunpack.c.l.b16 %v1383
        %v2709 = vunpack.c.h.b16 %v1383
        %v2710 = vunpack.c.l.b16 %v1384
        %v2711 = vunpack.c.h.b16 %v1384
        %v2712 = vunpack.c.l.b16 %v1385
        %v2713 = vunpack.c.h.b16 %v1385
        %v2714 = vunpack.c.l.b16 %v1386
        %v2715 = vunpack.c.h.b16 %v1386
        %v2716 = vunpack.c.l.b16 %v1387
        %v2717 = vunpack.c.h.b16 %v1387
        %v2718 = vunpack.c.l.b16 %v1388
        %v2719 = vunpack.c.h.b16 %v1388
        %v2720 = vunpack.c.l.b16 %v1389
        %v2721 = vunpack.c.h.b16 %v1389
        %v2722 = vunpack.c.l.b16 %v1390
        %v2723 = vunpack.c.h.b16 %v1390
        %v2724 = vunpack.c.l.b16 %v1391
        %v2725 = vunpack.c.h.b16 %v1391
        %v2726 = vunpack.c.l.b16 %v1392
        %v2727 = vunpack.c.h.b16 %v1392
        %v2728 = vunpack.c.l.b16 %v1393
        %v2729 = vunpack.c.h.b16 %v1393
        %v2730 = vunpack.c.l.b16 %v1394
        %v2731 = vunpack.c.h.b16 %v1394
        %v2732 = vunpack.c.l.b16 %v1395
        %v2733 = vunpack.c.h.b16 %v1395
        %v2734 = vunpack.c.l.b16 %v1396
        %v2735 = vunpack.c.h.b16 %v1396
        %v2736 = vunpack.c.l.b16 %v1397
        %v2737 = vunpack.c.h.b16 %v1397
        %v2738 = vunpack.c.l.b16 %v1398
        %v2739 = vunpack.c.h.b16 %v1398
        %v2740 = vunpack.c.l.b16 %v1399
        %v2741 = vunpack.c.h.b16 %v1399
        %v2742 = vunpack.c.l.b16 %v1400
        %v2743 = vunpack.c.h.b16 %v1400
        %v2744 = vunpack.c.l.b16 %v1401
        %v2745 = vunpack.c.h.b16 %v1401
        %v2746 = vunpack.c.l.b16 %v1402
        %v2747 = vunpack.c.h.b16 %v1402
        %v2748 = vunpack.c.l.b16 %v1403
        %v2749 = vunpack.c.h.b16 %v1403
        %v2750 = vunpack.c.l.b16 %v1404
        %v2751 = vunpack.c.h.b16 %v1404
        %v2752 = vunpack.c.l.b16 %v1405
        %v2753 = vunpack.c.h.b16 %v1405
        %v2754 = vunpack.c.l.b16 %v1406
        %v2755 = vunpack.c.h.b16 %v1406
        %v2756 = vunpack.c.l.b16 %v1407
        %v2757 = vunpack.c.h.b16 %v1407
        %v2758 = vunpack.c.l.b16 %v1408
        %v2759 = vunpack.c.h.b16 %v1408
        %v2760 = vunpack.c.l.b16 %v1409
        %v2761 = vunpack.c.h.b16 %v1409
        %v2762 = vunpack.c.l.b16 %v1410
        %v2763 = vunpack.c.h.b16 %v1410
        %v2764 = vunpack.c.l.b16 %v1411
        %v2765 = vunpack.c.h.b16 %v1411
        %v2766 = vunpack.c.l.b16 %v1412
        %v2767 = vunpack.c.h.b16 %v1412
        %v2768 = vunpack.c.l.b16 %v1413
        %v2769 = vunpack.c.h.b16 %v1413
        %v2770 = vunpack.c.l.b16 %v1414
        %v2771 = vunpack.c.h.b16 %v1414
        %v2772 = vunpack.c.l.b16 %v1415
        %v2773 = vunpack.c.h.b16 %v1415
        %v2774 = vunpack.c.l.b16 %v1416
        %v2775 = vunpack.c.h.b16 %v1416
        %v2776 = vunpack.c.l.b16 %v1417
        %v2777 = vunpack.c.h.b16 %v1417
        %v2778 = vunpack.c.l.b16 %v1418
        %v2779 = vunpack.c.h.b16 %v1418
        %v2780 = vunpack.c.l.b16 %v1419
        %v2781 = vunpack.c.h.b16 %v1419
        %v2782 = vunpack.c.l.b16 %v1420
        %v2783 = vunpack.c.h.b16 %v1420
        %v2784 = vunpack.c.l.b16 %v1421
        %v2785 = vunpack.c.h.b16 %v1421
        %v2786 = vunpack.c.l.b16 %v1422
        %v2787 = vunpack.c.h.b16 %v1422
        %v2788 = vunpack.c.l.b16 %v1423
        %v2789 = vunpack.c.h.b16 %v1423
        %v2790 = vunpack.c.l.b16 %v1424
        %v2791 = vunpack.c.h.b16 %v1424
        %v2792 = vunpack.c.l.b16 %v1425
        %v2793 = vunpack.c.h.b16 %v1425
        %v2794 = vunpack.c.l.b16 %v1426
        %v2795 = vunpack.c.h.b16 %v1426
        %v2796 = vunpack.c.l.b16 %v1427
        %v2797 = vunpack.c.h.b16 %v1427
        %v2798 = vunpack.c.l.b16 %v1428
        %v2799 = vunpack.c.h.b16 %v1428
        %v2800 = vunpack.c.l.b16 %v1429
        %v2801 = vunpack.c.h.b16 %v1429
        %v2802 = vunpack.c.l.b16 %v1430
        %v2803 = vunpack.c.h.b16 %v1430
        %v2804 = vunpack.c.l.b16 %v1431
        %v2805 = vunpack.c.h.b16 %v1431
        %v2806 = vunpack.c.l.b16 %v1432
        %v2807 = vunpack.c.h.b16 %v1432
        %v2808 = vunpack.c.l.b16 %v1433
        %v2809 = vunpack.c.h.b16 %v1433
        %v2810 = vunpack.c.l.b16 %v1434
        %v2811 = vunpack.c.h.b16 %v1434
        %v2812 = vunpack.c.l.b16 %v1435
        %v2813 = vunpack.c.h.b16 %v1435
        %v2814 = vunpack.c.l.b16 %v1436
        %v2815 = vunpack.c.h.b16 %v1436
        %v2816 = vunpack.c.l.b16 %v1437
        %v2817 = vunpack.c.h.b16 %v1437
        %v2818 = vunpack.c.l.b16 %v1438
        %v2819 = vunpack.c.h.b16 %v1438
        %v2820 = vunpack.c.l.b16 %v1439
        %v2821 = vunpack.c.h.b16 %v1439
        %v2822 = vunpack.c.l.b16 %v1440
        %v2823 = vunpack.c.h.b16 %v1440
        %v2824 = vunpack.c.l.b16 %v1441
        %v2825 = vunpack.c.h.b16 %v1441
        %v2826 = vunpack.c.l.b16 %v1442
        %v2827 = vunpack.c.h.b16 %v1442
        %v2828 = vunpack.c.l.b16 %v1443
        %v2829 = vunpack.c.h.b16 %v1443
        %v2830 = vunpack.c.l.b16 %v1444
        %v2831 = vunpack.c.h.b16 %v1444
        %v2832 = vunpack.c.l.b16 %v1445
        %v2833 = vunpack.c.h.b16 %v1445
        %v2834 = vunpack.c.l.b16 %v1446
        %v2835 = vunpack.c.h.b16 %v1446
        %v2836 = vunpack.c.l.b16 %v1447
        %v2837 = vunpack.c.h.b16 %v1447
        %v2838 = vunpack.c.l.b16 %v1448
        %v2839 = vunpack.c.h.b16 %v1448
        %v2840 = vunpack.c.l.b16 %v1449
        %v2841 = vunpack.c.h.b16 %v1449
        %v2842 = vunpack.c.l.b16 %v1450
        %v2843 = vunpack.c.h.b16 %v1450
        %v2844 = vunpack.c.l.b16 %v1451
        %v2845 = vunpack.c.h.b16 %v1451
        %v2846 = vunpack.c.l.b16 %v1452
        %v2847 = vunpack.c.h.b16 %v1452
        %v2848 = vunpack.c.l.b16 %v1453
        %v2849 = vunpack.c.h.b16 %v1453
        %v2850 = vunpack.c.l.b16 %v1454
        %v2851 = vunpack.c.h.b16 %v1454
        %v2852 = vunpack.c.l.b16 %v1455
        %v2853 = vunpack.c.h.b16 %v1455
        %v2854 = vunpack.c.l.b16 %v1456
        %v2855 = vunpack.c.h.b16 %v1456
        %v2856 = vunpack.c.l.b16 %v1457
        %v2857 = vunpack.c.h.b16 %v1457
        %v2858 = vunpack.c.l.b16 %v1458
        %v2859 = vunpack.c.h.b16 %v1458
        %v2860 = vunpack.c.l.b16 %v1459
        %v2861 = vunpack.c.h.b16 %v1459
        %v2862 = vunpack.c.l.b16 %v1460
        %v2863 = vunpack.c.h.b16 %v1460
        %v2864 = vunpack.c.l.b16 %v1461
        %v2865 = vunpack.c.h.b16 %v1461
        %v2866 = vunpack.c.l.b16 %v1462
        %v2867 = vunpack.c.h.b16 %v1462
        %v2868 = vunpack.c.l.b16 %v1463
        %v2869 = vunpack.c.h.b16 %v1463
        %v2870 = vunpack.c.l.b16 %v1464
        %v2871 = vunpack.c.h.b16 %v1464
        %v2872 = vunpack.c.l.b16 %v1465
        %v2873 = vunpack.c.h.b16 %v1465
        %v2874 = vunpack.c.l.b16 %v1466
        %v2875 = vunpack.c.h.b16 %v1466
        %v2876 = vunpack.c.l.b16 %v1467
        %v2877 = vunpack.c.h.b16 %v1467
        %v2878 = vunpack.c.l.b16 %v1468
        %v2879 = vunpack.c.h.b16 %v1468
        %v2880 = vunpack.c.l.b16 %v1469
        %v2881 = vunpack.c.h.b16 %v1469
        %v2882 = vunpack.c.l.b16 %v1470
        %v2883 = vunpack.c.h.b16 %v1470
        %v2884 = vunpack.c.l.b16 %v1471
        %v2885 = vunpack.c.h.b16 %v1471
        %v2886 = vunpack.c.l.b16 %v1472
        %v2887 = vunpack.c.h.b16 %v1472
        %v2888 = vunpack.c.l.b16 %v1473
        %v2889 = vunpack.c.h.b16 %v1473
        %v2890 = vunpack.c.l.b16 %v1474
        %v2891 = vunpack.c.h.b16 %v1474
        %v2892 = vunpack.c.l.b16 %v1475
        %v2893 = vunpack.c.h.b16 %v1475
        %v2894 = vunpack.c.l.b16 %v1476
        %v2895 = vunpack.c.h.b16 %v1476
        %v2896 = vunpack.c.l.b16 %v1477
        %v2897 = vunpack.c.h.b16 %v1477
        %v2898 = vunpack.c.l.b16 %v1478
        %v2899 = vunpack.c.h.b16 %v1478
        %v2900 = vunpack.c.l.b16 %v1479
        %v2901 = vunpack.c.h.b16 %v1479
        %v2902 = vunpack.c.l.b16 %v1480
        %v2903 = vunpack.c.h.b16 %v1480
        %v2904 = vunpack.c.l.b16 %v1481
        %v2905 = vunpack.c.h.b16 %v1481
        %v2906 = vunpack.c.l.b16 %v1482
        %v2907 = vunpack.c.h.b16 %v1482
        %v2908 = vunpack.c.l.b16 %v1483
        %v2909 = vunpack.c.h.b16 %v1483
        %v2910 = vunpack.c.l.b16 %v1484
        %v2911 = vunpack.c.h.b16 %v1484
        %v2912 = vunpack.c.l.b16 %v1485
        %v2913 = vunpack.c.h.b16 %v1485
        %v2914 = vunpack.c.l.b16 %v1486
        %v2915 = vunpack.c.h.b16 %v1486
        %v2916 = vunpack.c.l.b16 %v1487
        %v2917 = vunpack.c.h.b16 %v1487
        %v2918 = vunpack.c.l.b16 %v1488
        %v2919 = vunpack.c.h.b16 %v1488
        %v2920 = vunpack.c.l.b16 %v1489
        %v2921 = vunpack.c.h.b16 %v1489
        %v2922 = vunpack.c.l.b16 %v1490
        %v2923 = vunpack.c.h.b16 %v1490
        %v2924 = vunpack.c.l.b16 %v1491
        %v2925 = vunpack.c.h.b16 %v1491
        %v2926 = vunpack.c.l.b16 %v1492
        %v2927 = vunpack.c.h.b16 %v1492
        %v2928 = vunpack.c.l.b16 %v1493
        %v2929 = vunpack.c.h.b16 %v1493
        %v2930 = vunpack.c.l.b16 %v1494
        %v2931 = vunpack.c.h.b16 %v1494
        %v2932 = vunpack.c.l.b16 %v1495
        %v2933 = vunpack.c.h.b16 %v1495
        %v2934 = vunpack.c.l.b16 %v1496
        %v2935 = vunpack.c.h.b16 %v1496
        %v2936 = vunpack.c.l.b16 %v1497
        %v2937 = vunpack.c.h.b16 %v1497
        %v2938 = vunpack.c.l.b16 %v1498
        %v2939 = vunpack.c.h.b16 %v1498
        %v2940 = vunpack.c.l.b16 %v1499
        %v2941 = vunpack.c.h.b16 %v1499
        %v2942 = vunpack.c.l.b16 %v1500
        %v2943 = vunpack.c.h.b16 %v1500
        %v2944 = vunpack.c.l.b16 %v1501
        %v2945 = vunpack.c.h.b16 %v1501
        %v2946 = vunpack.c.l.b16 %v1502
        %v2947 = vunpack.c.h.b16 %v1502
        %v2948 = vunpack.c.l.b16 %v1503
        %v2949 = vunpack.c.h.b16 %v1503
        %v2950 = vunpack.c.l.b16 %v1504
        %v2951 = vunpack.c.h.b16 %v1504
        %v2952 = vunpack.c.l.b16 %v1505
        %v2953 = vunpack.c.h.b16 %v1505
        %v2954 = vunpack.c.l.b16 %v1506
        %v2955 = vunpack.c.h.b16 %v1506
        %v2956 = vunpack.c.l.b16 %v1507
        %v2957 = vunpack.c.h.b16 %v1507
        %v2958 = vunpack.c.l.b16 %v1508
        %v2959 = vunpack.c.h.b16 %v1508
        %v2960 = vunpack.c.l.b16 %v1509
        %v2961 = vunpack.c.h.b16 %v1509
        %v2962 = vunpack.c.l.b16 %v1510
        %v2963 = vunpack.c.h.b16 %v1510
        %v2964 = vunpack.c.l.b16 %v1511
        %v2965 = vunpack.c.h.b16 %v1511
        %v2966 = vunpack.c.l.b16 %v1512
        %v2967 = vunpack.c.h.b16 %v1512
        %v2968 = vunpack.c.l.b16 %v1513
        %v2969 = vunpack.c.h.b16 %v1513
        %v2970 = vunpack.c.l.b16 %v1514
        %v2971 = vunpack.c.h.b16 %v1514
        %v2972 = vunpack.c.l.b16 %v1515
        %v2973 = vunpack.c.h.b16 %v1515
        %v2974 = vunpack.c.l.b16 %v1516
        %v2975 = vunpack.c.h.b16 %v1516
        %v2976 = vunpack.c.l.b16 %v1517
        %v2977 = vunpack.c.h.b16 %v1517
        %v2978 = vunpack.c.l.b16 %v1518
        %v2979 = vunpack.c.h.b16 %v1518
        %v2980 = vunpack.c.l.b16 %v1519
        %v2981 = vunpack.c.h.b16 %v1519
        %v2982 = vunpack.c.l.b16 %v1520
        %v2983 = vunpack.c.h.b16 %v1520
        %v2984 = vunpack.c.l.b16 %v1521
        %v2985 = vunpack.c.h.b16 %v1521
        %v2986 = vunpack.c.l.b16 %v1522
        %v2987 = vunpack.c.h.b16 %v1522
        %v2988 = vunpack.c.l.b16 %v1523
        %v2989 = vunpack.c.h.b16 %v1523
        %v2990 = vunpack.c.l.b16 %v1524
        %v2991 = vunpack.c.h.b16 %v1524
        %v2992 = vunpack.c.l.b16 %v1525
        %v2993 = vunpack.c.h.b16 %v1525
        %v2994 = vunpack.c.l.b16 %v1526
        %v2995 = vunpack.c.h.b16 %v1526
        %v2996 = vunpack.c.l.b16 %v1527
        %v2997 = vunpack.c.h.b16 %v1527
        %v2998 = vunpack.c.l.b16 %v1528
        %v2999 = vunpack.c.h.b16 %v1528
        %v3000 = vunpack.c.l.b16 %v1529
        %v3001 = vunpack.c.h.b16 %v1529
        %v3002 = vunpack.c.l.b16 %v1530
        %v3003 = vunpack.c.h.b16 %v1530
        %v3004 = vunpack.c.l.b16 %v1531
        %v3005 = vunpack.c.h.b16 %v1531
        %v3006 = vunpack.c.l.b16 %v1532
        %v3007 = vunpack.c.h.b16 %v1532
        %v3008 = vunpack.c.l.b16 %v1533
        %v3009 = vunpack.c.h.b16 %v1533
        %v3010 = vunpack.c.l.b16 %v1534
        %v3011 = vunpack.c.h.b16 %v1534
        %v3012 = vunpack.c.l.b16 %v1535
        %v3013 = vunpack.c.h.b16 %v1535
        %v3014 = vunpack.c.l.b16 %v1536
        %v3015 = vunpack.c.h.b16 %v1536
        %v3016 = vunpack.c.l.b16 %v1537
        %v3017 = vunpack.c.h.b16 %v1537
        %v3018 = vunpack.c.l.b16 %v1538
        %v3019 = vunpack.c.h.b16 %v1538
        %v3020 = vunpack.c.l.b16 %v1539
        %v3021 = vunpack.c.h.b16 %v1539
        %v3022 = vunpack.c.l.b16 %v1540
        %v3023 = vunpack.c.h.b16 %v1540
        %v3024 = vunpack.c.l.b16 %v1541
        %v3025 = vunpack.c.h.b16 %v1541
        %v3026 = vunpack.c.l.b16 %v1542
        %v3027 = vunpack.c.h.b16 %v1542
        %v3028 = vunpack.c.l.b16 %v1543
        %v3029 = vunpack.c.h.b16 %v1543
        %v3030 = vunpack.c.l.b16 %v1544
        %v3031 = vunpack.c.h.b16 %v1544
        %v3032 = vunpack.c.l.b16 %v1545
        %v3033 = vunpack.c.h.b16 %v1545
        %v3034 = vunpack.c.l.b16 %v1546
        %v3035 = vunpack.c.h.b16 %v1546
        %v3036 = vunpack.c.l.b16 %v1547
        %v3037 = vunpack.c.h.b16 %v1547
        %v3038 = vunpack.c.l.b16 %v1548
        %v3039 = vunpack.c.h.b16 %v1548
        %v3040 = vunpack.c.l.b16 %v1549
        %v3041 = vunpack.c.h.b16 %v1549
        %v3042 = vunpack.c.l.b16 %v1550
        %v3043 = vunpack.c.h.b16 %v1550
        %v3044 = vunpack.c.l.b16 %v1551
        %v3045 = vunpack.c.h.b16 %v1551
        %v3046 = vunpack.c.l.b16 %v1552
        %v3047 = vunpack.c.h.b16 %v1552
        %v3048 = vunpack.c.l.b16 %v1553
        %v3049 = vunpack.c.h.b16 %v1553
        %v3050 = vunpack.c.l.b16 %v1554
        %v3051 = vunpack.c.h.b16 %v1554
        %v3052 = vunpack.c.l.b16 %v1555
        %v3053 = vunpack.c.h.b16 %v1555
        %v3054 = vunpack.c.l.b16 %v1556
        %v3055 = vunpack.c.h.b16 %v1556
        %v3056 = vunpack.c.l.b16 %v1557
        %v3057 = vunpack.c.h.b16 %v1557
        %v3058 = vunpack.c.l.b16 %v1558
        %v3059 = vunpack.c.h.b16 %v1558
        %v3060 = vunpack.c.l.b16 %v1559
        %v3061 = vunpack.c.h.b16 %v1559
        %v3062 = vunpack.c.l.b16 %v1560
        %v3063 = vunpack.c.h.b16 %v1560
        %v3064 = vunpack.c.l.b16 %v1561
        %v3065 = vunpack.c.h.b16 %v1561
        %v3066 = vunpack.c.l.b16 %v1562
        %v3067 = vunpack.c.h.b16 %v1562
        %v3068 = vunpack.c.l.b16 %v1563
        %v3069 = vunpack.c.h.b16 %v1563
        %v3070 = vunpack.c.l.b16 %v1564
        %v3071 = vunpack.c.h.b16 %v1564
        %v3072 = vunpack.c.l.b16 %v1565
        %v3073 = vunpack.c.h.b16 %v1565
        %v3074 = vunpack.c.l.b16 %v1566
        %v3075 = vunpack.c.h.b16 %v1566
        %v3076 = vunpack.c.l.b16 %v1567
        %v3077 = vunpack.c.h.b16 %v1567
        %v3078 = vunpack.c.l.b16 %v1568
        %v3079 = vunpack.c.h.b16 %v1568
        %v3080 = vunpack.c.l.b16 %v1569
        %v3081 = vunpack.c.h.b16 %v1569
        %v3082 = vunpack.c.l.b16 %v1570
        %v3083 = vunpack.c.h.b16 %v1570
        %v3084 = vunpack.c.l.b16 %v1571
        %v3085 = vunpack.c.h.b16 %v1571
        %v3086 = vunpack.c.l.b16 %v1572
        %v3087 = vunpack.c.h.b16 %v1572
        %v3088 = vunpack.c.l.b16 %v1573
        %v3089 = vunpack.c.h.b16 %v1573
        %v3090 = vunpack.c.l.b16 %v1574
        %v3091 = vunpack.c.h.b16 %v1574
        %v3092 = vunpack.c.l.b16 %v1575
        %v3093 = vunpack.c.h.b16 %v1575
        %v3094 = vunpack.c.l.b16 %v1576
        %v3095 = vunpack.c.h.b16 %v1576
        %v3096 = vunpack.c.l.b16 %v1577
        %v3097 = vunpack.c.h.b16 %v1577
        %v3098 = vunpack.c.l.b16 %v1578
        %v3099 = vunpack.c.h.b16 %v1578
        %v3100 = vunpack.c.l.b16 %v1579
        %v3101 = vunpack.c.h.b16 %v1579
        %v3102 = vunpack.c.l.b16 %v1580
        %v3103 = vunpack.c.h.b16 %v1580
        %v3104 = vunpack.c.l.b16 %v1581
        %v3105 = vunpack.c.h.b16 %v1581
        %v3106 = vunpack.c.l.b16 %v1582
        %v3107 = vunpack.c.h.b16 %v1582
        %v3108 = vunpack.c.l.b16 %v1583
        %v3109 = vunpack.c.h.b16 %v1583
        %v3110 = vunpack.c.l.b16 %v1584
        %v3111 = vunpack.c.h.b16 %v1584
        %v3112 = vunpack.c.l.b16 %v1585
        %v3113 = vunpack.c.h.b16 %v1585
        %v3114 = vunpack.c.l.b16 %v1586
        %v3115 = vunpack.c.h.b16 %v1586
        %v3116 = vunpack.c.l.b16 %v1587
        %v3117 = vunpack.c.h.b16 %v1587
        %v3118 = vunpack.c.l.b16 %v1588
        %v3119 = vunpack.c.h.b16 %v1588
        %v3120 = vunpack.c.l.b16 %v1589
        %v3121 = vunpack.c.h.b16 %v1589
        %v3122 = vunpack.c.l.b16 %v1590
        %v3123 = vunpack.c.h.b16 %v1590
        %v3124 = vunpack.c.l.b16 %v1591
        %v3125 = vunpack.c.h.b16 %v1591
        %v3126 = vunpack.c.l.b16 %v1592
        %v3127 = vunpack.c.h.b16 %v1592
        %v3128 = vunpack.c.l.b16 %v1593
        %v3129 = vunpack.c.h.b16 %v1593
        %v3130 = vunpack.c.l.b16 %v1594
        %v3131 = vunpack.c.h.b16 %v1594
        %v3132 = vunpack.c.l.b16 %v1595
        %v3133 = vunpack.c.h.b16 %v1595
        %v3134 = vunpack.c.l.b16 %v1596
        %v3135 = vunpack.c.h.b16 %v1596
        %v3136 = vunpack.c.l.b16 %v1597
        %v3137 = vunpack.c.h.b16 %v1597
        %v3138 = vunpack.c.l.b16 %v1598
        %v3139 = vunpack.c.h.b16 %v1598
        %v3140 = vunpack.c.l.b16 %v1599
        %v3141 = vunpack.c.h.b16 %v1599
        %v3142 = vunpack.c.l.b16 %v1600
        %v3143 = vunpack.c.h.b16 %v1600
        %v3144 = vunpack.c.l.b16 %v1601
        %v3145 = vunpack.c.h.b16 %v1601
        %v3146 = vunpack.c.l.b16 %v1602
        %v3147 = vunpack.c.h.b16 %v1602
        %v3148 = vunpack.c.l.b16 %v1603
        %v3149 = vunpack.c.h.b16 %v1603
        %v3150 = vunpack.c.l.b16 %v1604
        %v3151 = vunpack.c.h.b16 %v1604
        %v3152 = vunpack.c.l.b16 %v1605
        %v3153 = vunpack.c.h.b16 %v1605
        %v3154 = vunpack.c.l.b16 %v1606
        %v3155 = vunpack.c.h.b16 %v1606
        %v3156 = vunpack.c.l.b16 %v1607
        %v3157 = vunpack.c.h.b16 %v1607
        %v3158 = vunpack.c.l.b16 %v1608
        %v3159 = vunpack.c.h.b16 %v1608
        %v3160 = vunpack.c.l.b16 %v1609
        %v3161 = vunpack.c.h.b16 %v1609
        %v3162 = vunpack.c.l.b16 %v1610
        %v3163 = vunpack.c.h.b16 %v1610
        %v3164 = vunpack.c.l.b16 %v1611
        %v3165 = vunpack.c.h.b16 %v1611
        %v3166 = vunpack.c.l.b16 %v1612
        %v3167 = vunpack.c.h.b16 %v1612
        %v3168 = vunpack.c.l.b16 %v1613
        %v3169 = vunpack.c.h.b16 %v1613
        %v3170 = vunpack.c.l.b16 %v1614
        %v3171 = vunpack.c.h.b16 %v1614
        %v3172 = vunpack.c.l.b16 %v1615
        %v3173 = vunpack.c.h.b16 %v1615
        %v3174 = vpack.c.b16 %v2154, %v2150
        %v3175 = vpack.c.b16 %v2155, %v2151
        %v3176 = vpack.c.b16 %v2156, %v2152
        %v3177 = vpack.c.b16 %v2157, %v2153
        %v3178 = vpack.c.b16 %v2162, %v2158
        %v3179 = vpack.c.b16 %v2163, %v2159
        %v3180 = vpack.c.b16 %v2164, %v2160
        %v3181 = vpack.c.b16 %v2165, %v2161
        %v3182 = vpack.c.b16 %v2170, %v2166
        %v3183 = vpack.c.b16 %v2171, %v2167
        %v3184 = vpack.c.b16 %v2172, %v2168
        %v3185 = vpack.c.b16 %v2173, %v2169
        %v3186 = vpack.c.b16 %v2178, %v2174
        %v3187 = vpack.c.b16 %v2179, %v2175
        %v3188 = vpack.c.b16 %v2180, %v2176
        %v3189 = vpack.c.b16 %v2181, %v2177
        %v3190 = vpack.c.b16 %v2186, %v2182
        %v3191 = vpack.c.b16 %v2187, %v2183
        %v3192 = vpack.c.b16 %v2188, %v2184
        %v3193 = vpack.c.b16 %v2189, %v2185
        %v3194 = vpack.c.b16 %v2194, %v2190
        %v3195 = vpack.c.b16 %v2195, %v2191
        %v3196 = vpack.c.b16 %v2196, %v2192
        %v3197 = vpack.c.b16 %v2197, %v2193
        %v3198 = vpack.c.b16 %v2202, %v2198
        %v3199 = vpack.c.b16 %v2203, %v2199
        %v3200 = vpack.c.b16 %v2204, %v2200
        %v3201 = vpack.c.b16 %v2205, %v2201
        %v3202 = vpack.c.b16 %v2210, %v2206
        %v3203 = vpack.c.b16 %v2211, %v2207
        %v3204 = vpack.c.b16 %v2212, %v2208
        %v3205 = vpack.c.b16 %v2213, %v2209
        %v3206 = vpack.c.b16 %v2218, %v2214
        %v3207 = vpack.c.b16 %v2219, %v2215
        %v3208 = vpack.c.b16 %v2220, %v2216
        %v3209 = vpack.c.b16 %v2221, %v2217
        %v3210 = vpack.c.b16 %v2226, %v2222
        %v3211 = vpack.c.b16 %v2227, %v2223
        %v3212 = vpack.c.b16 %v2228, %v2224
        %v3213 = vpack.c.b16 %v2229, %v2225
        %v3214 = vpack.c.b16 %v2234, %v2230
        %v3215 = vpack.c.b16 %v2235, %v2231
        %v3216 = vpack.c.b16 %v2236, %v2232
        %v3217 = vpack.c.b16 %v2237, %v2233
        %v3218 = vpack.c.b16 %v2242, %v2238
        %v3219 = vpack.c.b16 %v2243, %v2239
        %v3220 = vpack.c.b16 %v2244, %v2240
        %v3221 = vpack.c.b16 %v2245, %v2241
        %v3222 = vpack.c.b16 %v2250, %v2246
        %v3223 = vpack.c.b16 %v2251, %v2247
        %v3224 = vpack.c.b16 %v2252, %v2248
        %v3225 = vpack.c.b16 %v2253, %v2249
        %v3226 = vpack.c.b16 %v2258, %v2254
        %v3227 = vpack.c.b16 %v2259, %v2255
        %v3228 = vpack.c.b16 %v2260, %v2256
        %v3229 = vpack.c.b16 %v2261, %v2257
        %v3230 = vpack.c.b16 %v2266, %v2262
        %v3231 = vpack.c.b16 %v2267, %v2263
        %v3232 = vpack.c.b16 %v2268, %v2264
        %v3233 = vpack.c.b16 %v2269, %v2265
        %v3234 = vpack.c.b16 %v2274, %v2270
        %v3235 = vpack.c.b16 %v2275, %v2271
        %v3236 = vpack.c.b16 %v2276, %v2272
        %v3237 = vpack.c.b16 %v2277, %v2273
        %v3238 = vpack.c.b16 %v2282, %v2278
        %v3239 = vpack.c.b16 %v2283, %v2279
        %v3240 = vpack.c.b16 %v2284, %v2280
        %v3241 = vpack.c.b16 %v2285, %v2281
        %v3242 = vpack.c.b16 %v2290, %v2286
        %v3243 = vpack.c.b16 %v2291, %v2287
        %v3244 = vpack.c.b16 %v2292, %v2288
        %v3245 = vpack.c.b16 %v2293, %v2289
        %v3246 = vpack.c.b16 %v2298, %v2294
        %v3247 = vpack.c.b16 %v2299, %v2295
        %v3248 = vpack.c.b16 %v2300, %v2296
        %v3249 = vpack.c.b16 %v2301, %v2297
        %v3250 = vpack.c.b16 %v2306, %v2302
        %v3251 = vpack.c.b16 %v2307, %v2303
        %v3252 = vpack.c.b16 %v2308, %v2304
        %v3253 = vpack.c.b16 %v2309, %v2305
        %v3254 = vpack.c.b16 %v2314, %v2310
        %v3255 = vpack.c.b16 %v2315, %v2311
        %v3256 = vpack.c.b16 %v2316, %v2312
        %v3257 = vpack.c.b16 %v2317, %v2313
        %v3258 = vpack.c.b16 %v2322, %v2318
        %v3259 = vpack.c.b16 %v2323, %v2319
        %v3260 = vpack.c.b16 %v2324, %v2320
        %v3261 = vpack.c.b16 %v2325, %v2321
        %v3262 = vpack.c.b16 %v2330, %v2326
        %v3263 = vpack.c.b16 %v2331, %v2327
        %v3264 = vpack.c.b16 %v2332, %v2328
        %v3265 = vpack.c.b16 %v2333, %v2329
        %v3266 = vpack.c.b16 %v2338, %v2334
        %v3267 = vpack.c.b16 %v2339, %v2335
        %v3268 = vpack.c.b16 %v2340, %v2336
        %v3269 = vpack.c.b16 %v2341, %v2337
        %v3270 = vpack.c.b16 %v2346, %v2342
        %v3271 = vpack.c.b16 %v2347, %v2343
        %v3272 = vpack.c.b16 %v2348, %v2344
        %v3273 = vpack.c.b16 %v2349, %v2345
        %v3274 = vpack.c.b16 %v2354, %v2350
        %v3275 = vpack.c.b16 %v2355, %v2351
        %v3276 = vpack.c.b16 %v2356, %v2352
        %v3277 = vpack.c.b16 %v2357, %v2353
        %v3278 = vpack.c.b16 %v2362, %v2358
        %v3279 = vpack.c.b16 %v2363, %v2359
        %v3280 = vpack.c.b16 %v2364, %v2360
        %v3281 = vpack.c.b16 %v2365, %v2361
        %v3282 = vpack.c.b16 %v2370, %v2366
        %v3283 = vpack.c.b16 %v2371, %v2367
        %v3284 = vpack.c.b16 %v2372, %v2368
        %v3285 = vpack.c.b16 %v2373, %v2369
        %v3286 = vpack.c.b16 %v2378, %v2374
        %v3287 = vpack.c.b16 %v2379, %v2375
        %v3288 = vpack.c.b16 %v2380, %v2376
        %v3289 = vpack.c.b16 %v2381, %v2377
        %v3290 = vpack.c.b16 %v2386, %v2382
        %v3291 = vpack.c.b16 %v2387, %v2383
        %v3292 = vpack.c.b16 %v2388, %v2384
        %v3293 = vpack.c.b16 %v2389, %v2385
        %v3294 = vpack.c.b16 %v2394, %v2390
        %v3295 = vpack.c.b16 %v2395, %v2391
        %v3296 = vpack.c.b16 %v2396, %v2392
        %v3297 = vpack.c.b16 %v2397, %v2393
        %v3298 = vpack.c.b16 %v2402, %v2398
        %v3299 = vpack.c.b16 %v2403, %v2399
        %v3300 = vpack.c.b16 %v2404, %v2400
        %v3301 = vpack.c.b16 %v2405, %v2401
        %v3302 = vpack.c.b16 %v2410, %v2406
        %v3303 = vpack.c.b16 %v2411, %v2407
        %v3304 = vpack.c.b16 %v2412, %v2408
        %v3305 = vpack.c.b16 %v2413, %v2409
        %v3306 = vpack.c.b16 %v2418, %v2414
        %v3307 = vpack.c.b16 %v2419, %v2415
        %v3308 = vpack.c.b16 %v2420, %v2416
        %v3309 = vpack.c.b16 %v2421, %v2417
        %v3310 = vpack.c.b16 %v2426, %v2422
        %v3311 = vpack.c.b16 %v2427, %v2423
        %v3312 = vpack.c.b16 %v2428, %v2424
        %v3313 = vpack.c.b16 %v2429, %v2425
        %v3314 = vpack.c.b16 %v2434, %v2430
        %v3315 = vpack.c.b16 %v2435, %v2431
        %v3316 = vpack.c.b16 %v2436, %v2432
        %v3317 = vpack.c.b16 %v2437, %v2433
        %v3318 = vpack.c.b16 %v2442, %v2438
        %v3319 = vpack.c.b16 %v2443, %v2439
        %v3320 = vpack.c.b16 %v2444, %v2440
        %v3321 = vpack.c.b16 %v2445, %v2441
        %v3322 = vpack.c.b16 %v2450, %v2446
        %v3323 = vpack.c.b16 %v2451, %v2447
        %v3324 = vpack.c.b16 %v2452, %v2448
        %v3325 = vpack.c.b16 %v2453, %v2449
        %v3326 = vpack.c.b16 %v2458, %v2454
        %v3327 = vpack.c.b16 %v2459, %v2455
        %v3328 = vpack.c.b16 %v2460, %v2456
        %v3329 = vpack.c.b16 %v2461, %v2457
        %v3330 = vpack.c.b16 %v2466, %v2462
        %v3331 = vpack.c.b16 %v2467, %v2463
        %v3332 = vpack.c.b16 %v2468, %v2464
        %v3333 = vpack.c.b16 %v2469, %v2465
        %v3334 = vpack.c.b16 %v2474, %v2470
        %v3335 = vpack.c.b16 %v2475, %v2471
        %v3336 = vpack.c.b16 %v2476, %v2472
        %v3337 = vpack.c.b16 %v2477, %v2473
        %v3338 = vpack.c.b16 %v2482, %v2478
        %v3339 = vpack.c.b16 %v2483, %v2479
        %v3340 = vpack.c.b16 %v2484, %v2480
        %v3341 = vpack.c.b16 %v2485, %v2481
        %v3342 = vpack.c.b16 %v2490, %v2486
        %v3343 = vpack.c.b16 %v2491, %v2487
        %v3344 = vpack.c.b16 %v2492, %v2488
        %v3345 = vpack.c.b16 %v2493, %v2489
        %v3346 = vpack.c.b16 %v2498, %v2494
        %v3347 = vpack.c.b16 %v2499, %v2495
        %v3348 = vpack.c.b16 %v2500, %v2496
        %v3349 = vpack.c.b16 %v2501, %v2497
        %v3350 = vpack.c.b16 %v2506, %v2502
        %v3351 = vpack.c.b16 %v2507, %v2503
        %v3352 = vpack.c.b16 %v2508, %v2504
        %v3353 = vpack.c.b16 %v2509, %v2505
        %v3354 = vpack.c.b16 %v2514, %v2510
        %v3355 = vpack.c.b16 %v2515, %v2511
        %v3356 = vpack.c.b16 %v2516, %v2512
        %v3357 = vpack.c.b16 %v2517, %v2513
        %v3358 = vpack.c.b16 %v2522, %v2518
        %v3359 = vpack.c.b16 %v2523, %v2519
        %v3360 = vpack.c.b16 %v2524, %v2520
        %v3361 = vpack.c.b16 %v2525, %v2521
        %v3362 = vpack.c.b16 %v2530, %v2526
        %v3363 = vpack.c.b16 %v2531, %v2527
        %v3364 = vpack.c.b16 %v2532, %v2528
        %v3365 = vpack.c.b16 %v2533, %v2529
        %v3366 = vpack.c.b16 %v2538, %v2534
        %v3367 = vpack.c.b16 %v2539, %v2535
        %v3368 = vpack.c.b16 %v2540, %v2536
        %v3369 = vpack.c.b16 %v2541, %v2537
        %v3370 = vpack.c.b16 %v2546, %v2542
        %v3371 = vpack.c.b16 %v2547, %v2543
        %v3372 = vpack.c.b16 %v2548, %v2544
        %v3373 = vpack.c.b16 %v2549, %v2545
        %v3374 = vpack.c.b16 %v2554, %v2550
        %v3375 = vpack.c.b16 %v2555, %v2551
        %v3376 = vpack.c.b16 %v2556, %v2552
        %v3377 = vpack.c.b16 %v2557, %v2553
        %v3378 = vpack.c.b16 %v2562, %v2558
        %v3379 = vpack.c.b16 %v2563, %v2559
        %v3380 = vpack.c.b16 %v2564, %v2560
        %v3381 = vpack.c.b16 %v2565, %v2561
        %v3382 = vpack.c.b16 %v2570, %v2566
        %v3383 = vpack.c.b16 %v2571, %v2567
        %v3384 = vpack.c.b16 %v2572, %v2568
        %v3385 = vpack.c.b16 %v2573, %v2569
        %v3386 = vpack.c.b16 %v2578, %v2574
        %v3387 = vpack.c.b16 %v2579, %v2575
        %v3388 = vpack.c.b16 %v2580, %v2576
        %v3389 = vpack.c.b16 %v2581, %v2577
        %v3390 = vpack.c.b16 %v2586, %v2582
        %v3391 = vpack.c.b16 %v2587, %v2583
        %v3392 = vpack.c.b16 %v2588, %v2584
        %v3393 = vpack.c.b16 %v2589, %v2585
        %v3394 = vpack.c.b16 %v2594, %v2590
        %v3395 = vpack.c.b16 %v2595, %v2591
        %v3396 = vpack.c.b16 %v2596, %v2592
        %v3397 = vpack.c.b16 %v2597, %v2593
        %v3398 = vpack.c.b16 %v2602, %v2598
        %v3399 = vpack.c.b16 %v2603, %v2599
        %v3400 = vpack.c.b16 %v2604, %v2600
        %v3401 = vpack.c.b16 %v2605, %v2601
        %v3402 = vpack.c.b16 %v2610, %v2606
        %v3403 = vpack.c.b16 %v2611, %v2607
        %v3404 = vpack.c.b16 %v2612, %v2608
        %v3405 = vpack.c.b16 %v2613, %v2609
        %v3406 = vpack.c.b16 %v2618, %v2614
        %v3407 = vpack.c.b16 %v2619, %v2615
        %v3408 = vpack.c.b16 %v2620, %v2616
        %v3409 = vpack.c.b16 %v2621, %v2617
        %v3410 = vpack.c.b16 %v2626, %v2622
        %v3411 = vpack.c.b16 %v2627, %v2623
        %v3412 = vpack.c.b16 %v2628, %v2624
        %v3413 = vpack.c.b16 %v2629, %v2625
        %v3414 = vpack.c.b16 %v2634, %v2630
        %v3415 = vpack.c.b16 %v2635, %v2631
        %v3416 = vpack.c.b16 %v2636, %v2632
        %v3417 = vpack.c.b16 %v2637, %v2633
        %v3418 = vpack.c.b16 %v2642, %v2638
        %v3419 = vpack.c.b16 %v2643, %v2639
        %v3420 = vpack.c.b16 %v2644, %v2640
        %v3421 = vpack.c.b16 %v2645, %v2641
        %v3422 = vpack.c.b16 %v2650, %v2646
        %v3423 = vpack.c.b16 %v2651, %v2647
        %v3424 = vpack.c.b16 %v2652, %v2648
        %v3425 = vpack.c.b16 %v2653, %v2649
        %v3426 = vpack.c.b16 %v2658, %v2654
        %v3427 = vpack.c.b16 %v2659, %v2655
        %v3428 = vpack.c.b16 %v2660, %v2656
        %v3429 = vpack.c.b16 %v2661, %v2657
        %v3430 = vpack.c.b16 %v2666, %v2662
        %v3431 = vpack.c.b16 %v2667, %v2663
        %v3432 = vpack.c.b16 %v2668, %v2664
        %v3433 = vpack.c.b16 %v2669, %v2665
        %v3434 = vpack.c.b16 %v2674, %v2670
        %v3435 = vpack.c.b16 %v2675, %v2671
        %v3436 = vpack.c.b16 %v2676, %v2672
        %v3437 = vpack.c.b16 %v2677, %v2673
        %v3438 = vpack.c.b16 %v2682, %v2678
        %v3439 = vpack.c.b16 %v2683, %v2679
        %v3440 = vpack.c.b16 %v2684, %v2680
        %v3441 = vpack.c.b16 %v2685, %v2681
        %v3442 = vpack.c.b16 %v2690, %v2686
        %v3443 = vpack.c.b16 %v2691, %v2687
        %v3444 = vpack.c.b16 %v2692, %v2688
        %v3445 = vpack.c.b16 %v2693, %v2689
        %v3446 = vpack.c.b16 %v2698, %v2694
        %v3447 = vpack.c.b16 %v2699, %v2695
        %v3448 = vpack.c.b16 %v2700, %v2696
        %v3449 = vpack.c.b16 %v2701, %v2697
        %v3450 = vpack.c.b16 %v2706, %v2702
        %v3451 = vpack.c.b16 %v2707, %v2703
        %v3452 = vpack.c.b16 %v2708, %v2704
        %v3453 = vpack.c.b16 %v2709, %v2705
        %v3454 = vpack.c.b16 %v2714, %v2710
        %v3455 = vpack.c.b16 %v2715, %v2711
        %v3456 = vpack.c.b16 %v2716, %v2712
        %v3457 = vpack.c.b16 %v2717, %v2713
        %v3458 = vpack.c.b16 %v2722, %v2718
        %v3459 = vpack.c.b16 %v2723, %v2719
        %v3460 = vpack.c.b16 %v2724, %v2720
        %v3461 = vpack.c.b16 %v2725, %v2721
        %v3462 = vpack.c.b16 %v2730, %v2726
        %v3463 = vpack.c.b16 %v2731, %v2727
        %v3464 = vpack.c.b16 %v2732, %v2728
        %v3465 = vpack.c.b16 %v2733, %v2729
        %v3466 = vpack.c.b16 %v2738, %v2734
        %v3467 = vpack.c.b16 %v2739, %v2735
        %v3468 = vpack.c.b16 %v2740, %v2736
        %v3469 = vpack.c.b16 %v2741, %v2737
        %v3470 = vpack.c.b16 %v2746, %v2742
        %v3471 = vpack.c.b16 %v2747, %v2743
        %v3472 = vpack.c.b16 %v2748, %v2744
        %v3473 = vpack.c.b16 %v2749, %v2745
        %v3474 = vpack.c.b16 %v2754, %v2750
        %v3475 = vpack.c.b16 %v2755, %v2751
        %v3476 = vpack.c.b16 %v2756, %v2752
        %v3477 = vpack.c.b16 %v2757, %v2753
        %v3478 = vpack.c.b16 %v2762, %v2758
        %v3479 = vpack.c.b16 %v2763, %v2759
        %v3480 = vpack.c.b16 %v2764, %v2760
        %v3481 = vpack.c.b16 %v2765, %v2761
        %v3482 = vpack.c.b16 %v2770, %v2766
        %v3483 = vpack.c.b16 %v2771, %v2767
        %v3484 = vpack.c.b16 %v2772, %v2768
        %v3485 = vpack.c.b16 %v2773, %v2769
        %v3486 = vpack.c.b16 %v2778, %v2774
        %v3487 = vpack.c.b16 %v2779, %v2775
        %v3488 = vpack.c.b16 %v2780, %v2776
        %v3489 = vpack.c.b16 %v2781, %v2777
        %v3490 = vpack.c.b16 %v2786, %v2782
        %v3491 = vpack.c.b16 %v2787, %v2783
        %v3492 = vpack.c.b16 %v2788, %v2784
        %v3493 = vpack.c.b16 %v2789, %v2785
        %v3494 = vpack.c.b16 %v2794, %v2790
        %v3495 = vpack.c.b16 %v2795, %v2791
        %v3496 = vpack.c.b16 %v2796, %v2792
        %v3497 = vpack.c.b16 %v2797, %v2793
        %v3498 = vpack.c.b16 %v2802, %v2798
        %v3499 = vpack.c.b16 %v2803, %v2799
        %v3500 = vpack.c.b16 %v2804, %v2800
        %v3501 = vpack.c.b16 %v2805, %v2801
        %v3502 = vpack.c.b16 %v2810, %v2806
        %v3503 = vpack.c.b16 %v2811, %v2807
        %v3504 = vpack.c.b16 %v2812, %v2808
        %v3505 = vpack.c.b16 %v2813, %v2809
        %v3506 = vpack.c.b16 %v2818, %v2814
        %v3507 = vpack.c.b16 %v2819, %v2815
        %v3508 = vpack.c.b16 %v2820, %v2816
        %v3509 = vpack.c.b16 %v2821, %v2817
        %v3510 = vpack.c.b16 %v2826, %v2822
        %v3511 = vpack.c.b16 %v2827, %v2823
        %v3512 = vpack.c.b16 %v2828, %v2824
        %v3513 = vpack.c.b16 %v2829, %v2825
        %v3514 = vpack.c.b16 %v2834, %v2830
        %v3515 = vpack.c.b16 %v2835, %v2831
        %v3516 = vpack.c.b16 %v2836, %v2832
        %v3517 = vpack.c.b16 %v2837, %v2833
        %v3518 = vpack.c.b16 %v2842, %v2838
        %v3519 = vpack.c.b16 %v2843, %v2839
        %v3520 = vpack.c.b16 %v2844, %v2840
        %v3521 = vpack.c.b16 %v2845, %v2841
        %v3522 = vpack.c.b16 %v2850, %v2846
        %v3523 = vpack.c.b16 %v2851, %v2847
        %v3524 = vpack.c.b16 %v2852, %v2848
        %v3525 = vpack.c.b16 %v2853, %v2849
        %v3526 = vpack.c.b16 %v2858, %v2854
        %v3527 = vpack.c.b16 %v2859, %v2855
        %v3528 = vpack.c.b16 %v2860, %v2856
        %v3529 = vpack.c.b16 %v2861, %v2857
        %v3530 = vpack.c.b16 %v2866, %v2862
        %v3531 = vpack.c.b16 %v2867, %v2863
        %v3532 = vpack.c.b16 %v2868, %v2864
        %v3533 = vpack.c.b16 %v2869, %v2865
        %v3534 = vpack.c.b16 %v2874, %v2870
        %v3535 = vpack.c.b16 %v2875, %v2871
        %v3536 = vpack.c.b16 %v2876, %v2872
        %v3537 = vpack.c.b16 %v2877, %v2873
        %v3538 = vpack.c.b16 %v2882, %v2878
        %v3539 = vpack.c.b16 %v2883, %v2879
        %v3540 = vpack.c.b16 %v2884, %v2880
        %v3541 = vpack.c.b16 %v2885, %v2881
        %v3542 = vpack.c.b16 %v2890, %v2886
        %v3543 = vpack.c.b16 %v2891, %v2887
        %v3544 = vpack.c.b16 %v2892, %v2888
        %v3545 = vpack.c.b16 %v2893, %v2889
        %v3546 = vpack.c.b16 %v2898, %v2894
        %v3547 = vpack.c.b16 %v2899, %v2895
        %v3548 = vpack.c.b16 %v2900, %v2896
        %v3549 = vpack.c.b16 %v2901, %v2897
        %v3550 = vpack.c.b16 %v2906, %v2902
        %v3551 = vpack.c.b16 %v2907, %v2903
        %v3552 = vpack.c.b16 %v2908, %v2904
        %v3553 = vpack.c.b16 %v2909, %v2905
        %v3554 = vpack.c.b16 %v2914, %v2910
        %v3555 = vpack.c.b16 %v2915, %v2911
        %v3556 = vpack.c.b16 %v2916, %v2912
        %v3557 = vpack.c.b16 %v2917, %v2913
        %v3558 = vpack.c.b16 %v2922, %v2918
        %v3559 = vpack.c.b16 %v2923, %v2919
        %v3560 = vpack.c.b16 %v2924, %v2920
        %v3561 = vpack.c.b16 %v2925, %v2921
        %v3562 = vpack.c.b16 %v2930, %v2926
        %v3563 = vpack.c.b16 %v2931, %v2927
        %v3564 = vpack.c.b16 %v2932, %v2928
        %v3565 = vpack.c.b16 %v2933, %v2929
        %v3566 = vpack.c.b16 %v2938, %v2934
        %v3567 = vpack.c.b16 %v2939, %v2935
        %v3568 = vpack.c.b16 %v2940, %v2936
        %v3569 = vpack.c.b16 %v2941, %v2937
        %v3570 = vpack.c.b16 %v2946, %v2942
        %v3571 = vpack.c.b16 %v2947, %v2943
        %v3572 = vpack.c.b16 %v2948, %v2944
        %v3573 = vpack.c.b16 %v2949, %v2945
        %v3574 = vpack.c.b16 %v2954, %v2950
        %v3575 = vpack.c.b16 %v2955, %v2951
        %v3576 = vpack.c.b16 %v2956, %v2952
        %v3577 = vpack.c.b16 %v2957, %v2953
        %v3578 = vpack.c.b16 %v2962, %v2958
        %v3579 = vpack.c.b16 %v2963, %v2959
        %v3580 = vpack.c.b16 %v2964, %v2960
        %v3581 = vpack.c.b16 %v2965, %v2961
        %v3582 = vpack.c.b16 %v2970, %v2966
        %v3583 = vpack.c.b16 %v2971, %v2967
        %v3584 = vpack.c.b16 %v2972, %v2968
        %v3585 = vpack.c.b16 %v2973, %v2969
        %v3586 = vpack.c.b16 %v2978, %v2974
        %v3587 = vpack.c.b16 %v2979, %v2975
        %v3588 = vpack.c.b16 %v2980, %v2976
        %v3589 = vpack.c.b16 %v2981, %v2977
        %v3590 = vpack.c.b16 %v2986, %v2982
        %v3591 = vpack.c.b16 %v2987, %v2983
        %v3592 = vpack.c.b16 %v2988, %v2984
        %v3593 = vpack.c.b16 %v2989, %v2985
        %v3594 = vpack.c.b16 %v2994, %v2990
        %v3595 = vpack.c.b16 %v2995, %v2991
        %v3596 = vpack.c.b16 %v2996, %v2992
        %v3597 = vpack.c.b16 %v2997, %v2993
        %v3598 = vpack.c.b16 %v3002, %v2998
        %v3599 = vpack.c.b16 %v3003, %v2999
        %v3600 = vpack.c.b16 %v3004, %v3000
        %v3601 = vpack.c.b16 %v3005, %v3001
        %v3602 = vpack.c.b16 %v3010, %v3006
        %v3603 = vpack.c.b16 %v3011, %v3007
        %v3604 = vpack.c.b16 %v3012, %v3008
        %v3605 = vpack.c.b16 %v3013, %v3009
        %v3606 = vpack.c.b16 %v3018, %v3014
        %v3607 = vpack.c.b16 %v3019, %v3015
        %v3608 = vpack.c.b16 %v3020, %v3016
        %v3609 = vpack.c.b16 %v3021, %v3017
        %v3610 = vpack.c.b16 %v3026, %v3022
        %v3611 = vpack.c.b16 %v3027, %v3023
        %v3612 = vpack.c.b16 %v3028, %v3024
        %v3613 = vpack.c.b16 %v3029, %v3025
        %v3614 = vpack.c.b16 %v3034, %v3030
        %v3615 = vpack.c.b16 %v3035, %v3031
        %v3616 = vpack.c.b16 %v3036, %v3032
        %v3617 = vpack.c.b16 %v3037, %v3033
        %v3618 = vpack.c.b16 %v3042, %v3038
        %v3619 = vpack.c.b16 %v3043, %v3039
        %v3620 = vpack.c.b16 %v3044, %v3040
        %v3621 = vpack.c.b16 %v3045, %v3041
        %v3622 = vpack.c.b16 %v3050, %v3046
        %v3623 = vpack.c.b16 %v3051, %v3047
        %v3624 = vpack.c.b16 %v3052, %v3048
        %v3625 = vpack.c.b16 %v3053, %v3049
        %v3626 = vpack.c.b16 %v3058, %v3054
        %v3627 = vpack.c.b16 %v3059, %v3055
        %v3628 = vpack.c.b16 %v3060, %v3056
        %v3629 = vpack.c.b16 %v3061, %v3057
        %v3630 = vpack.c.b16 %v3066, %v3062
        %v3631 = vpack.c.b16 %v3067, %v3063
        %v3632 = vpack.c.b16 %v3068, %v3064
        %v3633 = vpack.c.b16 %v3069, %v3065
        %v3634 = vpack.c.b16 %v3074, %v3070
        %v3635 = vpack.c.b16 %v3075, %v3071
        %v3636 = vpack.c.b16 %v3076, %v3072
        %v3637 = vpack.c.b16 %v3077, %v3073
        %v3638 = vpack.c.b16 %v3082, %v3078
        %v3639 = vpack.c.b16 %v3083, %v3079
        %v3640 = vpack.c.b16 %v3084, %v3080
        %v3641 = vpack.c.b16 %v3085, %v3081
        %v3642 = vpack.c.b16 %v3090, %v3086
        %v3643 = vpack.c.b16 %v3091, %v3087
        %v3644 = vpack.c.b16 %v3092, %v3088
        %v3645 = vpack.c.b16 %v3093, %v3089
        %v3646 = vpack.c.b16 %v3098, %v3094
        %v3647 = vpack.c.b16 %v3099, %v3095
        %v3648 = vpack.c.b16 %v3100, %v3096
        %v3649 = vpack.c.b16 %v3101, %v3097
        %v3650 = vpack.c.b16 %v3106, %v3102
        %v3651 = vpack.c.b16 %v3107, %v3103
        %v3652 = vpack.c.b16 %v3108, %v3104
        %v3653 = vpack.c.b16 %v3109, %v3105
        %v3654 = vpack.c.b16 %v3114, %v3110
        %v3655 = vpack.c.b16 %v3115, %v3111
        %v3656 = vpack.c.b16 %v3116, %v3112
        %v3657 = vpack.c.b16 %v3117, %v3113
        %v3658 = vpack.c.b16 %v3122, %v3118
        %v3659 = vpack.c.b16 %v3123, %v3119
        %v3660 = vpack.c.b16 %v3124, %v3120
        %v3661 = vpack.c.b16 %v3125, %v3121
        %v3662 = vpack.c.b16 %v3130, %v3126
        %v3663 = vpack.c.b16 %v3131, %v3127
        %v3664 = vpack.c.b16 %v3132, %v3128
        %v3665 = vpack.c.b16 %v3133, %v3129
        %v3666 = vpack.c.b16 %v3138, %v3134
        %v3667 = vpack.c.b16 %v3139, %v3135
        %v3668 = vpack.c.b16 %v3140, %v3136
        %v3669 = vpack.c.b16 %v3141, %v3137
        %v3670 = vpack.c.b16 %v3146, %v3142
        %v3671 = vpack.c.b16 %v3147, %v3143
        %v3672 = vpack.c.b16 %v3148, %v3144
        %v3673 = vpack.c.b16 %v3149, %v3145
        %v3674 = vpack.c.b16 %v3154, %v3150
        %v3675 = vpack.c.b16 %v3155, %v3151
        %v3676 = vpack.c.b16 %v3156, %v3152
        %v3677 = vpack.c.b16 %v3157, %v3153
        %v3678 = vpack.c.b16 %v3162, %v3158
        %v3679 = vpack.c.b16 %v3163, %v3159
        %v3680 = vpack.c.b16 %v3164, %v3160
        %v3681 = vpack.c.b16 %v3165, %v3161
        %v3682 = vpack.c.b16 %v3170, %v3166
        %v3683 = vpack.c.b16 %v3171, %v3167
        %v3684 = vpack.c.b16 %v3172, %v3168
        %v3685 = vpack.c.b16 %v3173, %v3169
        %4198 = vmatprep.subr.bf16.mxu0 %v3175
        %4199 = vmatpush1.bf16.msra.mxu0 %v3174
        %4200 = vmatprep.subr.bf16.mxu0 %v3179
        %4201 = vmatpush1.bf16.msra.mxu0 %v3178
        %4202 = vmatprep.subr.bf16.mxu0 %v3183
        %4203 = vmatpush1.bf16.msra.mxu0 %v3182
        %4204 = vmatprep.subr.bf16.mxu0 %v3187
        %4205 = vmatpush1.bf16.msra.mxu0 %v3186
        %4206 = vmatprep.subr.bf16.mxu0 %v3191
        %4207 = vmatpush1.bf16.msra.mxu0 %v3190
        %4208 = vmatprep.subr.bf16.mxu0 %v3195
        %4209 = vmatpush1.bf16.msra.mxu0 %v3194
        %4210 = vmatprep.subr.bf16.mxu0 %v3199
        %4211 = vmatpush1.bf16.msra.mxu0 %v3198
        %4212 = vmatprep.subr.bf16.mxu0 %v3203
        %4213 = vmatpush1.bf16.msra.mxu0 %v3202
        %4214 = vmatprep.subr.bf16.mxu0 %v3207
        %4215 = vmatpush1.bf16.msra.mxu0 %v3206
        %4216 = vmatprep.subr.bf16.mxu0 %v3211
        %4217 = vmatpush1.bf16.msra.mxu0 %v3210
        %4218 = vmatprep.subr.bf16.mxu0 %v3215
        %4219 = vmatpush1.bf16.msra.mxu0 %v3214
        %4220 = vmatprep.subr.bf16.mxu0 %v3219
        %4221 = vmatpush1.bf16.msra.mxu0 %v3218
        %4222 = vmatprep.subr.bf16.mxu0 %v3223
        %4223 = vmatpush1.bf16.msra.mxu0 %v3222
        %4224 = vmatprep.subr.bf16.mxu0 %v3227
        %4225 = vmatpush1.bf16.msra.mxu0 %v3226
        %4226 = vmatprep.subr.bf16.mxu0 %v3231
        %4227 = vmatpush1.bf16.msra.mxu0 %v3230
        %4228 = vmatprep.subr.bf16.mxu0 %v3235
        %4229 = vmatpush1.bf16.msra.mxu0 %v3234
        %4230 = vmatprep.mubr.bf16.mxu0 %v1089
        %4231 = vmatmul.mubr.bf16.gmra.mrb[0].mxu0 %v1088
        %v4232 = vpop.f32.mrb[0].mxu0
        %v4233 = vadd.f32 %v1621, %v4232
        %v4234 = vpop.f32.mrb[0].mxu0
        %v4235 = vadd.f32 %v1625, %v4234
        %v4236 = vpop.f32.mrb[0].mxu0
        %v4237 = vpop.f32.mrb[0].mxu0
        %4238 = vdwg.mxu0
        %4239 = vmatprep.subr.bf16.mxu0 %v3239
        %4240 = vmatpush1.bf16.msra.mxu0 %v3238
        %4241 = vmatprep.subr.bf16.mxu0 %v3243
        %4242 = vmatpush1.bf16.msra.mxu0 %v3242
        %4243 = vmatprep.subr.bf16.mxu0 %v3247
        %4244 = vmatpush1.bf16.msra.mxu0 %v3246
        %4245 = vmatprep.subr.bf16.mxu0 %v3251
        %4246 = vmatpush1.bf16.msra.mxu0 %v3250
        %4247 = vmatprep.subr.bf16.mxu0 %v3255
        %4248 = vmatpush1.bf16.msra.mxu0 %v3254
        %4249 = vmatprep.subr.bf16.mxu0 %v3259
        %4250 = vmatpush1.bf16.msra.mxu0 %v3258
        %4251 = vmatprep.subr.bf16.mxu0 %v3263
        %4252 = vmatpush1.bf16.msra.mxu0 %v3262
        %4253 = vmatprep.subr.bf16.mxu0 %v3267
        %4254 = vmatpush1.bf16.msra.mxu0 %v3266
        %4255 = vmatprep.subr.bf16.mxu0 %v3271
        %4256 = vmatpush1.bf16.msra.mxu0 %v3270
        %4257 = vmatprep.subr.bf16.mxu0 %v3275
        %4258 = vmatpush1.bf16.msra.mxu0 %v3274
        %4259 = vmatprep.subr.bf16.mxu0 %v3279
        %4260 = vmatpush1.bf16.msra.mxu0 %v3278
        %4261 = vmatprep.subr.bf16.mxu0 %v3283
        %4262 = vmatpush1.bf16.msra.mxu0 %v3282
        %4263 = vmatprep.subr.bf16.mxu0 %v3287
        %4264 = vmatpush1.bf16.msra.mxu0 %v3286
        %4265 = vmatprep.subr.bf16.mxu0 %v3291
        %4266 = vmatpush1.bf16.msra.mxu0 %v3290
        %4267 = vmatprep.subr.bf16.mxu0 %v3295
        %4268 = vmatpush1.bf16.msra.mxu0 %v3294
        %4269 = vmatprep.subr.bf16.mxu0 %v3299
        %4270 = vmatpush1.bf16.msra.mxu0 %v3298
        %4271 = vmatprep.mubr.bf16.mxu0 %v1091
        %4272 = vmatmul.mubr.bf16.gmra.mrb[0].mxu0 %v1090
        %v4273 = vpop.f32.mrb[0].mxu0
        %v4274 = vadd.f32 %v4233, %v4273
        %v4275 = vpop.f32.mrb[0].mxu0
        %v4276 = vadd.f32 %v4235, %v4275
        %v4277 = vpop.f32.mrb[0].mxu0
        %v4278 = vpop.f32.mrb[0].mxu0
        %4279 = vdwg.mxu0
        %4280 = vmatprep.subr.bf16.mxu0 %v3303
        %4281 = vmatpush1.bf16.msra.mxu0 %v3302
        %4282 = vmatprep.subr.bf16.mxu0 %v3307
        %4283 = vmatpush1.bf16.msra.mxu0 %v3306
        %4284 = vmatprep.subr.bf16.mxu0 %v3311
        %4285 = vmatpush1.bf16.msra.mxu0 %v3310
        %4286 = vmatprep.subr.bf16.mxu0 %v3315
        %4287 = vmatpush1.bf16.msra.mxu0 %v3314
        %4288 = vmatprep.subr.bf16.mxu0 %v3319
        %4289 = vmatpush1.bf16.msra.mxu0 %v3318
        %4290 = vmatprep.subr.bf16.mxu0 %v3323
        %4291 = vmatpush1.bf16.msra.mxu0 %v3322
        %4292 = vmatprep.subr.bf16.mxu0 %v3327
        %4293 = vmatpush1.bf16.msra.mxu0 %v3326
        %4294 = vmatprep.subr.bf16.mxu0 %v3331
        %4295 = vmatpush1.bf16.msra.mxu0 %v3330
        %4296 = vmatprep.subr.bf16.mxu0 %v3335
        %4297 = vmatpush1.bf16.msra.mxu0 %v3334
        %4298 = vmatprep.subr.bf16.mxu0 %v3339
        %4299 = vmatpush1.bf16.msra.mxu0 %v3338
        %4300 = vmatprep.subr.bf16.mxu0 %v3343
        %4301 = vmatpush1.bf16.msra.mxu0 %v3342
        %4302 = vmatprep.subr.bf16.mxu0 %v3347
        %4303 = vmatpush1.bf16.msra.mxu0 %v3346
        %4304 = vmatprep.subr.bf16.mxu0 %v3351
        %4305 = vmatpush1.bf16.msra.mxu0 %v3350
        %4306 = vmatprep.subr.bf16.mxu0 %v3355
        %4307 = vmatpush1.bf16.msra.mxu0 %v3354
        %4308 = vmatprep.subr.bf16.mxu0 %v3359
        %4309 = vmatpush1.bf16.msra.mxu0 %v3358
        %4310 = vmatprep.subr.bf16.mxu0 %v3363
        %4311 = vmatpush1.bf16.msra.mxu0 %v3362
        %4312 = vmatprep.mubr.bf16.mxu0 %v1093
        %4313 = vmatmul.mubr.bf16.gmra.mrb[0].mxu0 %v1092
        %v4314 = vpop.f32.mrb[0].mxu0
        %v4315 = vadd.f32 %v4274, %v4314
        %v4316 = vpop.f32.mrb[0].mxu0
        %v4317 = vadd.f32 %v4276, %v4316
        %v4318 = vpop.f32.mrb[0].mxu0
        %v4319 = vpop.f32.mrb[0].mxu0
        %4320 = vdwg.mxu0
        %4321 = vmatprep.subr.bf16.mxu0 %v3367
        %4322 = vmatpush1.bf16.msra.mxu0 %v3366
        %4323 = vmatprep.subr.bf16.mxu0 %v3371
        %4324 = vmatpush1.bf16.msra.mxu0 %v3370
        %4325 = vmatprep.subr.bf16.mxu0 %v3375
        %4326 = vmatpush1.bf16.msra.mxu0 %v3374
        %4327 = vmatprep.subr.bf16.mxu0 %v3379
        %4328 = vmatpush1.bf16.msra.mxu0 %v3378
        %4329 = vmatprep.subr.bf16.mxu0 %v3383
        %4330 = vmatpush1.bf16.msra.mxu0 %v3382
        %4331 = vmatprep.subr.bf16.mxu0 %v3387
        %4332 = vmatpush1.bf16.msra.mxu0 %v3386
        %4333 = vmatprep.subr.bf16.mxu0 %v3391
        %4334 = vmatpush1.bf16.msra.mxu0 %v3390
        %4335 = vmatprep.subr.bf16.mxu0 %v3395
        %4336 = vmatpush1.bf16.msra.mxu0 %v3394
        %4337 = vmatprep.subr.bf16.mxu0 %v3399
        %4338 = vmatpush1.bf16.msra.mxu0 %v3398
        %4339 = vmatprep.subr.bf16.mxu0 %v3403
        %4340 = vmatpush1.bf16.msra.mxu0 %v3402
        %4341 = vmatprep.subr.bf16.mxu0 %v3407
        %4342 = vmatpush1.bf16.msra.mxu0 %v3406
        %4343 = vmatprep.subr.bf16.mxu0 %v3411
        %4344 = vmatpush1.bf16.msra.mxu0 %v3410
        %4345 = vmatprep.subr.bf16.mxu0 %v3415
        %4346 = vmatpush1.bf16.msra.mxu0 %v3414
        %4347 = vmatprep.subr.bf16.mxu0 %v3419
        %4348 = vmatpush1.bf16.msra.mxu0 %v3418
        %4349 = vmatprep.subr.bf16.mxu0 %v3423
        %4350 = vmatpush1.bf16.msra.mxu0 %v3422
        %4351 = vmatprep.subr.bf16.mxu0 %v3427
        %4352 = vmatpush1.bf16.msra.mxu0 %v3426
        %4353 = vmatprep.mubr.bf16.mxu0 %v1095
        %4354 = vmatmul.mubr.bf16.gmra.mrb[0].mxu0 %v1094
        %v4355 = vpop.f32.mrb[0].mxu0
        %v4356 = vadd.f32 %v4315, %v4355
        %v4357 = vpop.f32.mrb[0].mxu0
        %v4358 = vadd.f32 %v4317, %v4357
        %v4359 = vpop.f32.mrb[0].mxu0
        %v4360 = vpop.f32.mrb[0].mxu0
        %4361 = vdwg.mxu0
        %4362 = vmatprep.subr.bf16.mxu0 %v3431
        %4363 = vmatpush1.bf16.msra.mxu0 %v3430
        %4364 = vmatprep.subr.bf16.mxu0 %v3435
        %4365 = vmatpush1.bf16.msra.mxu0 %v3434
        %4366 = vmatprep.subr.bf16.mxu0 %v3439
        %4367 = vmatpush1.bf16.msra.mxu0 %v3438
        %4368 = vmatprep.subr.bf16.mxu0 %v3443
        %4369 = vmatpush1.bf16.msra.mxu0 %v3442
        %4370 = vmatprep.subr.bf16.mxu0 %v3447
        %4371 = vmatpush1.bf16.msra.mxu0 %v3446
        %4372 = vmatprep.subr.bf16.mxu0 %v3451
        %4373 = vmatpush1.bf16.msra.mxu0 %v3450
        %4374 = vmatprep.subr.bf16.mxu0 %v3455
        %4375 = vmatpush1.bf16.msra.mxu0 %v3454
        %4376 = vmatprep.subr.bf16.mxu0 %v3459
        %4377 = vmatpush1.bf16.msra.mxu0 %v3458
        %4378 = vmatprep.subr.bf16.mxu0 %v3463
        %4379 = vmatpush1.bf16.msra.mxu0 %v3462
        %4380 = vmatprep.subr.bf16.mxu0 %v3467
        %4381 = vmatpush1.bf16.msra.mxu0 %v3466
        %4382 = vmatprep.subr.bf16.mxu0 %v3471
        %4383 = vmatpush1.bf16.msra.mxu0 %v3470
        %4384 = vmatprep.subr.bf16.mxu0 %v3475
        %4385 = vmatpush1.bf16.msra.mxu0 %v3474
        %4386 = vmatprep.subr.bf16.mxu0 %v3479
        %4387 = vmatpush1.bf16.msra.mxu0 %v3478
        %4388 = vmatprep.subr.bf16.mxu0 %v3483
        %4389 = vmatpush1.bf16.msra.mxu0 %v3482
        %4390 = vmatprep.subr.bf16.mxu0 %v3487
        %4391 = vmatpush1.bf16.msra.mxu0 %v3486
        %4392 = vmatprep.subr.bf16.mxu0 %v3491
        %4393 = vmatpush1.bf16.msra.mxu0 %v3490
        %4394 = vmatprep.mubr.bf16.mxu0 %v1097
        %4395 = vmatmul.mubr.bf16.gmra.mrb[0].mxu0 %v1096
        %v4396 = vpop.f32.mrb[0].mxu0
        %v4397 = vadd.f32 %v4356, %v4396
        %v4398 = vpop.f32.mrb[0].mxu0
        %v4399 = vadd.f32 %v4358, %v4398
        %v4400 = vpop.f32.mrb[0].mxu0
        %v4401 = vpop.f32.mrb[0].mxu0
        %4402 = vdwg.mxu0
        %4403 = vmatprep.subr.bf16.mxu0 %v3495
        %4404 = vmatpush1.bf16.msra.mxu0 %v3494
        %4405 = vmatprep.subr.bf16.mxu0 %v3499
        %4406 = vmatpush1.bf16.msra.mxu0 %v3498
        %4407 = vmatprep.subr.bf16.mxu0 %v3503
        %4408 = vmatpush1.bf16.msra.mxu0 %v3502
        %4409 = vmatprep.subr.bf16.mxu0 %v3507
        %4410 = vmatpush1.bf16.msra.mxu0 %v3506
        %4411 = vmatprep.subr.bf16.mxu0 %v3511
        %4412 = vmatpush1.bf16.msra.mxu0 %v3510
        %4413 = vmatprep.subr.bf16.mxu0 %v3515
        %4414 = vmatpush1.bf16.msra.mxu0 %v3514
        %4415 = vmatprep.subr.bf16.mxu0 %v3519
        %4416 = vmatpush1.bf16.msra.mxu0 %v3518
        %4417 = vmatprep.subr.bf16.mxu0 %v3523
        %4418 = vmatpush1.bf16.msra.mxu0 %v3522
        %4419 = vmatprep.subr.bf16.mxu0 %v3527
        %4420 = vmatpush1.bf16.msra.mxu0 %v3526
        %4421 = vmatprep.subr.bf16.mxu0 %v3531
        %4422 = vmatpush1.bf16.msra.mxu0 %v3530
        %4423 = vmatprep.subr.bf16.mxu0 %v3535
        %4424 = vmatpush1.bf16.msra.mxu0 %v3534
        %4425 = vmatprep.subr.bf16.mxu0 %v3539
        %4426 = vmatpush1.bf16.msra.mxu0 %v3538
        %4427 = vmatprep.subr.bf16.mxu0 %v3543
        %4428 = vmatpush1.bf16.msra.mxu0 %v3542
        %4429 = vmatprep.subr.bf16.mxu0 %v3547
        %4430 = vmatpush1.bf16.msra.mxu0 %v3546
        %4431 = vmatprep.subr.bf16.mxu0 %v3551
        %4432 = vmatpush1.bf16.msra.mxu0 %v3550
        %4433 = vmatprep.subr.bf16.mxu0 %v3555
        %4434 = vmatpush1.bf16.msra.mxu0 %v3554
        %4435 = vmatprep.mubr.bf16.mxu0 %v1099
        %4436 = vmatmul.mubr.bf16.gmra.mrb[0].mxu0 %v1098
        %v4437 = vpop.f32.mrb[0].mxu0
        %v4438 = vadd.f32 %v4397, %v4437
        %v4439 = vpop.f32.mrb[0].mxu0
        %v4440 = vadd.f32 %v4399, %v4439
        %v4441 = vpop.f32.mrb[0].mxu0
        %v4442 = vpop.f32.mrb[0].mxu0
        %4443 = vdwg.mxu0
        %4444 = vmatprep.subr.bf16.mxu0 %v3559
        %4445 = vmatpush1.bf16.msra.mxu0 %v3558
        %4446 = vmatprep.subr.bf16.mxu0 %v3563
        %4447 = vmatpush1.bf16.msra.mxu0 %v3562
        %4448 = vmatprep.subr.bf16.mxu0 %v3567
        %4449 = vmatpush1.bf16.msra.mxu0 %v3566
        %4450 = vmatprep.subr.bf16.mxu0 %v3571
        %4451 = vmatpush1.bf16.msra.mxu0 %v3570
        %4452 = vmatprep.subr.bf16.mxu0 %v3575
        %4453 = vmatpush1.bf16.msra.mxu0 %v3574
        %4454 = vmatprep.subr.bf16.mxu0 %v3579
        %4455 = vmatpush1.bf16.msra.mxu0 %v3578
        %4456 = vmatprep.subr.bf16.mxu0 %v3583
        %4457 = vmatpush1.bf16.msra.mxu0 %v3582
        %4458 = vmatprep.subr.bf16.mxu0 %v3587
        %4459 = vmatpush1.bf16.msra.mxu0 %v3586
        %4460 = vmatprep.subr.bf16.mxu0 %v3591
        %4461 = vmatpush1.bf16.msra.mxu0 %v3590
        %4462 = vmatprep.subr.bf16.mxu0 %v3595
        %4463 = vmatpush1.bf16.msra.mxu0 %v3594
        %4464 = vmatprep.subr.bf16.mxu0 %v3599
        %4465 = vmatpush1.bf16.msra.mxu0 %v3598
        %4466 = vmatprep.subr.bf16.mxu0 %v3603
        %4467 = vmatpush1.bf16.msra.mxu0 %v3602
        %4468 = vmatprep.subr.bf16.mxu0 %v3607
        %4469 = vmatpush1.bf16.msra.mxu0 %v3606
        %4470 = vmatprep.subr.bf16.mxu0 %v3611
        %4471 = vmatpush1.bf16.msra.mxu0 %v3610
        %4472 = vmatprep.subr.bf16.mxu0 %v3615
        %4473 = vmatpush1.bf16.msra.mxu0 %v3614
        %4474 = vmatprep.subr.bf16.mxu0 %v3619
        %4475 = vmatpush1.bf16.msra.mxu0 %v3618
        %4476 = vmatprep.mubr.bf16.mxu0 %v1101
        %4477 = vmatmul.mubr.bf16.gmra.mrb[0].mxu0 %v1100
        %v4478 = vpop.f32.mrb[0].mxu0
        %v4479 = vadd.f32 %v4438, %v4478
        %v4480 = vpop.f32.mrb[0].mxu0
        %v4481 = vadd.f32 %v4440, %v4480
        %v4482 = vpop.f32.mrb[0].mxu0
        %v4483 = vpop.f32.mrb[0].mxu0
        %4484 = vdwg.mxu0
        %4485 = vmatprep.subr.bf16.mxu0 %v3623
        %4486 = vmatpush1.bf16.msra.mxu0 %v3622
        %4487 = vmatprep.subr.bf16.mxu0 %v3627
        %4488 = vmatpush1.bf16.msra.mxu0 %v3626
        %4489 = vmatprep.subr.bf16.mxu0 %v3631
        %4490 = vmatpush1.bf16.msra.mxu0 %v3630
        %4491 = vmatprep.subr.bf16.mxu0 %v3635
        %4492 = vmatpush1.bf16.msra.mxu0 %v3634
        %4493 = vmatprep.subr.bf16.mxu0 %v3639
        %4494 = vmatpush1.bf16.msra.mxu0 %v3638
        %4495 = vmatprep.subr.bf16.mxu0 %v3643
        %4496 = vmatpush1.bf16.msra.mxu0 %v3642
        %4497 = vmatprep.subr.bf16.mxu0 %v3647
        %4498 = vmatpush1.bf16.msra.mxu0 %v3646
        %4499 = vmatprep.subr.bf16.mxu0 %v3651
        %4500 = vmatpush1.bf16.msra.mxu0 %v3650
        %4501 = vmatprep.subr.bf16.mxu0 %v3655
        %4502 = vmatpush1.bf16.msra.mxu0 %v3654
        %4503 = vmatprep.subr.bf16.mxu0 %v3659
        %4504 = vmatpush1.bf16.msra.mxu0 %v3658
        %4505 = vmatprep.subr.bf16.mxu0 %v3663
        %4506 = vmatpush1.bf16.msra.mxu0 %v3662
        %4507 = vmatprep.subr.bf16.mxu0 %v3667
        %4508 = vmatpush1.bf16.msra.mxu0 %v3666
        %4509 = vmatprep.subr.bf16.mxu0 %v3671
        %4510 = vmatpush1.bf16.msra.mxu0 %v3670
        %4511 = vmatprep.subr.bf16.mxu0 %v3675
        %4512 = vmatpush1.bf16.msra.mxu0 %v3674
        %4513 = vmatprep.subr.bf16.mxu0 %v3679
        %4514 = vmatpush1.bf16.msra.mxu0 %v3678
        %4515 = vmatprep.subr.bf16.mxu0 %v3683
        %4516 = vmatpush1.bf16.msra.mxu0 %v3682
        %4517 = vmatprep.mubr.bf16.mxu0 %v1103
        %4518 = vmatmul.mubr.bf16.gmra.mrb[0].mxu0 %v1102
        %v4519 = vpop.f32.mrb[0].mxu0
        %v4520 = vadd.f32 %v4479, %v4519
        %v4521 = vpop.f32.mrb[0].mxu0
        %v4522 = vadd.f32 %v4481, %v4521
        %v4523 = vpop.f32.mrb[0].mxu0
        %v4524 = vpop.f32.mrb[0].mxu0
        %4525 = vdwg.mxu0
        %4526 = vmatprep.subr.bf16.mxu0 %v3177
        %4527 = vmatpush1.bf16.msra.mxu0 %v3176
        %4528 = vmatprep.subr.bf16.mxu0 %v3181
        %4529 = vmatpush1.bf16.msra.mxu0 %v3180
        %4530 = vmatprep.subr.bf16.mxu0 %v3185
        %4531 = vmatpush1.bf16.msra.mxu0 %v3184
        %4532 = vmatprep.subr.bf16.mxu0 %v3189
        %4533 = vmatpush1.bf16.msra.mxu0 %v3188
        %4534 = vmatprep.subr.bf16.mxu0 %v3193
        %4535 = vmatpush1.bf16.msra.mxu0 %v3192
        %4536 = vmatprep.subr.bf16.mxu0 %v3197
        %4537 = vmatpush1.bf16.msra.mxu0 %v3196
        %4538 = vmatprep.subr.bf16.mxu0 %v3201
        %4539 = vmatpush1.bf16.msra.mxu0 %v3200
        %4540 = vmatprep.subr.bf16.mxu0 %v3205
        %4541 = vmatpush1.bf16.msra.mxu0 %v3204
        %4542 = vmatprep.subr.bf16.mxu0 %v3209
        %4543 = vmatpush1.bf16.msra.mxu0 %v3208
        %4544 = vmatprep.subr.bf16.mxu0 %v3213
        %4545 = vmatpush1.bf16.msra.mxu0 %v3212
        %4546 = vmatprep.subr.bf16.mxu0 %v3217
        %4547 = vmatpush1.bf16.msra.mxu0 %v3216
        %4548 = vmatprep.subr.bf16.mxu0 %v3221
        %4549 = vmatpush1.bf16.msra.mxu0 %v3220
        %4550 = vmatprep.subr.bf16.mxu0 %v3225
        %4551 = vmatpush1.bf16.msra.mxu0 %v3224
        %4552 = vmatprep.subr.bf16.mxu0 %v3229
        %4553 = vmatpush1.bf16.msra.mxu0 %v3228
        %4554 = vmatprep.subr.bf16.mxu0 %v3233
        %4555 = vmatpush1.bf16.msra.mxu0 %v3232
        %4556 = vmatprep.subr.bf16.mxu0 %v3237
        %4557 = vmatpush1.bf16.msra.mxu0 %v3236
        %4558 = vmatprep.mubr.bf16.mxu0 %v1089
        %4559 = vmatmul.mubr.bf16.gmra.mrb[0].mxu0 %v1088
        %v4560 = vpop.f32.mrb[0].mxu0
        %v4561 = vadd.f32 %v1629, %v4560
        %v4562 = vpop.f32.mrb[0].mxu0
        %v4563 = vadd.f32 %v1633, %v4562
        %v4564 = vpop.f32.mrb[0].mxu0
        %v4565 = vpop.f32.mrb[0].mxu0
        %4566 = vdwg.mxu0
        %4567 = vmatprep.subr.bf16.mxu0 %v3241
        %4568 = vmatpush1.bf16.msra.mxu0 %v3240
        %4569 = vmatprep.subr.bf16.mxu0 %v3245
        %4570 = vmatpush1.bf16.msra.mxu0 %v3244
        %4571 = vmatprep.subr.bf16.mxu0 %v3249
        %4572 = vmatpush1.bf16.msra.mxu0 %v3248
        %4573 = vmatprep.subr.bf16.mxu0 %v3253
        %4574 = vmatpush1.bf16.msra.mxu0 %v3252
        %4575 = vmatprep.subr.bf16.mxu0 %v3257
        %4576 = vmatpush1.bf16.msra.mxu0 %v3256
        %4577 = vmatprep.subr.bf16.mxu0 %v3261
        %4578 = vmatpush1.bf16.msra.mxu0 %v3260
        %4579 = vmatprep.subr.bf16.mxu0 %v3265
        %4580 = vmatpush1.bf16.msra.mxu0 %v3264
        %4581 = vmatprep.subr.bf16.mxu0 %v3269
        %4582 = vmatpush1.bf16.msra.mxu0 %v3268
        %4583 = vmatprep.subr.bf16.mxu0 %v3273
        %4584 = vmatpush1.bf16.msra.mxu0 %v3272
        %4585 = vmatprep.subr.bf16.mxu0 %v3277
        %4586 = vmatpush1.bf16.msra.mxu0 %v3276
        %4587 = vmatprep.subr.bf16.mxu0 %v3281
        %4588 = vmatpush1.bf16.msra.mxu0 %v3280
        %4589 = vmatprep.subr.bf16.mxu0 %v3285
        %4590 = vmatpush1.bf16.msra.mxu0 %v3284
        %4591 = vmatprep.subr.bf16.mxu0 %v3289
        %4592 = vmatpush1.bf16.msra.mxu0 %v3288
        %4593 = vmatprep.subr.bf16.mxu0 %v3293
        %4594 = vmatpush1.bf16.msra.mxu0 %v3292
        %4595 = vmatprep.subr.bf16.mxu0 %v3297
        %4596 = vmatpush1.bf16.msra.mxu0 %v3296
        %4597 = vmatprep.subr.bf16.mxu0 %v3301
        %4598 = vmatpush1.bf16.msra.mxu0 %v3300
        %4599 = vmatprep.mubr.bf16.mxu0 %v1091
        %4600 = vmatmul.mubr.bf16.gmra.mrb[0].mxu0 %v1090
        %v4601 = vpop.f32.mrb[0].mxu0
        %v4602 = vadd.f32 %v4561, %v4601
        %v4603 = vpop.f32.mrb[0].mxu0
        %v4604 = vadd.f32 %v4563, %v4603
        %v4605 = vpop.f32.mrb[0].mxu0
        %v4606 = vpop.f32.mrb[0].mxu0
        %4607 = vdwg.mxu0
        %4608 = vmatprep.subr.bf16.mxu0 %v3305
        %4609 = vmatpush1.bf16.msra.mxu0 %v3304
        %4610 = vmatprep.subr.bf16.mxu0 %v3309
        %4611 = vmatpush1.bf16.msra.mxu0 %v3308
        %4612 = vmatprep.subr.bf16.mxu0 %v3313
        %4613 = vmatpush1.bf16.msra.mxu0 %v3312
        %4614 = vmatprep.subr.bf16.mxu0 %v3317
        %4615 = vmatpush1.bf16.msra.mxu0 %v3316
        %4616 = vmatprep.subr.bf16.mxu0 %v3321
        %4617 = vmatpush1.bf16.msra.mxu0 %v3320
        %4618 = vmatprep.subr.bf16.mxu0 %v3325
        %4619 = vmatpush1.bf16.msra.mxu0 %v3324
        %4620 = vmatprep.subr.bf16.mxu0 %v3329
        %4621 = vmatpush1.bf16.msra.mxu0 %v3328
        %4622 = vmatprep.subr.bf16.mxu0 %v3333
        %4623 = vmatpush1.bf16.msra.mxu0 %v3332
        %4624 = vmatprep.subr.bf16.mxu0 %v3337
        %4625 = vmatpush1.bf16.msra.mxu0 %v3336
        %4626 = vmatprep.subr.bf16.mxu0 %v3341
        %4627 = vmatpush1.bf16.msra.mxu0 %v3340
        %4628 = vmatprep.subr.bf16.mxu0 %v3345
        %4629 = vmatpush1.bf16.msra.mxu0 %v3344
        %4630 = vmatprep.subr.bf16.mxu0 %v3349
        %4631 = vmatpush1.bf16.msra.mxu0 %v3348
        %4632 = vmatprep.subr.bf16.mxu0 %v3353
        %4633 = vmatpush1.bf16.msra.mxu0 %v3352
        %4634 = vmatprep.subr.bf16.mxu0 %v3357
        %4635 = vmatpush1.bf16.msra.mxu0 %v3356
        %4636 = vmatprep.subr.bf16.mxu0 %v3361
        %4637 = vmatpush1.bf16.msra.mxu0 %v3360
        %4638 = vmatprep.subr.bf16.mxu0 %v3365
        %4639 = vmatpush1.bf16.msra.mxu0 %v3364
        %4640 = vmatprep.mubr.bf16.mxu0 %v1093
        %4641 = vmatmul.mubr.bf16.gmra.mrb[0].mxu0 %v1092
        %v4642 = vpop.f32.mrb[0].mxu0
        %v4643 = vadd.f32 %v4602, %v4642
        %v4644 = vpop.f32.mrb[0].mxu0
        %v4645 = vadd.f32 %v4604, %v4644
        %v4646 = vpop.f32.mrb[0].mxu0
        %v4647 = vpop.f32.mrb[0].mxu0
        %4648 = vdwg.mxu0
        %4649 = vmatprep.subr.bf16.mxu0 %v3369
        %4650 = vmatpush1.bf16.msra.mxu0 %v3368
        %4651 = vmatprep.subr.bf16.mxu0 %v3373
        %4652 = vmatpush1.bf16.msra.mxu0 %v3372
        %4653 = vmatprep.subr.bf16.mxu0 %v3377
        %4654 = vmatpush1.bf16.msra.mxu0 %v3376
        %4655 = vmatprep.subr.bf16.mxu0 %v3381
        %4656 = vmatpush1.bf16.msra.mxu0 %v3380
        %4657 = vmatprep.subr.bf16.mxu0 %v3385
        %4658 = vmatpush1.bf16.msra.mxu0 %v3384
        %4659 = vmatprep.subr.bf16.mxu0 %v3389
        %4660 = vmatpush1.bf16.msra.mxu0 %v3388
        %4661 = vmatprep.subr.bf16.mxu0 %v3393
        %4662 = vmatpush1.bf16.msra.mxu0 %v3392
        %4663 = vmatprep.subr.bf16.mxu0 %v3397
        %4664 = vmatpush1.bf16.msra.mxu0 %v3396
        %4665 = vmatprep.subr.bf16.mxu0 %v3401
        %4666 = vmatpush1.bf16.msra.mxu0 %v3400
        %4667 = vmatprep.subr.bf16.mxu0 %v3405
        %4668 = vmatpush1.bf16.msra.mxu0 %v3404
        %4669 = vmatprep.subr.bf16.mxu0 %v3409
        %4670 = vmatpush1.bf16.msra.mxu0 %v3408
        %4671 = vmatprep.subr.bf16.mxu0 %v3413
        %4672 = vmatpush1.bf16.msra.mxu0 %v3412
        %4673 = vmatprep.subr.bf16.mxu0 %v3417
        %4674 = vmatpush1.bf16.msra.mxu0 %v3416
        %4675 = vmatprep.subr.bf16.mxu0 %v3421
        %4676 = vmatpush1.bf16.msra.mxu0 %v3420
        %4677 = vmatprep.subr.bf16.mxu0 %v3425
        %4678 = vmatpush1.bf16.msra.mxu0 %v3424
        %4679 = vmatprep.subr.bf16.mxu0 %v3429
        %4680 = vmatpush1.bf16.msra.mxu0 %v3428
        %4681 = vmatprep.mubr.bf16.mxu0 %v1095
        %4682 = vmatmul.mubr.bf16.gmra.mrb[0].mxu0 %v1094
        %v4683 = vpop.f32.mrb[0].mxu0
        %v4684 = vadd.f32 %v4643, %v4683
        %v4685 = vpop.f32.mrb[0].mxu0
        %v4686 = vadd.f32 %v4645, %v4685
        %v4687 = vpop.f32.mrb[0].mxu0
        %v4688 = vpop.f32.mrb[0].mxu0
        %4689 = vdwg.mxu0
        %4690 = vmatprep.subr.bf16.mxu0 %v3433
        %4691 = vmatpush1.bf16.msra.mxu0 %v3432
        %4692 = vmatprep.subr.bf16.mxu0 %v3437
        %4693 = vmatpush1.bf16.msra.mxu0 %v3436
        %4694 = vmatprep.subr.bf16.mxu0 %v3441
        %4695 = vmatpush1.bf16.msra.mxu0 %v3440
        %4696 = vmatprep.subr.bf16.mxu0 %v3445
        %4697 = vmatpush1.bf16.msra.mxu0 %v3444
        %4698 = vmatprep.subr.bf16.mxu0 %v3449
        %4699 = vmatpush1.bf16.msra.mxu0 %v3448
        %4700 = vmatprep.subr.bf16.mxu0 %v3453
        %4701 = vmatpush1.bf16.msra.mxu0 %v3452
        %4702 = vmatprep.subr.bf16.mxu0 %v3457
        %4703 = vmatpush1.bf16.msra.mxu0 %v3456
        %4704 = vmatprep.subr.bf16.mxu0 %v3461
        %4705 = vmatpush1.bf16.msra.mxu0 %v3460
        %4706 = vmatprep.subr.bf16.mxu0 %v3465
        %4707 = vmatpush1.bf16.msra.mxu0 %v3464
        %4708 = vmatprep.subr.bf16.mxu0 %v3469
        %4709 = vmatpush1.bf16.msra.mxu0 %v3468
        %4710 = vmatprep.subr.bf16.mxu0 %v3473
        %4711 = vmatpush1.bf16.msra.mxu0 %v3472
        %4712 = vmatprep.subr.bf16.mxu0 %v3477
        %4713 = vmatpush1.bf16.msra.mxu0 %v3476
        %4714 = vmatprep.subr.bf16.mxu0 %v3481
        %4715 = vmatpush1.bf16.msra.mxu0 %v3480
        %4716 = vmatprep.subr.bf16.mxu0 %v3485
        %4717 = vmatpush1.bf16.msra.mxu0 %v3484
        %4718 = vmatprep.subr.bf16.mxu0 %v3489
        %4719 = vmatpush1.bf16.msra.mxu0 %v3488
        %4720 = vmatprep.subr.bf16.mxu0 %v3493
        %4721 = vmatpush1.bf16.msra.mxu0 %v3492
        %4722 = vmatprep.mubr.bf16.mxu0 %v1097
        %4723 = vmatmul.mubr.bf16.gmra.mrb[0].mxu0 %v1096
        %v4724 = vpop.f32.mrb[0].mxu0
        %v4725 = vadd.f32 %v4684, %v4724
        %v4726 = vpop.f32.mrb[0].mxu0
        %v4727 = vadd.f32 %v4686, %v4726
        %v4728 = vpop.f32.mrb[0].mxu0
        %v4729 = vpop.f32.mrb[0].mxu0
        %4730 = vdwg.mxu0
        %4731 = vmatprep.subr.bf16.mxu0 %v3497
        %4732 = vmatpush1.bf16.msra.mxu0 %v3496
        %4733 = vmatprep.subr.bf16.mxu0 %v3501
        %4734 = vmatpush1.bf16.msra.mxu0 %v3500
        %4735 = vmatprep.subr.bf16.mxu0 %v3505
        %4736 = vmatpush1.bf16.msra.mxu0 %v3504
        %4737 = vmatprep.subr.bf16.mxu0 %v3509
        %4738 = vmatpush1.bf16.msra.mxu0 %v3508
        %4739 = vmatprep.subr.bf16.mxu0 %v3513
        %4740 = vmatpush1.bf16.msra.mxu0 %v3512
        %4741 = vmatprep.subr.bf16.mxu0 %v3517
        %4742 = vmatpush1.bf16.msra.mxu0 %v3516
        %4743 = vmatprep.subr.bf16.mxu0 %v3521
        %4744 = vmatpush1.bf16.msra.mxu0 %v3520
        %4745 = vmatprep.subr.bf16.mxu0 %v3525
        %4746 = vmatpush1.bf16.msra.mxu0 %v3524
        %4747 = vmatprep.subr.bf16.mxu0 %v3529
        %4748 = vmatpush1.bf16.msra.mxu0 %v3528
        %4749 = vmatprep.subr.bf16.mxu0 %v3533
        %4750 = vmatpush1.bf16.msra.mxu0 %v3532
        %4751 = vmatprep.subr.bf16.mxu0 %v3537
        %4752 = vmatpush1.bf16.msra.mxu0 %v3536
        %4753 = vmatprep.subr.bf16.mxu0 %v3541
        %4754 = vmatpush1.bf16.msra.mxu0 %v3540
        %4755 = vmatprep.subr.bf16.mxu0 %v3545
        %4756 = vmatpush1.bf16.msra.mxu0 %v3544
        %4757 = vmatprep.subr.bf16.mxu0 %v3549
        %4758 = vmatpush1.bf16.msra.mxu0 %v3548
        %4759 = vmatprep.subr.bf16.mxu0 %v3553
        %4760 = vmatpush1.bf16.msra.mxu0 %v3552
        %4761 = vmatprep.subr.bf16.mxu0 %v3557
        %4762 = vmatpush1.bf16.msra.mxu0 %v3556
        %4763 = vmatprep.mubr.bf16.mxu0 %v1099
        %4764 = vmatmul.mubr.bf16.gmra.mrb[0].mxu0 %v1098
        %v4765 = vpop.f32.mrb[0].mxu0
        %v4766 = vadd.f32 %v4725, %v4765
        %v4767 = vpop.f32.mrb[0].mxu0
        %v4768 = vadd.f32 %v4727, %v4767
        %v4769 = vpop.f32.mrb[0].mxu0
        %v4770 = vpop.f32.mrb[0].mxu0
        %4771 = vdwg.mxu0
        %4772 = vmatprep.subr.bf16.mxu0 %v3561
        %4773 = vmatpush1.bf16.msra.mxu0 %v3560
        %4774 = vmatprep.subr.bf16.mxu0 %v3565
        %4775 = vmatpush1.bf16.msra.mxu0 %v3564
        %4776 = vmatprep.subr.bf16.mxu0 %v3569
        %4777 = vmatpush1.bf16.msra.mxu0 %v3568
        %4778 = vmatprep.subr.bf16.mxu0 %v3573
        %4779 = vmatpush1.bf16.msra.mxu0 %v3572
        %4780 = vmatprep.subr.bf16.mxu0 %v3577
        %4781 = vmatpush1.bf16.msra.mxu0 %v3576
        %4782 = vmatprep.subr.bf16.mxu0 %v3581
        %4783 = vmatpush1.bf16.msra.mxu0 %v3580
        %4784 = vmatprep.subr.bf16.mxu0 %v3585
        %4785 = vmatpush1.bf16.msra.mxu0 %v3584
        %4786 = vmatprep.subr.bf16.mxu0 %v3589
        %4787 = vmatpush1.bf16.msra.mxu0 %v3588
        %4788 = vmatprep.subr.bf16.mxu0 %v3593
        %4789 = vmatpush1.bf16.msra.mxu0 %v3592
        %4790 = vmatprep.subr.bf16.mxu0 %v3597
        %4791 = vmatpush1.bf16.msra.mxu0 %v3596
        %4792 = vmatprep.subr.bf16.mxu0 %v3601
        %4793 = vmatpush1.bf16.msra.mxu0 %v3600
        %4794 = vmatprep.subr.bf16.mxu0 %v3605
        %4795 = vmatpush1.bf16.msra.mxu0 %v3604
        %4796 = vmatprep.subr.bf16.mxu0 %v3609
        %4797 = vmatpush1.bf16.msra.mxu0 %v3608
        %4798 = vmatprep.subr.bf16.mxu0 %v3613
        %4799 = vmatpush1.bf16.msra.mxu0 %v3612
        %4800 = vmatprep.subr.bf16.mxu0 %v3617
        %4801 = vmatpush1.bf16.msra.mxu0 %v3616
        %4802 = vmatprep.subr.bf16.mxu0 %v3621
        %4803 = vmatpush1.bf16.msra.mxu0 %v3620
        %4804 = vmatprep.mubr.bf16.mxu0 %v1101
        %4805 = vmatmul.mubr.bf16.gmra.mrb[0].mxu0 %v1100
        %v4806 = vpop.f32.mrb[0].mxu0
        %v4807 = vadd.f32 %v4766, %v4806
        %v4808 = vpop.f32.mrb[0].mxu0
        %v4809 = vadd.f32 %v4768, %v4808
        %v4810 = vpop.f32.mrb[0].mxu0
        %v4811 = vpop.f32.mrb[0].mxu0
        %4812 = vdwg.mxu0
        %4813 = vmatprep.subr.bf16.mxu0 %v3625
        %4814 = vmatpush1.bf16.msra.mxu0 %v3624
        %4815 = vmatprep.subr.bf16.mxu0 %v3629
        %4816 = vmatpush1.bf16.msra.mxu0 %v3628
        %4817 = vmatprep.subr.bf16.mxu0 %v3633
        %4818 = vmatpush1.bf16.msra.mxu0 %v3632
        %4819 = vmatprep.subr.bf16.mxu0 %v3637
        %4820 = vmatpush1.bf16.msra.mxu0 %v3636
        %4821 = vmatprep.subr.bf16.mxu0 %v3641
        %4822 = vmatpush1.bf16.msra.mxu0 %v3640
        %4823 = vmatprep.subr.bf16.mxu0 %v3645
        %4824 = vmatpush1.bf16.msra.mxu0 %v3644
        %4825 = vmatprep.subr.bf16.mxu0 %v3649
        %4826 = vmatpush1.bf16.msra.mxu0 %v3648
        %4827 = vmatprep.subr.bf16.mxu0 %v3653
        %4828 = vmatpush1.bf16.msra.mxu0 %v3652
        %4829 = vmatprep.subr.bf16.mxu0 %v3657
        %4830 = vmatpush1.bf16.msra.mxu0 %v3656
        %4831 = vmatprep.subr.bf16.mxu0 %v3661
        %4832 = vmatpush1.bf16.msra.mxu0 %v3660
        %4833 = vmatprep.subr.bf16.mxu0 %v3665
        %4834 = vmatpush1.bf16.msra.mxu0 %v3664
        %4835 = vmatprep.subr.bf16.mxu0 %v3669
        %4836 = vmatpush1.bf16.msra.mxu0 %v3668
        %4837 = vmatprep.subr.bf16.mxu0 %v3673
        %4838 = vmatpush1.bf16.msra.mxu0 %v3672
        %4839 = vmatprep.subr.bf16.mxu0 %v3677
        %4840 = vmatpush1.bf16.msra.mxu0 %v3676
        %4841 = vmatprep.subr.bf16.mxu0 %v3681
        %4842 = vmatpush1.bf16.msra.mxu0 %v3680
        %4843 = vmatprep.subr.bf16.mxu0 %v3685
        %4844 = vmatpush1.bf16.msra.mxu0 %v3684
        %4845 = vmatprep.mubr.bf16.mxu0 %v1103
        %4846 = vmatmul.mubr.bf16.gmra.mrb[0].mxu0 %v1102
        %v4847 = vpop.f32.mrb[0].mxu0
        %v4848 = vadd.f32 %v4807, %v4847
        %v4849 = vpop.f32.mrb[0].mxu0
        %v4850 = vadd.f32 %v4809, %v4849
        %v4851 = vpop.f32.mrb[0].mxu0
        %v4852 = vpop.f32.mrb[0].mxu0
        %4853 = vdwg.mxu0
        %v4854 = vmax.f32 %v4520, 0.0
        %v4855 = vmax.f32 %v4522, 0.0
        %v4856 = vmax.f32 %v4848, 0.0
        %v4857 = vmax.f32 %v4850, 0.0
        %v4858 = vpack.c.bf16 %v4854, %v4854
        %v4859 = vpack.c.bf16 %v4855, %v4855
        %v4860 = vpack.c.bf16 %v4856, %v4856
        %v4861 = vpack.c.bf16 %v4857, %v4857
        %v4862 = vld [vmem:[%s370] sm:$0xf]
        %v4863 = vld [vmem:[%s370 + $0x4] sm:$0xf]
        %v4864 = vld [vmem:[%s370 + $0x8] sm:$0xf]
        %v4865 = vld [vmem:[%s370 + $0xc] sm:$0xf]
        %v4866 = vld [vmem:[%s370 + $0x10] sm:$0xf]
        %v4867 = vld [vmem:[%s370 + $0x14] sm:$0xf]
        %v4868 = vld [vmem:[%s370 + $0x18] sm:$0xf]
        %v4869 = vld [vmem:[%s370 + $0x1c] sm:$0xf]
        %v4870 = vld [vmem:[%s370 + $0x20] sm:$0xf]
        %v4871 = vld [vmem:[%s370 + $0x24] sm:$0xf]
        %v4872 = vld [vmem:[%s370 + $0x28] sm:$0xf]
        %v4873 = vld [vmem:[%s370 + $0x2c] sm:$0xf]
        %v4874 = vld [vmem:[%s370 + $0x30] sm:$0xf]
        %v4875 = vld [vmem:[%s370 + $0x34] sm:$0xf]
        %v4876 = vld [vmem:[%s370 + $0x38] sm:$0xf]
        %v4877 = vld [vmem:[%s370 + $0x3c] sm:$0xf]
        %v4878 = vld [vmem:[%s370 + $0x40] sm:$0xf]
        %v4879 = vld [vmem:[%s370 + $0x44] sm:$0xf]
        %v4880 = vld [vmem:[%s370 + $0x48] sm:$0xf]
        %v4881 = vld [vmem:[%s370 + $0x4c] sm:$0xf]
        %v4882 = vld [vmem:[%s370 + $0x50] sm:$0xf]
        %v4883 = vld [vmem:[%s370 + $0x54] sm:$0xf]
        %v4884 = vld [vmem:[%s370 + $0x58] sm:$0xf]
        %v4885 = vld [vmem:[%s370 + $0x5c] sm:$0xf]
        %v4886 = vld [vmem:[%s370 + $0x60] sm:$0xf]
        %v4887 = vld [vmem:[%s370 + $0x64] sm:$0xf]
        %v4888 = vld [vmem:[%s370 + $0x68] sm:$0xf]
        %v4889 = vld [vmem:[%s370 + $0x6c] sm:$0xf]
        %v4890 = vld [vmem:[%s370 + $0x70] sm:$0xf]
        %v4891 = vld [vmem:[%s370 + $0x74] sm:$0xf]
        %v4892 = vld [vmem:[%s370 + $0x78] sm:$0xf]
        %v4893 = vld [vmem:[%s370 + $0x7c] sm:$0xf]
        %v4894 = vld [vmem:[%s370 + $0x80] sm:$0xf]
        %v4895 = vld [vmem:[%s370 + $0x84] sm:$0xf]
        %v4896 = vld [vmem:[%s370 + $0x88] sm:$0xf]
        %v4897 = vld [vmem:[%s370 + $0x8c] sm:$0xf]
        %v4898 = vld [vmem:[%s370 + $0x90] sm:$0xf]
        %v4899 = vld [vmem:[%s370 + $0x94] sm:$0xf]
        %v4900 = vld [vmem:[%s370 + $0x98] sm:$0xf]
        %v4901 = vld [vmem:[%s370 + $0x9c] sm:$0xf]
        %v4902 = vld [vmem:[%s370 + $0xa0] sm:$0xf]
        %v4903 = vld [vmem:[%s370 + $0xa4] sm:$0xf]
        %v4904 = vld [vmem:[%s370 + $0xa8] sm:$0xf]
        %v4905 = vld [vmem:[%s370 + $0xac] sm:$0xf]
        %v4906 = vld [vmem:[%s370 + $0xb0] sm:$0xf]
        %v4907 = vld [vmem:[%s370 + $0xb4] sm:$0xf]
        %v4908 = vld [vmem:[%s370 + $0xb8] sm:$0xf]
        %v4909 = vld [vmem:[%s370 + $0xbc] sm:$0xf]
        %v4910 = vld [vmem:[%s370 + $0xc0] sm:$0xf]
        %v4911 = vld [vmem:[%s370 + $0xc4] sm:$0xf]
        %v4912 = vld [vmem:[%s370 + $0xc8] sm:$0xf]
        %v4913 = vld [vmem:[%s370 + $0xcc] sm:$0xf]
        %v4914 = vld [vmem:[%s370 + $0xd0] sm:$0xf]
        %v4915 = vld [vmem:[%s370 + $0xd4] sm:$0xf]
        %v4916 = vld [vmem:[%s370 + $0xd8] sm:$0xf]
        %v4917 = vld [vmem:[%s370 + $0xdc] sm:$0xf]
        %v4918 = vld [vmem:[%s370 + $0xe0] sm:$0xf]
        %v4919 = vld [vmem:[%s370 + $0xe4] sm:$0xf]
        %v4920 = vld [vmem:[%s370 + $0xe8] sm:$0xf]
        %v4921 = vld [vmem:[%s370 + $0xec] sm:$0xf]
        %v4922 = vld [vmem:[%s370 + $0xf0] sm:$0xf]
        %v4923 = vld [vmem:[%s370 + $0xf4] sm:$0xf]
        %v4924 = vld [vmem:[%s370 + $0xf8] sm:$0xf]
        %v4925 = vld [vmem:[%s370 + $0xfc] sm:$0xf]
        %v4990 = vunpack.c.l.b16 %v4862
        %v4991 = vunpack.c.l.b16 %v4863
        %v4992 = vunpack.c.l.b16 %v4864
        %v4993 = vunpack.c.l.b16 %v4865
        %v4994 = vunpack.c.l.b16 %v4866
        %v4995 = vunpack.c.l.b16 %v4867
        %v4996 = vunpack.c.l.b16 %v4868
        %v4997 = vunpack.c.l.b16 %v4869
        %v4998 = vunpack.c.l.b16 %v4870
        %v4999 = vunpack.c.l.b16 %v4871
        %v5000 = vunpack.c.l.b16 %v4872
        %v5001 = vunpack.c.l.b16 %v4873
        %v5002 = vunpack.c.l.b16 %v4874
        %v5003 = vunpack.c.l.b16 %v4875
        %v5004 = vunpack.c.l.b16 %v4876
        %v5005 = vunpack.c.l.b16 %v4877
        %v5006 = vunpack.c.l.b16 %v4878
        %v5007 = vunpack.c.l.b16 %v4879
        %v5008 = vunpack.c.l.b16 %v4880
        %v5009 = vunpack.c.l.b16 %v4881
        %v5010 = vunpack.c.l.b16 %v4882
        %v5011 = vunpack.c.l.b16 %v4883
        %v5012 = vunpack.c.l.b16 %v4884
        %v5013 = vunpack.c.l.b16 %v4885
        %v5014 = vunpack.c.l.b16 %v4886
        %v5015 = vunpack.c.l.b16 %v4887
        %v5016 = vunpack.c.l.b16 %v4888
        %v5017 = vunpack.c.l.b16 %v4889
        %v5018 = vunpack.c.l.b16 %v4890
        %v5019 = vunpack.c.l.b16 %v4891
        %v5020 = vunpack.c.l.b16 %v4892
        %v5021 = vunpack.c.l.b16 %v4893
        %v5022 = vunpack.c.l.b16 %v4894
        %v5023 = vunpack.c.l.b16 %v4895
        %v5024 = vunpack.c.l.b16 %v4896
        %v5025 = vunpack.c.l.b16 %v4897
        %v5026 = vunpack.c.l.b16 %v4898
        %v5027 = vunpack.c.l.b16 %v4899
        %v5028 = vunpack.c.l.b16 %v4900
        %v5029 = vunpack.c.l.b16 %v4901
        %v5030 = vunpack.c.l.b16 %v4902
        %v5031 = vunpack.c.l.b16 %v4903
        %v5032 = vunpack.c.l.b16 %v4904
        %v5033 = vunpack.c.l.b16 %v4905
        %v5034 = vunpack.c.l.b16 %v4906
        %v5035 = vunpack.c.l.b16 %v4907
        %v5036 = vunpack.c.l.b16 %v4908
        %v5037 = vunpack.c.l.b16 %v4909
        %v5038 = vunpack.c.l.b16 %v4910
        %v5039 = vunpack.c.l.b16 %v4911
        %v5040 = vunpack.c.l.b16 %v4912
        %v5041 = vunpack.c.l.b16 %v4913
        %v5042 = vunpack.c.l.b16 %v4914
        %v5043 = vunpack.c.l.b16 %v4915
        %v5044 = vunpack.c.l.b16 %v4916
        %v5045 = vunpack.c.l.b16 %v4917
        %v5046 = vunpack.c.l.b16 %v4918
        %v5047 = vunpack.c.l.b16 %v4919
        %v5048 = vunpack.c.l.b16 %v4920
        %v5049 = vunpack.c.l.b16 %v4921
        %v5050 = vunpack.c.l.b16 %v4922
        %v5051 = vunpack.c.l.b16 %v4923
        %v5052 = vunpack.c.l.b16 %v4924
        %v5053 = vunpack.c.l.b16 %v4925
        %v5054 = vpack.c.b16 %v4991, %v4990
        %v5055 = vpack.c.b16 %v4993, %v4992
        %v5056 = vpack.c.b16 %v4995, %v4994
        %v5057 = vpack.c.b16 %v4997, %v4996
        %v5058 = vpack.c.b16 %v4999, %v4998
        %v5059 = vpack.c.b16 %v5001, %v5000
        %v5060 = vpack.c.b16 %v5003, %v5002
        %v5061 = vpack.c.b16 %v5005, %v5004
        %v5062 = vpack.c.b16 %v5007, %v5006
        %v5063 = vpack.c.b16 %v5009, %v5008
        %v5064 = vpack.c.b16 %v5011, %v5010
        %v5065 = vpack.c.b16 %v5013, %v5012
        %v5066 = vpack.c.b16 %v5015, %v5014
        %v5067 = vpack.c.b16 %v5017, %v5016
        %v5068 = vpack.c.b16 %v5019, %v5018
        %v5069 = vpack.c.b16 %v5021, %v5020
        %v5070 = vpack.c.b16 %v5023, %v5022
        %v5071 = vpack.c.b16 %v5025, %v5024
        %v5072 = vpack.c.b16 %v5027, %v5026
        %v5073 = vpack.c.b16 %v5029, %v5028
        %v5074 = vpack.c.b16 %v5031, %v5030
        %v5075 = vpack.c.b16 %v5033, %v5032
        %v5076 = vpack.c.b16 %v5035, %v5034
        %v5077 = vpack.c.b16 %v5037, %v5036
        %v5078 = vpack.c.b16 %v5039, %v5038
        %v5079 = vpack.c.b16 %v5041, %v5040
        %v5080 = vpack.c.b16 %v5043, %v5042
        %v5081 = vpack.c.b16 %v5045, %v5044
        %v5082 = vpack.c.b16 %v5047, %v5046
        %v5083 = vpack.c.b16 %v5049, %v5048
        %v5084 = vpack.c.b16 %v5051, %v5050
        %v5085 = vpack.c.b16 %v5053, %v5052
        %5118 = vmatprep.subr.bf16.mxu0 0
        %5119 = vmatpush1.bf16.msra.mxu0 %v5054
        %5120 = vmatprep.subr.bf16.mxu0 0
        %5121 = vmatpush1.bf16.msra.mxu0 %v5055
        %5122 = vmatprep.subr.bf16.mxu0 0
        %5123 = vmatpush1.bf16.msra.mxu0 %v5056
        %5124 = vmatprep.subr.bf16.mxu0 0
        %5125 = vmatpush1.bf16.msra.mxu0 %v5057
        %5126 = vmatprep.subr.bf16.mxu0 0
        %5127 = vmatpush1.bf16.msra.mxu0 %v5058
        %5128 = vmatprep.subr.bf16.mxu0 0
        %5129 = vmatpush1.bf16.msra.mxu0 %v5059
        %5130 = vmatprep.subr.bf16.mxu0 0
        %5131 = vmatpush1.bf16.msra.mxu0 %v5060
        %5132 = vmatprep.subr.bf16.mxu0 0
        %5133 = vmatpush1.bf16.msra.mxu0 %v5061
        %5134 = vmatprep.subr.bf16.mxu0 0
        %5135 = vmatpush1.bf16.msra.mxu0 %v5062
        %5136 = vmatprep.subr.bf16.mxu0 0
        %5137 = vmatpush1.bf16.msra.mxu0 %v5063
        %5138 = vmatprep.subr.bf16.mxu0 0
        %5139 = vmatpush1.bf16.msra.mxu0 %v5064
        %5140 = vmatprep.subr.bf16.mxu0 0
        %5141 = vmatpush1.bf16.msra.mxu0 %v5065
        %5142 = vmatprep.subr.bf16.mxu0 0
        %5143 = vmatpush1.bf16.msra.mxu0 %v5066
        %5144 = vmatprep.subr.bf16.mxu0 0
        %5145 = vmatpush1.bf16.msra.mxu0 %v5067
        %5146 = vmatprep.subr.bf16.mxu0 0
        %5147 = vmatpush1.bf16.msra.mxu0 %v5068
        %5148 = vmatprep.subr.bf16.mxu0 0
        %5149 = vmatpush1.bf16.msra.mxu0 %v5069
        %5150 = vmatprep.mubr.bf16.mxu0 %v4859
        %5151 = vmatmul.mubr.bf16.gmra.mrb[0].mxu0 %v4858
        %v5152 = vpop.f32.mrb[0].mxu0
        %v5153 = vadd.f32 0.0, %v5152
        %v5154 = vpop.f32.mrb[0].mxu0
        %v5155 = vpop.f32.mrb[0].mxu0
        %v5156 = vpop.f32.mrb[0].mxu0
        %5157 = vdwg.mxu0
        %5158 = vmatprep.subr.bf16.mxu0 0
        %5159 = vmatpush1.bf16.msra.mxu0 %v5070
        %5160 = vmatprep.subr.bf16.mxu0 0
        %5161 = vmatpush1.bf16.msra.mxu0 %v5071
        %5162 = vmatprep.subr.bf16.mxu0 0
        %5163 = vmatpush1.bf16.msra.mxu0 %v5072
        %5164 = vmatprep.subr.bf16.mxu0 0
        %5165 = vmatpush1.bf16.msra.mxu0 %v5073
        %5166 = vmatprep.subr.bf16.mxu0 0
        %5167 = vmatpush1.bf16.msra.mxu0 %v5074
        %5168 = vmatprep.subr.bf16.mxu0 0
        %5169 = vmatpush1.bf16.msra.mxu0 %v5075
        %5170 = vmatprep.subr.bf16.mxu0 0
        %5171 = vmatpush1.bf16.msra.mxu0 %v5076
        %5172 = vmatprep.subr.bf16.mxu0 0
        %5173 = vmatpush1.bf16.msra.mxu0 %v5077
        %5174 = vmatprep.subr.bf16.mxu0 0
        %5175 = vmatpush1.bf16.msra.mxu0 %v5078
        %5176 = vmatprep.subr.bf16.mxu0 0
        %5177 = vmatpush1.bf16.msra.mxu0 %v5079
        %5178 = vmatprep.subr.bf16.mxu0 0
        %5179 = vmatpush1.bf16.msra.mxu0 %v5080
        %5180 = vmatprep.subr.bf16.mxu0 0
        %5181 = vmatpush1.bf16.msra.mxu0 %v5081
        %5182 = vmatprep.subr.bf16.mxu0 0
        %5183 = vmatpush1.bf16.msra.mxu0 %v5082
        %5184 = vmatprep.subr.bf16.mxu0 0
        %5185 = vmatpush1.bf16.msra.mxu0 %v5083
        %5186 = vmatprep.subr.bf16.mxu0 0
        %5187 = vmatpush1.bf16.msra.mxu0 %v5084
        %5188 = vmatprep.subr.bf16.mxu0 0
        %5189 = vmatpush1.bf16.msra.mxu0 %v5085
        %5190 = vmatprep.mubr.bf16.mxu0 %v4861
        %5191 = vmatmul.mubr.bf16.gmra.mrb[0].mxu0 %v4860
        %v5192 = vpop.f32.mrb[0].mxu0
        %v5193 = vadd.f32 %v5153, %v5192
        %v5194 = vpop.f32.mrb[0].mxu0
        %v5195 = vpop.f32.mrb[0].mxu0
        %v5196 = vpop.f32.mrb[0].mxu0
        %5197 = vdwg.mxu0
        %5198 = vst [vmem:[%s416] sm:$0x3] %v5193
        %p5199 = scmp.lt.s32.totalorder %s26, 1
        %s5200 = scalar_select %p5199, %s26, 1
        %s5201 = smul.addr %s5200, 2
        %s5202 = scalar_lea.vmem %s7, %s5201
        // Predicated region
        $region73: #{auxiliary_forward.1} parent=47 // pred_check
          %p5203 = pneg %p206
        $region74: #{auxiliary_forward.1} parent=47 // pred_check_branch
          %5205 = sbr.rel (%p5203) target = $region76
        $region75: #{auxiliary_forward.1} parent=47 // pred_region
          _
        $region76: #{auxiliary_forward.1} parent=47 // pred_fallthru
          _
      $region48: #{auxiliary_forward.1} parent=5 // pred_fallthru
        _
      %p5206 = scmp.le.s32.totalorder 2, %s21
      // Predicated region
      $region77: #{auxiliary_forward.1} parent=5 // pred_check
        %p5207 = pneg %p5206
      $region78: #{auxiliary_forward.1} parent=5 // pred_check_branch
        %5209 = sbr.rel (%p5207) target = $region80
      $region79: #{auxiliary_forward.1} parent=5 // pred_region
        %s5210 = ssub.s32 %s21, 2
        // Predicated region
        $region81: #{auxiliary_forward.1} parent=79 // pred_check
          %p5211 = pneg %p212
        $region82: #{auxiliary_forward.1} parent=79 // pred_check_branch
          %5213 = sbr.rel (%p5211) target = $region84
        $region83: #{auxiliary_forward.1} parent=79 // pred_region
          %p5214 = scmp.lt.s32.totalorder %s27, 1
          %s5215 = scalar_select %p5214, %s27, 1
          %s5216 = smul.addr %s5215, 2
          %s5217 = scalar_lea.vmem %s7, %s5216
        $region84: #{auxiliary_forward.1} parent=79 // pred_fallthru
          _
      $region80: #{auxiliary_forward.1} parent=5 // pred_fallthru
        _
    $region6: #{auxiliary_forward.1} parent=1 // loop_footer
      %s25 = sadd.s32 1, %s21
    $region7: #{auxiliary_forward.1} parent=1 // loop_footer_branch
      %20 = sbr.rel target = $region3
    $region8: #{auxiliary_forward.1} parent=1 // loop_exit
      _
    %5218 = vsyncpa [#allocation4], 1
    %s5219 = scalar_lea.sflag [#allocation4], 1
    %5220 = vsyncpa %s5219, 1
    %5221 = vsyncpa [#allocation6], 1
    %5222 = vsyncpa [#allocation9], 1
    %s5223 = scalar_lea.sflag [#allocation9], 1
    %5224 = vsyncpa %s5223, 1
    %5225 = vsyncpa [#allocation12], 1
    %s5226 = scalar_lea.sflag [#allocation12], 1
    %5227 = vsyncpa %s5226, 1

</llo_original>
